<compile_context>
chip_gen: v6e
topology: v6e:2x2x1
jax: 0.10.0
libtpu: 0.0.40
codegen_flags: <defaults>
</compile_context>

<pallas_src>
import jax
import jax.numpy as jnp
from jax.experimental import pallas as pl
from jax.experimental.pallas import tpu as pltpu


# -----------------------------------------------------------------------------
# Pallas kernel: full LSTMTag forward (2-layer LSTM + static FC + classifier).
# -----------------------------------------------------------------------------
def _lstmtag_kernel(x_ref, static_ref,
                    wih0_ref, whh0_ref, b0_ref,
                    wih1_ref, whh1_ref, b1_ref,
                    wsf_ref, bsf_ref,
                    wgh_ref, wgs_ref, bg_ref,
                    out_ref):
    # x_ref:      (T, B, Din)     time-major input sequence
    # static_ref: (B, Dstatic)
    # wih*_ref:   (Din_l, 4H)     transposed input->hidden weights
    # whh*_ref:   (H, 4H)         transposed hidden->hidden weights
    # b*_ref:     (1, 4H)         bias_ih + bias_hh (pre-summed)
    # wsf_ref:    (Dstatic, 8)    static_fc weight^T,  bsf_ref: (1, 8)
    # wgh_ref:    (H, 3)  wgs_ref: (8, 3)  bg_ref: (1, 3)   classifier_g split
    # out_ref:    (B, 3)
    T, B, _ = x_ref.shape
    Hd = whh0_ref.shape[0]

    # Load weights once; they stay resident for the whole recurrence.
    wih0 = wih0_ref[...]
    whh0 = whh0_ref[...]
    b0 = b0_ref[...]
    wih1 = wih1_ref[...]
    whh1 = whh1_ref[...]
    b1 = b1_ref[...]

    def cell(gates, c):
        # PyTorch gate order: i, f, g, o.  Full-width transcendentals over the
        # lane-dense (B, 4H)=(B,128) gates, then slice.
        sig = jax.nn.sigmoid(gates)
        tnh = jnp.tanh(gates)
        i = sig[:, 0 * Hd:1 * Hd]
        f = sig[:, 1 * Hd:2 * Hd]
        g = tnh[:, 2 * Hd:3 * Hd]
        o = sig[:, 3 * Hd:4 * Hd]
        c_new = f * c + i * g
        h_new = o * jnp.tanh(c_new)
        return h_new, c_new

    zeros = jnp.zeros((B, Hd), jnp.float32)
    h0, c0, h1, c1 = zeros, zeros, zeros, zeros

    # T is small and static -> fully unrolled; h/c never leave on-chip memory.
    for t in range(T):
        x_t = x_ref[t]                                           # (B, Din)
        g0 = (jnp.dot(x_t, wih0, preferred_element_type=jnp.float32)
              + jnp.dot(h0, whh0, preferred_element_type=jnp.float32) + b0)
        h0, c0 = cell(g0, c0)
        g1 = (jnp.dot(h0, wih1, preferred_element_type=jnp.float32)
              + jnp.dot(h1, whh1, preferred_element_type=jnp.float32) + b1)
        h1, c1 = cell(g1, c1)

    # Heads: out[:, -1, :] of the PyTorch LSTM is exactly h1 after step T-1.
    s = (jnp.dot(static_ref[...], wsf_ref[...],
                 preferred_element_type=jnp.float32) + bsf_ref[...])
    glob = (jnp.dot(h1, wgh_ref[...], preferred_element_type=jnp.float32)
            + jnp.dot(s, wgs_ref[...], preferred_element_type=jnp.float32)
            + bg_ref[...])
    out_ref[...] = glob


# -----------------------------------------------------------------------------
# Wrapper: layout/weight plumbing + the single pallas_call.
# -----------------------------------------------------------------------------
def lstmtag_forward(x, static, params):
    """x: (B, T, Din) batch_first; static: (B, Dstatic).  Returns glob (B, 3)."""
    (wih0, whh0, bih0, bhh0,
     wih1, whh1, bih1, bhh1,
     wsf, bsf, wg, bg, _wl, _bl) = params
    B, T, Din = x.shape
    Hd = whh0.shape[1]
    n_cls = wg.shape[0]

    x_tm = jnp.transpose(x, (1, 0, 2))                           # (T, B, Din)
    args = (
        x_tm, static,
        wih0.T, whh0.T, (bih0 + bhh0).reshape(1, 4 * Hd),
        wih1.T, whh1.T, (bih1 + bhh1).reshape(1, 4 * Hd),
        wsf.T, bsf.reshape(1, -1),
        wg[:, :Hd].T, wg[:, Hd:].T, bg.reshape(1, -1),
    )
    vmem = pl.BlockSpec(memory_space=pltpu.MemorySpace.VMEM)
    return pl.pallas_call(
        _lstmtag_kernel,
        out_shape=jax.ShapeDtypeStruct((B, n_cls), jnp.float32),
        in_specs=[vmem] * len(args),
        out_specs=vmem,
    )(*args)


# -----------------------------------------------------------------------------
# Pure-JAX reference (mirrors PyTorch nn.LSTM / Linear math) for correctness.
# -----------------------------------------------------------------------------
def _ref_forward(x, static, params):
    (wih0, whh0, bih0, bhh0,
     wih1, whh1, bih1, bhh1,
     wsf, bsf, wg, bg, _wl, _bl) = params
    B, T, _ = x.shape
    Hd = whh0.shape[1]

    def run_layer(inp, wih, whh, bih, bhh):
        h = jnp.zeros((B, Hd), jnp.float32)
        c = jnp.zeros((B, Hd), jnp.float32)
        outs = []
        for t in range(T):
            gates = inp[:, t] @ wih.T + bih + h @ whh.T + bhh
            i, f, g, o = jnp.split(gates, 4, axis=1)
            i, f, o = jax.nn.sigmoid(i), jax.nn.sigmoid(f), jax.nn.sigmoid(o)
            g = jnp.tanh(g)
            c = f * c + i * g
            h = o * jnp.tanh(c)
            outs.append(h)
        return jnp.stack(outs, axis=1)

    out0 = run_layer(x, wih0, whh0, bih0, bhh0)
    out1 = run_layer(out0, wih1, whh1, bih1, bhh1)
    last = out1[:, -1]
    s = static @ wsf.T + bsf
    feat = jnp.concatenate([last, s], axis=1)
    return feat @ wg.T + bg


# -----------------------------------------------------------------------------
# Deterministic parameters mirroring the PyTorch module's shapes.
# -----------------------------------------------------------------------------
def make_params(key, input_dim=8, hidden=32, static_dim=16, n_classes=3):
    ks = jax.random.split(key, 14)

    def init(k, shape, scale=0.1):
        return scale * jax.random.normal(k, shape, jnp.float32)

    wih0 = init(ks[0], (4 * hidden, input_dim))     # lstm.weight_ih_l0
    whh0 = init(ks[1], (4 * hidden, hidden))        # lstm.weight_hh_l0
    bih0 = init(ks[2], (4 * hidden,))
    bhh0 = init(ks[3], (4 * hidden,))
    wih1 = init(ks[4], (4 * hidden, hidden))        # lstm.weight_ih_l1
    whh1 = init(ks[5], (4 * hidden, hidden))
    bih1 = init(ks[6], (4 * hidden,))
    bhh1 = init(ks[7], (4 * hidden,))
    wsf = init(ks[8], (8, static_dim))              # static_fc
    bsf = init(ks[9], (8,))
    wg = init(ks[10], (n_classes, hidden + 8))      # classifier_g
    bg = init(ks[11], (n_classes,))
    wl = init(ks[12], (n_classes, hidden + 8))      # classifier_l (unused output)
    bl = init(ks[13], (n_classes,))
    return (wih0, whh0, bih0, bhh0, wih1, whh1, bih1, bhh1,
            wsf, bsf, wg, bg, wl, bl)


if __name__ == "__main__":
    B, T, Din, Dstatic, Hd, n_cls = 2, 8, 8, 16, 32, 3

    key = jax.random.PRNGKey(0)
    key, xk, sk = jax.random.split(key, 3)
    x = jax.random.normal(xk, (B, T, Din), jnp.float32)
    static = jax.random.normal(sk, (B, Dstatic), jnp.float32)
    params = make_params(key, Din, Hd, Dstatic, n_cls)

    fwd = jax.jit(lstmtag_forward)
    glob = fwd(x, static, params)
    jax.block_until_ready(glob)

    ref = _ref_forward(x, static, params)
    assert glob.shape == (B, n_cls)
    assert jnp.allclose(glob, ref, atol=1e-4, rtol=1e-4), \
        float(jnp.max(jnp.abs(glob - ref)))

    print("KERNEL_OK")
</pallas_src>

<mosaic_0001>
module attributes {stable_mosaic.version = 11 : i64} {
  func.func @_lstmtag_kernel(%arg0: memref<8x2x8xf32, #tpu.memory_space<vmem>>, %arg1: memref<2x16xf32, #tpu.memory_space<vmem>>, %arg2: memref<8x128xf32, #tpu.memory_space<vmem>>, %arg3: memref<32x128xf32, #tpu.memory_space<vmem>>, %arg4: memref<1x128xf32, #tpu.memory_space<vmem>>, %arg5: memref<32x128xf32, #tpu.memory_space<vmem>>, %arg6: memref<32x128xf32, #tpu.memory_space<vmem>>, %arg7: memref<1x128xf32, #tpu.memory_space<vmem>>, %arg8: memref<16x8xf32, #tpu.memory_space<vmem>>, %arg9: memref<1x8xf32, #tpu.memory_space<vmem>>, %arg10: memref<32x3xf32, #tpu.memory_space<vmem>>, %arg11: memref<8x3xf32, #tpu.memory_space<vmem>>, %arg12: memref<1x3xf32, #tpu.memory_space<vmem>>, %arg13: memref<2x3xf32, #tpu.memory_space<vmem>>) attributes {dimension_semantics = [], scalar_prefetch = 0 : i64, scratch_operands = 0 : i64, tpu.core_type = #tpu.core_type<tc>} {
    %c0 = arith.constant 0 : index
    %c0_0 = arith.constant 0 : index
    %0 = vector.load %arg2[%c0, %c0_0] : memref<8x128xf32, #tpu.memory_space<vmem>>, vector<8x128xf32>
    %c0_1 = arith.constant 0 : index
    %c0_2 = arith.constant 0 : index
    %1 = vector.load %arg3[%c0_1, %c0_2] : memref<32x128xf32, #tpu.memory_space<vmem>>, vector<32x128xf32>
    %c0_3 = arith.constant 0 : index
    %c0_4 = arith.constant 0 : index
    %2 = vector.load %arg4[%c0_3, %c0_4] : memref<1x128xf32, #tpu.memory_space<vmem>>, vector<1x128xf32>
    %c0_5 = arith.constant 0 : index
    %c0_6 = arith.constant 0 : index
    %3 = vector.load %arg5[%c0_5, %c0_6] : memref<32x128xf32, #tpu.memory_space<vmem>>, vector<32x128xf32>
    %c0_7 = arith.constant 0 : index
    %c0_8 = arith.constant 0 : index
    %4 = vector.load %arg6[%c0_7, %c0_8] : memref<32x128xf32, #tpu.memory_space<vmem>>, vector<32x128xf32>
    %c0_9 = arith.constant 0 : index
    %c0_10 = arith.constant 0 : index
    %5 = vector.load %arg7[%c0_9, %c0_10] : memref<1x128xf32, #tpu.memory_space<vmem>>, vector<1x128xf32>
    %cst = arith.constant 0.000000e+00 : f32
    %6 = vector.broadcast %cst : f32 to vector<2x32xf32>
    %c0_11 = arith.constant 0 : index
    %c0_12 = arith.constant 0 : index
    %c0_13 = arith.constant 0 : index
    %7 = vector.load %arg0[%c0_11, %c0_12, %c0_13] : memref<8x2x8xf32, #tpu.memory_space<vmem>>, vector<1x2x8xf32>
    %8 = vector.shape_cast %7 : vector<1x2x8xf32> to vector<2x8xf32>
    %cst_14 = arith.constant dense<0.000000e+00> : vector<2x128xf32>
    %9 = tpu.matmul %8, %0, %cst_14 {dimension_numbers = #tpu.dot_dimension_numbers<[1], [0], [0], [1], [0, 0, 1, 1], [], []>} : vector<2x8xf32>, vector<8x128xf32>, vector<2x128xf32> -> vector<2x128xf32>
    %cst_15 = arith.constant dense<0.000000e+00> : vector<2x128xf32>
    %10 = tpu.matmul %6, %1, %cst_15 {dimension_numbers = #tpu.dot_dimension_numbers<[1], [0], [0], [1], [0, 0, 1, 1], [], []>} : vector<2x32xf32>, vector<32x128xf32>, vector<2x128xf32> -> vector<2x128xf32>
    %11 = arith.addf %9, %10 : vector<2x128xf32>
    %12 = vector.broadcast %2 : vector<1x128xf32> to vector<2x128xf32>
    %13 = arith.addf %11, %12 : vector<2x128xf32>
    %14 = arith.negf %13 : vector<2x128xf32>
    %15 = math.exp %14 : vector<2x128xf32>
    %cst_16 = arith.constant 1.000000e+00 : f32
    %16 = vector.broadcast %cst_16 : f32 to vector<2x128xf32>
    %17 = arith.addf %16, %15 : vector<2x128xf32>
    %18 = arith.divf %16, %17 : vector<2x128xf32>
    %19 = math.tanh %13 : vector<2x128xf32>
    %20 = vector.extract_strided_slice %18 {offsets = [0, 0], sizes = [2, 32], strides = [1, 1]} : vector<2x128xf32> to vector<2x32xf32>
    %21 = vector.extract_strided_slice %18 {offsets = [0, 32], sizes = [2, 32], strides = [1, 1]} : vector<2x128xf32> to vector<2x32xf32>
    %22 = vector.extract_strided_slice %19 {offsets = [0, 64], sizes = [2, 32], strides = [1, 1]} : vector<2x128xf32> to vector<2x32xf32>
    %23 = vector.extract_strided_slice %18 {offsets = [0, 96], sizes = [2, 32], strides = [1, 1]} : vector<2x128xf32> to vector<2x32xf32>
    %24 = arith.mulf %21, %6 : vector<2x32xf32>
    %25 = arith.mulf %20, %22 : vector<2x32xf32>
    %26 = arith.addf %24, %25 : vector<2x32xf32>
    %27 = math.tanh %26 : vector<2x32xf32>
    %28 = arith.mulf %23, %27 : vector<2x32xf32>
    %cst_17 = arith.constant dense<0.000000e+00> : vector<2x128xf32>
    %29 = tpu.matmul %28, %3, %cst_17 {dimension_numbers = #tpu.dot_dimension_numbers<[1], [0], [0], [1], [0, 0, 1, 1], [], []>} : vector<2x32xf32>, vector<32x128xf32>, vector<2x128xf32> -> vector<2x128xf32>
    %cst_18 = arith.constant dense<0.000000e+00> : vector<2x128xf32>
    %30 = tpu.matmul %6, %4, %cst_18 {dimension_numbers = #tpu.dot_dimension_numbers<[1], [0], [0], [1], [0, 0, 1, 1], [], []>} : vector<2x32xf32>, vector<32x128xf32>, vector<2x128xf32> -> vector<2x128xf32>
    %31 = arith.addf %29, %30 : vector<2x128xf32>
    %32 = vector.broadcast %5 : vector<1x128xf32> to vector<2x128xf32>
    %33 = arith.addf %31, %32 : vector<2x128xf32>
    %34 = arith.negf %33 : vector<2x128xf32>
    %35 = math.exp %34 : vector<2x128xf32>
    %cst_19 = arith.constant 1.000000e+00 : f32
    %36 = vector.broadcast %cst_19 : f32 to vector<2x128xf32>
    %37 = arith.addf %36, %35 : vector<2x128xf32>
    %38 = arith.divf %36, %37 : vector<2x128xf32>
    %39 = math.tanh %33 : vector<2x128xf32>
    %40 = vector.extract_strided_slice %38 {offsets = [0, 0], sizes = [2, 32], strides = [1, 1]} : vector<2x128xf32> to vector<2x32xf32>
    %41 = vector.extract_strided_slice %38 {offsets = [0, 32], sizes = [2, 32], strides = [1, 1]} : vector<2x128xf32> to vector<2x32xf32>
    %42 = vector.extract_strided_slice %39 {offsets = [0, 64], sizes = [2, 32], strides = [1, 1]} : vector<2x128xf32> to vector<2x32xf32>
    %43 = vector.extract_strided_slice %38 {offsets = [0, 96], sizes = [2, 32], strides = [1, 1]} : vector<2x128xf32> to vector<2x32xf32>
    %44 = arith.mulf %41, %6 : vector<2x32xf32>
    %45 = arith.mulf %40, %42 : vector<2x32xf32>
    %46 = arith.addf %44, %45 : vector<2x32xf32>
    %47 = math.tanh %46 : vector<2x32xf32>
    %48 = arith.mulf %43, %47 : vector<2x32xf32>
    %c1 = arith.constant 1 : index
    %c0_20 = arith.constant 0 : index
    %c0_21 = arith.constant 0 : index
    %49 = vector.load %arg0[%c1, %c0_20, %c0_21] : memref<8x2x8xf32, #tpu.memory_space<vmem>>, vector<1x2x8xf32>
    %50 = vector.shape_cast %49 : vector<1x2x8xf32> to vector<2x8xf32>
    %cst_22 = arith.constant dense<0.000000e+00> : vector<2x128xf32>
    %51 = tpu.matmul %50, %0, %cst_22 {dimension_numbers = #tpu.dot_dimension_numbers<[1], [0], [0], [1], [0, 0, 1, 1], [], []>} : vector<2x8xf32>, vector<8x128xf32>, vector<2x128xf32> -> vector<2x128xf32>
    %cst_23 = arith.constant dense<0.000000e+00> : vector<2x128xf32>
    %52 = tpu.matmul %28, %1, %cst_23 {dimension_numbers = #tpu.dot_dimension_numbers<[1], [0], [0], [1], [0, 0, 1, 1], [], []>} : vector<2x32xf32>, vector<32x128xf32>, vector<2x128xf32> -> vector<2x128xf32>
    %53 = arith.addf %51, %52 : vector<2x128xf32>
    %54 = vector.broadcast %2 : vector<1x128xf32> to vector<2x128xf32>
    %55 = arith.addf %53, %54 : vector<2x128xf32>
    %56 = arith.negf %55 : vector<2x128xf32>
    %57 = math.exp %56 : vector<2x128xf32>
    %cst_24 = arith.constant 1.000000e+00 : f32
    %58 = vector.broadcast %cst_24 : f32 to vector<2x128xf32>
    %59 = arith.addf %58, %57 : vector<2x128xf32>
    %60 = arith.divf %58, %59 : vector<2x128xf32>
    %61 = math.tanh %55 : vector<2x128xf32>
    %62 = vector.extract_strided_slice %60 {offsets = [0, 0], sizes = [2, 32], strides = [1, 1]} : vector<2x128xf32> to vector<2x32xf32>
    %63 = vector.extract_strided_slice %60 {offsets = [0, 32], sizes = [2, 32], strides = [1, 1]} : vector<2x128xf32> to vector<2x32xf32>
    %64 = vector.extract_strided_slice %61 {offsets = [0, 64], sizes = [2, 32], strides = [1, 1]} : vector<2x128xf32> to vector<2x32xf32>
    %65 = vector.extract_strided_slice %60 {offsets = [0, 96], sizes = [2, 32], strides = [1, 1]} : vector<2x128xf32> to vector<2x32xf32>
    %66 = arith.mulf %63, %26 : vector<2x32xf32>
    %67 = arith.mulf %62, %64 : vector<2x32xf32>
    %68 = arith.addf %66, %67 : vector<2x32xf32>
    %69 = math.tanh %68 : vector<2x32xf32>
    %70 = arith.mulf %65, %69 : vector<2x32xf32>
    %cst_25 = arith.constant dense<0.000000e+00> : vector<2x128xf32>
    %71 = tpu.matmul %70, %3, %cst_25 {dimension_numbers = #tpu.dot_dimension_numbers<[1], [0], [0], [1], [0, 0, 1, 1], [], []>} : vector<2x32xf32>, vector<32x128xf32>, vector<2x128xf32> -> vector<2x128xf32>
    %cst_26 = arith.constant dense<0.000000e+00> : vector<2x128xf32>
    %72 = tpu.matmul %48, %4, %cst_26 {dimension_numbers = #tpu.dot_dimension_numbers<[1], [0], [0], [1], [0, 0, 1, 1], [], []>} : vector<2x32xf32>, vector<32x128xf32>, vector<2x128xf32> -> vector<2x128xf32>
    %73 = arith.addf %71, %72 : vector<2x128xf32>
    %74 = vector.broadcast %5 : vector<1x128xf32> to vector<2x128xf32>
    %75 = arith.addf %73, %74 : vector<2x128xf32>
    %76 = arith.negf %75 : vector<2x128xf32>
    %77 = math.exp %76 : vector<2x128xf32>
    %cst_27 = arith.constant 1.000000e+00 : f32
    %78 = vector.broadcast %cst_27 : f32 to vector<2x128xf32>
    %79 = arith.addf %78, %77 : vector<2x128xf32>
    %80 = arith.divf %78, %79 : vector<2x128xf32>
    %81 = math.tanh %75 : vector<2x128xf32>
    %82 = vector.extract_strided_slice %80 {offsets = [0, 0], sizes = [2, 32], strides = [1, 1]} : vector<2x128xf32> to vector<2x32xf32>
    %83 = vector.extract_strided_slice %80 {offsets = [0, 32], sizes = [2, 32], strides = [1, 1]} : vector<2x128xf32> to vector<2x32xf32>
    %84 = vector.extract_strided_slice %81 {offsets = [0, 64], sizes = [2, 32], strides = [1, 1]} : vector<2x128xf32> to vector<2x32xf32>
    %85 = vector.extract_strided_slice %80 {offsets = [0, 96], sizes = [2, 32], strides = [1, 1]} : vector<2x128xf32> to vector<2x32xf32>
    %86 = arith.mulf %83, %46 : vector<2x32xf32>
    %87 = arith.mulf %82, %84 : vector<2x32xf32>
    %88 = arith.addf %86, %87 : vector<2x32xf32>
    %89 = math.tanh %88 : vector<2x32xf32>
    %90 = arith.mulf %85, %89 : vector<2x32xf32>
    %c2 = arith.constant 2 : index
    %c0_28 = arith.constant 0 : index
    %c0_29 = arith.constant 0 : index
    %91 = vector.load %arg0[%c2, %c0_28, %c0_29] : memref<8x2x8xf32, #tpu.memory_space<vmem>>, vector<1x2x8xf32>
    %92 = vector.shape_cast %91 : vector<1x2x8xf32> to vector<2x8xf32>
    %cst_30 = arith.constant dense<0.000000e+00> : vector<2x128xf32>
    %93 = tpu.matmul %92, %0, %cst_30 {dimension_numbers = #tpu.dot_dimension_numbers<[1], [0], [0], [1], [0, 0, 1, 1], [], []>} : vector<2x8xf32>, vector<8x128xf32>, vector<2x128xf32> -> vector<2x128xf32>
    %cst_31 = arith.constant dense<0.000000e+00> : vector<2x128xf32>
    %94 = tpu.matmul %70, %1, %cst_31 {dimension_numbers = #tpu.dot_dimension_numbers<[1], [0], [0], [1], [0, 0, 1, 1], [], []>} : vector<2x32xf32>, vector<32x128xf32>, vector<2x128xf32> -> vector<2x128xf32>
    %95 = arith.addf %93, %94 : vector<2x128xf32>
    %96 = vector.broadcast %2 : vector<1x128xf32> to vector<2x128xf32>
    %97 = arith.addf %95, %96 : vector<2x128xf32>
    %98 = arith.negf %97 : vector<2x128xf32>
    %99 = math.exp %98 : vector<2x128xf32>
    %cst_32 = arith.constant 1.000000e+00 : f32
    %100 = vector.broadcast %cst_32 : f32 to vector<2x128xf32>
    %101 = arith.addf %100, %99 : vector<2x128xf32>
    %102 = arith.divf %100, %101 : vector<2x128xf32>
    %103 = math.tanh %97 : vector<2x128xf32>
    %104 = vector.extract_strided_slice %102 {offsets = [0, 0], sizes = [2, 32], strides = [1, 1]} : vector<2x128xf32> to vector<2x32xf32>
    %105 = vector.extract_strided_slice %102 {offsets = [0, 32], sizes = [2, 32], strides = [1, 1]} : vector<2x128xf32> to vector<2x32xf32>
    %106 = vector.extract_strided_slice %103 {offsets = [0, 64], sizes = [2, 32], strides = [1, 1]} : vector<2x128xf32> to vector<2x32xf32>
    %107 = vector.extract_strided_slice %102 {offsets = [0, 96], sizes = [2, 32], strides = [1, 1]} : vector<2x128xf32> to vector<2x32xf32>
    %108 = arith.mulf %105, %68 : vector<2x32xf32>
    %109 = arith.mulf %104, %106 : vector<2x32xf32>
    %110 = arith.addf %108, %109 : vector<2x32xf32>
    %111 = math.tanh %110 : vector<2x32xf32>
    %112 = arith.mulf %107, %111 : vector<2x32xf32>
    %cst_33 = arith.constant dense<0.000000e+00> : vector<2x128xf32>
    %113 = tpu.matmul %112, %3, %cst_33 {dimension_numbers = #tpu.dot_dimension_numbers<[1], [0], [0], [1], [0, 0, 1, 1], [], []>} : vector<2x32xf32>, vector<32x128xf32>, vector<2x128xf32> -> vector<2x128xf32>
    %cst_34 = arith.constant dense<0.000000e+00> : vector<2x128xf32>
    %114 = tpu.matmul %90, %4, %cst_34 {dimension_numbers = #tpu.dot_dimension_numbers<[1], [0], [0], [1], [0, 0, 1, 1], [], []>} : vector<2x32xf32>, vector<32x128xf32>, vector<2x128xf32> -> vector<2x128xf32>
    %115 = arith.addf %113, %114 : vector<2x128xf32>
    %116 = vector.broadcast %5 : vector<1x128xf32> to vector<2x128xf32>
    %117 = arith.addf %115, %116 : vector<2x128xf32>
    %118 = arith.negf %117 : vector<2x128xf32>
    %119 = math.exp %118 : vector<2x128xf32>
    %cst_35 = arith.constant 1.000000e+00 : f32
    %120 = vector.broadcast %cst_35 : f32 to vector<2x128xf32>
    %121 = arith.addf %120, %119 : vector<2x128xf32>
    %122 = arith.divf %120, %121 : vector<2x128xf32>
    %123 = math.tanh %117 : vector<2x128xf32>
    %124 = vector.extract_strided_slice %122 {offsets = [0, 0], sizes = [2, 32], strides = [1, 1]} : vector<2x128xf32> to vector<2x32xf32>
    %125 = vector.extract_strided_slice %122 {offsets = [0, 32], sizes = [2, 32], strides = [1, 1]} : vector<2x128xf32> to vector<2x32xf32>
    %126 = vector.extract_strided_slice %123 {offsets = [0, 64], sizes = [2, 32], strides = [1, 1]} : vector<2x128xf32> to vector<2x32xf32>
    %127 = vector.extract_strided_slice %122 {offsets = [0, 96], sizes = [2, 32], strides = [1, 1]} : vector<2x128xf32> to vector<2x32xf32>
    %128 = arith.mulf %125, %88 : vector<2x32xf32>
    %129 = arith.mulf %124, %126 : vector<2x32xf32>
    %130 = arith.addf %128, %129 : vector<2x32xf32>
    %131 = math.tanh %130 : vector<2x32xf32>
    %132 = arith.mulf %127, %131 : vector<2x32xf32>
    %c3 = arith.constant 3 : index
    %c0_36 = arith.constant 0 : index
    %c0_37 = arith.constant 0 : index
    %133 = vector.load %arg0[%c3, %c0_36, %c0_37] : memref<8x2x8xf32, #tpu.memory_space<vmem>>, vector<1x2x8xf32>
    %134 = vector.shape_cast %133 : vector<1x2x8xf32> to vector<2x8xf32>
    %cst_38 = arith.constant dense<0.000000e+00> : vector<2x128xf32>
    %135 = tpu.matmul %134, %0, %cst_38 {dimension_numbers = #tpu.dot_dimension_numbers<[1], [0], [0], [1], [0, 0, 1, 1], [], []>} : vector<2x8xf32>, vector<8x128xf32>, vector<2x128xf32> -> vector<2x128xf32>
    %cst_39 = arith.constant dense<0.000000e+00> : vector<2x128xf32>
    %136 = tpu.matmul %112, %1, %cst_39 {dimension_numbers = #tpu.dot_dimension_numbers<[1], [0], [0], [1], [0, 0, 1, 1], [], []>} : vector<2x32xf32>, vector<32x128xf32>, vector<2x128xf32> -> vector<2x128xf32>
    %137 = arith.addf %135, %136 : vector<2x128xf32>
    %138 = vector.broadcast %2 : vector<1x128xf32> to vector<2x128xf32>
    %139 = arith.addf %137, %138 : vector<2x128xf32>
    %140 = arith.negf %139 : vector<2x128xf32>
    %141 = math.exp %140 : vector<2x128xf32>
    %cst_40 = arith.constant 1.000000e+00 : f32
    %142 = vector.broadcast %cst_40 : f32 to vector<2x128xf32>
    %143 = arith.addf %142, %141 : vector<2x128xf32>
    %144 = arith.divf %142, %143 : vector<2x128xf32>
    %145 = math.tanh %139 : vector<2x128xf32>
    %146 = vector.extract_strided_slice %144 {offsets = [0, 0], sizes = [2, 32], strides = [1, 1]} : vector<2x128xf32> to vector<2x32xf32>
    %147 = vector.extract_strided_slice %144 {offsets = [0, 32], sizes = [2, 32], strides = [1, 1]} : vector<2x128xf32> to vector<2x32xf32>
    %148 = vector.extract_strided_slice %145 {offsets = [0, 64], sizes = [2, 32], strides = [1, 1]} : vector<2x128xf32> to vector<2x32xf32>
    %149 = vector.extract_strided_slice %144 {offsets = [0, 96], sizes = [2, 32], strides = [1, 1]} : vector<2x128xf32> to vector<2x32xf32>
    %150 = arith.mulf %147, %110 : vector<2x32xf32>
    %151 = arith.mulf %146, %148 : vector<2x32xf32>
    %152 = arith.addf %150, %151 : vector<2x32xf32>
    %153 = math.tanh %152 : vector<2x32xf32>
    %154 = arith.mulf %149, %153 : vector<2x32xf32>
    %cst_41 = arith.constant dense<0.000000e+00> : vector<2x128xf32>
    %155 = tpu.matmul %154, %3, %cst_41 {dimension_numbers = #tpu.dot_dimension_numbers<[1], [0], [0], [1], [0, 0, 1, 1], [], []>} : vector<2x32xf32>, vector<32x128xf32>, vector<2x128xf32> -> vector<2x128xf32>
    %cst_42 = arith.constant dense<0.000000e+00> : vector<2x128xf32>
    %156 = tpu.matmul %132, %4, %cst_42 {dimension_numbers = #tpu.dot_dimension_numbers<[1], [0], [0], [1], [0, 0, 1, 1], [], []>} : vector<2x32xf32>, vector<32x128xf32>, vector<2x128xf32> -> vector<2x128xf32>
    %157 = arith.addf %155, %156 : vector<2x128xf32>
    %158 = vector.broadcast %5 : vector<1x128xf32> to vector<2x128xf32>
    %159 = arith.addf %157, %158 : vector<2x128xf32>
    %160 = arith.negf %159 : vector<2x128xf32>
    %161 = math.exp %160 : vector<2x128xf32>
    %cst_43 = arith.constant 1.000000e+00 : f32
    %162 = vector.broadcast %cst_43 : f32 to vector<2x128xf32>
    %163 = arith.addf %162, %161 : vector<2x128xf32>
    %164 = arith.divf %162, %163 : vector<2x128xf32>
    %165 = math.tanh %159 : vector<2x128xf32>
    %166 = vector.extract_strided_slice %164 {offsets = [0, 0], sizes = [2, 32], strides = [1, 1]} : vector<2x128xf32> to vector<2x32xf32>
    %167 = vector.extract_strided_slice %164 {offsets = [0, 32], sizes = [2, 32], strides = [1, 1]} : vector<2x128xf32> to vector<2x32xf32>
    %168 = vector.extract_strided_slice %165 {offsets = [0, 64], sizes = [2, 32], strides = [1, 1]} : vector<2x128xf32> to vector<2x32xf32>
    %169 = vector.extract_strided_slice %164 {offsets = [0, 96], sizes = [2, 32], strides = [1, 1]} : vector<2x128xf32> to vector<2x32xf32>
    %170 = arith.mulf %167, %130 : vector<2x32xf32>
    %171 = arith.mulf %166, %168 : vector<2x32xf32>
    %172 = arith.addf %170, %171 : vector<2x32xf32>
    %173 = math.tanh %172 : vector<2x32xf32>
    %174 = arith.mulf %169, %173 : vector<2x32xf32>
    %c4 = arith.constant 4 : index
    %c0_44 = arith.constant 0 : index
    %c0_45 = arith.constant 0 : index
    %175 = vector.load %arg0[%c4, %c0_44, %c0_45] : memref<8x2x8xf32, #tpu.memory_space<vmem>>, vector<1x2x8xf32>
    %176 = vector.shape_cast %175 : vector<1x2x8xf32> to vector<2x8xf32>
    %cst_46 = arith.constant dense<0.000000e+00> : vector<2x128xf32>
    %177 = tpu.matmul %176, %0, %cst_46 {dimension_numbers = #tpu.dot_dimension_numbers<[1], [0], [0], [1], [0, 0, 1, 1], [], []>} : vector<2x8xf32>, vector<8x128xf32>, vector<2x128xf32> -> vector<2x128xf32>
    %cst_47 = arith.constant dense<0.000000e+00> : vector<2x128xf32>
    %178 = tpu.matmul %154, %1, %cst_47 {dimension_numbers = #tpu.dot_dimension_numbers<[1], [0], [0], [1], [0, 0, 1, 1], [], []>} : vector<2x32xf32>, vector<32x128xf32>, vector<2x128xf32> -> vector<2x128xf32>
    %179 = arith.addf %177, %178 : vector<2x128xf32>
    %180 = vector.broadcast %2 : vector<1x128xf32> to vector<2x128xf32>
    %181 = arith.addf %179, %180 : vector<2x128xf32>
    %182 = arith.negf %181 : vector<2x128xf32>
    %183 = math.exp %182 : vector<2x128xf32>
    %cst_48 = arith.constant 1.000000e+00 : f32
    %184 = vector.broadcast %cst_48 : f32 to vector<2x128xf32>
    %185 = arith.addf %184, %183 : vector<2x128xf32>
    %186 = arith.divf %184, %185 : vector<2x128xf32>
    %187 = math.tanh %181 : vector<2x128xf32>
    %188 = vector.extract_strided_slice %186 {offsets = [0, 0], sizes = [2, 32], strides = [1, 1]} : vector<2x128xf32> to vector<2x32xf32>
    %189 = vector.extract_strided_slice %186 {offsets = [0, 32], sizes = [2, 32], strides = [1, 1]} : vector<2x128xf32> to vector<2x32xf32>
    %190 = vector.extract_strided_slice %187 {offsets = [0, 64], sizes = [2, 32], strides = [1, 1]} : vector<2x128xf32> to vector<2x32xf32>
    %191 = vector.extract_strided_slice %186 {offsets = [0, 96], sizes = [2, 32], strides = [1, 1]} : vector<2x128xf32> to vector<2x32xf32>
    %192 = arith.mulf %189, %152 : vector<2x32xf32>
    %193 = arith.mulf %188, %190 : vector<2x32xf32>
    %194 = arith.addf %192, %193 : vector<2x32xf32>
    %195 = math.tanh %194 : vector<2x32xf32>
    %196 = arith.mulf %191, %195 : vector<2x32xf32>
    %cst_49 = arith.constant dense<0.000000e+00> : vector<2x128xf32>
    %197 = tpu.matmul %196, %3, %cst_49 {dimension_numbers = #tpu.dot_dimension_numbers<[1], [0], [0], [1], [0, 0, 1, 1], [], []>} : vector<2x32xf32>, vector<32x128xf32>, vector<2x128xf32> -> vector<2x128xf32>
    %cst_50 = arith.constant dense<0.000000e+00> : vector<2x128xf32>
    %198 = tpu.matmul %174, %4, %cst_50 {dimension_numbers = #tpu.dot_dimension_numbers<[1], [0], [0], [1], [0, 0, 1, 1], [], []>} : vector<2x32xf32>, vector<32x128xf32>, vector<2x128xf32> -> vector<2x128xf32>
    %199 = arith.addf %197, %198 : vector<2x128xf32>
    %200 = vector.broadcast %5 : vector<1x128xf32> to vector<2x128xf32>
    %201 = arith.addf %199, %200 : vector<2x128xf32>
    %202 = arith.negf %201 : vector<2x128xf32>
    %203 = math.exp %202 : vector<2x128xf32>
    %cst_51 = arith.constant 1.000000e+00 : f32
    %204 = vector.broadcast %cst_51 : f32 to vector<2x128xf32>
    %205 = arith.addf %204, %203 : vector<2x128xf32>
    %206 = arith.divf %204, %205 : vector<2x128xf32>
    %207 = math.tanh %201 : vector<2x128xf32>
    %208 = vector.extract_strided_slice %206 {offsets = [0, 0], sizes = [2, 32], strides = [1, 1]} : vector<2x128xf32> to vector<2x32xf32>
    %209 = vector.extract_strided_slice %206 {offsets = [0, 32], sizes = [2, 32], strides = [1, 1]} : vector<2x128xf32> to vector<2x32xf32>
    %210 = vector.extract_strided_slice %207 {offsets = [0, 64], sizes = [2, 32], strides = [1, 1]} : vector<2x128xf32> to vector<2x32xf32>
    %211 = vector.extract_strided_slice %206 {offsets = [0, 96], sizes = [2, 32], strides = [1, 1]} : vector<2x128xf32> to vector<2x32xf32>
    %212 = arith.mulf %209, %172 : vector<2x32xf32>
    %213 = arith.mulf %208, %210 : vector<2x32xf32>
    %214 = arith.addf %212, %213 : vector<2x32xf32>
    %215 = math.tanh %214 : vector<2x32xf32>
    %216 = arith.mulf %211, %215 : vector<2x32xf32>
    %c5 = arith.constant 5 : index
    %c0_52 = arith.constant 0 : index
    %c0_53 = arith.constant 0 : index
    %217 = vector.load %arg0[%c5, %c0_52, %c0_53] : memref<8x2x8xf32, #tpu.memory_space<vmem>>, vector<1x2x8xf32>
    %218 = vector.shape_cast %217 : vector<1x2x8xf32> to vector<2x8xf32>
    %cst_54 = arith.constant dense<0.000000e+00> : vector<2x128xf32>
    %219 = tpu.matmul %218, %0, %cst_54 {dimension_numbers = #tpu.dot_dimension_numbers<[1], [0], [0], [1], [0, 0, 1, 1], [], []>} : vector<2x8xf32>, vector<8x128xf32>, vector<2x128xf32> -> vector<2x128xf32>
    %cst_55 = arith.constant dense<0.000000e+00> : vector<2x128xf32>
    %220 = tpu.matmul %196, %1, %cst_55 {dimension_numbers = #tpu.dot_dimension_numbers<[1], [0], [0], [1], [0, 0, 1, 1], [], []>} : vector<2x32xf32>, vector<32x128xf32>, vector<2x128xf32> -> vector<2x128xf32>
    %221 = arith.addf %219, %220 : vector<2x128xf32>
    %222 = vector.broadcast %2 : vector<1x128xf32> to vector<2x128xf32>
    %223 = arith.addf %221, %222 : vector<2x128xf32>
    %224 = arith.negf %223 : vector<2x128xf32>
    %225 = math.exp %224 : vector<2x128xf32>
    %cst_56 = arith.constant 1.000000e+00 : f32
    %226 = vector.broadcast %cst_56 : f32 to vector<2x128xf32>
    %227 = arith.addf %226, %225 : vector<2x128xf32>
    %228 = arith.divf %226, %227 : vector<2x128xf32>
    %229 = math.tanh %223 : vector<2x128xf32>
    %230 = vector.extract_strided_slice %228 {offsets = [0, 0], sizes = [2, 32], strides = [1, 1]} : vector<2x128xf32> to vector<2x32xf32>
    %231 = vector.extract_strided_slice %228 {offsets = [0, 32], sizes = [2, 32], strides = [1, 1]} : vector<2x128xf32> to vector<2x32xf32>
    %232 = vector.extract_strided_slice %229 {offsets = [0, 64], sizes = [2, 32], strides = [1, 1]} : vector<2x128xf32> to vector<2x32xf32>
    %233 = vector.extract_strided_slice %228 {offsets = [0, 96], sizes = [2, 32], strides = [1, 1]} : vector<2x128xf32> to vector<2x32xf32>
    %234 = arith.mulf %231, %194 : vector<2x32xf32>
    %235 = arith.mulf %230, %232 : vector<2x32xf32>
    %236 = arith.addf %234, %235 : vector<2x32xf32>
    %237 = math.tanh %236 : vector<2x32xf32>
    %238 = arith.mulf %233, %237 : vector<2x32xf32>
    %cst_57 = arith.constant dense<0.000000e+00> : vector<2x128xf32>
    %239 = tpu.matmul %238, %3, %cst_57 {dimension_numbers = #tpu.dot_dimension_numbers<[1], [0], [0], [1], [0, 0, 1, 1], [], []>} : vector<2x32xf32>, vector<32x128xf32>, vector<2x128xf32> -> vector<2x128xf32>
    %cst_58 = arith.constant dense<0.000000e+00> : vector<2x128xf32>
    %240 = tpu.matmul %216, %4, %cst_58 {dimension_numbers = #tpu.dot_dimension_numbers<[1], [0], [0], [1], [0, 0, 1, 1], [], []>} : vector<2x32xf32>, vector<32x128xf32>, vector<2x128xf32> -> vector<2x128xf32>
    %241 = arith.addf %239, %240 : vector<2x128xf32>
    %242 = vector.broadcast %5 : vector<1x128xf32> to vector<2x128xf32>
    %243 = arith.addf %241, %242 : vector<2x128xf32>
    %244 = arith.negf %243 : vector<2x128xf32>
    %245 = math.exp %244 : vector<2x128xf32>
    %cst_59 = arith.constant 1.000000e+00 : f32
    %246 = vector.broadcast %cst_59 : f32 to vector<2x128xf32>
    %247 = arith.addf %246, %245 : vector<2x128xf32>
    %248 = arith.divf %246, %247 : vector<2x128xf32>
    %249 = math.tanh %243 : vector<2x128xf32>
    %250 = vector.extract_strided_slice %248 {offsets = [0, 0], sizes = [2, 32], strides = [1, 1]} : vector<2x128xf32> to vector<2x32xf32>
    %251 = vector.extract_strided_slice %248 {offsets = [0, 32], sizes = [2, 32], strides = [1, 1]} : vector<2x128xf32> to vector<2x32xf32>
    %252 = vector.extract_strided_slice %249 {offsets = [0, 64], sizes = [2, 32], strides = [1, 1]} : vector<2x128xf32> to vector<2x32xf32>
    %253 = vector.extract_strided_slice %248 {offsets = [0, 96], sizes = [2, 32], strides = [1, 1]} : vector<2x128xf32> to vector<2x32xf32>
    %254 = arith.mulf %251, %214 : vector<2x32xf32>
    %255 = arith.mulf %250, %252 : vector<2x32xf32>
    %256 = arith.addf %254, %255 : vector<2x32xf32>
    %257 = math.tanh %256 : vector<2x32xf32>
    %258 = arith.mulf %253, %257 : vector<2x32xf32>
    %c6 = arith.constant 6 : index
    %c0_60 = arith.constant 0 : index
    %c0_61 = arith.constant 0 : index
    %259 = vector.load %arg0[%c6, %c0_60, %c0_61] : memref<8x2x8xf32, #tpu.memory_space<vmem>>, vector<1x2x8xf32>
    %260 = vector.shape_cast %259 : vector<1x2x8xf32> to vector<2x8xf32>
    %cst_62 = arith.constant dense<0.000000e+00> : vector<2x128xf32>
    %261 = tpu.matmul %260, %0, %cst_62 {dimension_numbers = #tpu.dot_dimension_numbers<[1], [0], [0], [1], [0, 0, 1, 1], [], []>} : vector<2x8xf32>, vector<8x128xf32>, vector<2x128xf32> -> vector<2x128xf32>
    %cst_63 = arith.constant dense<0.000000e+00> : vector<2x128xf32>
    %262 = tpu.matmul %238, %1, %cst_63 {dimension_numbers = #tpu.dot_dimension_numbers<[1], [0], [0], [1], [0, 0, 1, 1], [], []>} : vector<2x32xf32>, vector<32x128xf32>, vector<2x128xf32> -> vector<2x128xf32>
    %263 = arith.addf %261, %262 : vector<2x128xf32>
    %264 = vector.broadcast %2 : vector<1x128xf32> to vector<2x128xf32>
    %265 = arith.addf %263, %264 : vector<2x128xf32>
    %266 = arith.negf %265 : vector<2x128xf32>
    %267 = math.exp %266 : vector<2x128xf32>
    %cst_64 = arith.constant 1.000000e+00 : f32
    %268 = vector.broadcast %cst_64 : f32 to vector<2x128xf32>
    %269 = arith.addf %268, %267 : vector<2x128xf32>
    %270 = arith.divf %268, %269 : vector<2x128xf32>
    %271 = math.tanh %265 : vector<2x128xf32>
    %272 = vector.extract_strided_slice %270 {offsets = [0, 0], sizes = [2, 32], strides = [1, 1]} : vector<2x128xf32> to vector<2x32xf32>
    %273 = vector.extract_strided_slice %270 {offsets = [0, 32], sizes = [2, 32], strides = [1, 1]} : vector<2x128xf32> to vector<2x32xf32>
    %274 = vector.extract_strided_slice %271 {offsets = [0, 64], sizes = [2, 32], strides = [1, 1]} : vector<2x128xf32> to vector<2x32xf32>
    %275 = vector.extract_strided_slice %270 {offsets = [0, 96], sizes = [2, 32], strides = [1, 1]} : vector<2x128xf32> to vector<2x32xf32>
    %276 = arith.mulf %273, %236 : vector<2x32xf32>
    %277 = arith.mulf %272, %274 : vector<2x32xf32>
    %278 = arith.addf %276, %277 : vector<2x32xf32>
    %279 = math.tanh %278 : vector<2x32xf32>
    %280 = arith.mulf %275, %279 : vector<2x32xf32>
    %cst_65 = arith.constant dense<0.000000e+00> : vector<2x128xf32>
    %281 = tpu.matmul %280, %3, %cst_65 {dimension_numbers = #tpu.dot_dimension_numbers<[1], [0], [0], [1], [0, 0, 1, 1], [], []>} : vector<2x32xf32>, vector<32x128xf32>, vector<2x128xf32> -> vector<2x128xf32>
    %cst_66 = arith.constant dense<0.000000e+00> : vector<2x128xf32>
    %282 = tpu.matmul %258, %4, %cst_66 {dimension_numbers = #tpu.dot_dimension_numbers<[1], [0], [0], [1], [0, 0, 1, 1], [], []>} : vector<2x32xf32>, vector<32x128xf32>, vector<2x128xf32> -> vector<2x128xf32>
    %283 = arith.addf %281, %282 : vector<2x128xf32>
    %284 = vector.broadcast %5 : vector<1x128xf32> to vector<2x128xf32>
    %285 = arith.addf %283, %284 : vector<2x128xf32>
    %286 = arith.negf %285 : vector<2x128xf32>
    %287 = math.exp %286 : vector<2x128xf32>
    %cst_67 = arith.constant 1.000000e+00 : f32
    %288 = vector.broadcast %cst_67 : f32 to vector<2x128xf32>
    %289 = arith.addf %288, %287 : vector<2x128xf32>
    %290 = arith.divf %288, %289 : vector<2x128xf32>
    %291 = math.tanh %285 : vector<2x128xf32>
    %292 = vector.extract_strided_slice %290 {offsets = [0, 0], sizes = [2, 32], strides = [1, 1]} : vector<2x128xf32> to vector<2x32xf32>
    %293 = vector.extract_strided_slice %290 {offsets = [0, 32], sizes = [2, 32], strides = [1, 1]} : vector<2x128xf32> to vector<2x32xf32>
    %294 = vector.extract_strided_slice %291 {offsets = [0, 64], sizes = [2, 32], strides = [1, 1]} : vector<2x128xf32> to vector<2x32xf32>
    %295 = vector.extract_strided_slice %290 {offsets = [0, 96], sizes = [2, 32], strides = [1, 1]} : vector<2x128xf32> to vector<2x32xf32>
    %296 = arith.mulf %293, %256 : vector<2x32xf32>
    %297 = arith.mulf %292, %294 : vector<2x32xf32>
    %298 = arith.addf %296, %297 : vector<2x32xf32>
    %299 = math.tanh %298 : vector<2x32xf32>
    %300 = arith.mulf %295, %299 : vector<2x32xf32>
    %c7 = arith.constant 7 : index
    %c0_68 = arith.constant 0 : index
    %c0_69 = arith.constant 0 : index
    %301 = vector.load %arg0[%c7, %c0_68, %c0_69] : memref<8x2x8xf32, #tpu.memory_space<vmem>>, vector<1x2x8xf32>
    %302 = vector.shape_cast %301 : vector<1x2x8xf32> to vector<2x8xf32>
    %cst_70 = arith.constant dense<0.000000e+00> : vector<2x128xf32>
    %303 = tpu.matmul %302, %0, %cst_70 {dimension_numbers = #tpu.dot_dimension_numbers<[1], [0], [0], [1], [0, 0, 1, 1], [], []>} : vector<2x8xf32>, vector<8x128xf32>, vector<2x128xf32> -> vector<2x128xf32>
    %cst_71 = arith.constant dense<0.000000e+00> : vector<2x128xf32>
    %304 = tpu.matmul %280, %1, %cst_71 {dimension_numbers = #tpu.dot_dimension_numbers<[1], [0], [0], [1], [0, 0, 1, 1], [], []>} : vector<2x32xf32>, vector<32x128xf32>, vector<2x128xf32> -> vector<2x128xf32>
    %305 = arith.addf %303, %304 : vector<2x128xf32>
    %306 = vector.broadcast %2 : vector<1x128xf32> to vector<2x128xf32>
    %307 = arith.addf %305, %306 : vector<2x128xf32>
    %308 = arith.negf %307 : vector<2x128xf32>
    %309 = math.exp %308 : vector<2x128xf32>
    %cst_72 = arith.constant 1.000000e+00 : f32
    %310 = vector.broadcast %cst_72 : f32 to vector<2x128xf32>
    %311 = arith.addf %310, %309 : vector<2x128xf32>
    %312 = arith.divf %310, %311 : vector<2x128xf32>
    %313 = math.tanh %307 : vector<2x128xf32>
    %314 = vector.extract_strided_slice %312 {offsets = [0, 0], sizes = [2, 32], strides = [1, 1]} : vector<2x128xf32> to vector<2x32xf32>
    %315 = vector.extract_strided_slice %312 {offsets = [0, 32], sizes = [2, 32], strides = [1, 1]} : vector<2x128xf32> to vector<2x32xf32>
    %316 = vector.extract_strided_slice %313 {offsets = [0, 64], sizes = [2, 32], strides = [1, 1]} : vector<2x128xf32> to vector<2x32xf32>
    %317 = vector.extract_strided_slice %312 {offsets = [0, 96], sizes = [2, 32], strides = [1, 1]} : vector<2x128xf32> to vector<2x32xf32>
    %318 = arith.mulf %315, %278 : vector<2x32xf32>
    %319 = arith.mulf %314, %316 : vector<2x32xf32>
    %320 = arith.addf %318, %319 : vector<2x32xf32>
    %321 = math.tanh %320 : vector<2x32xf32>
    %322 = arith.mulf %317, %321 : vector<2x32xf32>
    %cst_73 = arith.constant dense<0.000000e+00> : vector<2x128xf32>
    %323 = tpu.matmul %322, %3, %cst_73 {dimension_numbers = #tpu.dot_dimension_numbers<[1], [0], [0], [1], [0, 0, 1, 1], [], []>} : vector<2x32xf32>, vector<32x128xf32>, vector<2x128xf32> -> vector<2x128xf32>
    %cst_74 = arith.constant dense<0.000000e+00> : vector<2x128xf32>
    %324 = tpu.matmul %300, %4, %cst_74 {dimension_numbers = #tpu.dot_dimension_numbers<[1], [0], [0], [1], [0, 0, 1, 1], [], []>} : vector<2x32xf32>, vector<32x128xf32>, vector<2x128xf32> -> vector<2x128xf32>
    %325 = arith.addf %323, %324 : vector<2x128xf32>
    %326 = vector.broadcast %5 : vector<1x128xf32> to vector<2x128xf32>
    %327 = arith.addf %325, %326 : vector<2x128xf32>
    %328 = arith.negf %327 : vector<2x128xf32>
    %329 = math.exp %328 : vector<2x128xf32>
    %cst_75 = arith.constant 1.000000e+00 : f32
    %330 = vector.broadcast %cst_75 : f32 to vector<2x128xf32>
    %331 = arith.addf %330, %329 : vector<2x128xf32>
    %332 = arith.divf %330, %331 : vector<2x128xf32>
    %333 = math.tanh %327 : vector<2x128xf32>
    %334 = vector.extract_strided_slice %332 {offsets = [0, 0], sizes = [2, 32], strides = [1, 1]} : vector<2x128xf32> to vector<2x32xf32>
    %335 = vector.extract_strided_slice %332 {offsets = [0, 32], sizes = [2, 32], strides = [1, 1]} : vector<2x128xf32> to vector<2x32xf32>
    %336 = vector.extract_strided_slice %333 {offsets = [0, 64], sizes = [2, 32], strides = [1, 1]} : vector<2x128xf32> to vector<2x32xf32>
    %337 = vector.extract_strided_slice %332 {offsets = [0, 96], sizes = [2, 32], strides = [1, 1]} : vector<2x128xf32> to vector<2x32xf32>
    %338 = arith.mulf %335, %298 : vector<2x32xf32>
    %339 = arith.mulf %334, %336 : vector<2x32xf32>
    %340 = arith.addf %338, %339 : vector<2x32xf32>
    %341 = math.tanh %340 : vector<2x32xf32>
    %342 = arith.mulf %337, %341 : vector<2x32xf32>
    %c0_76 = arith.constant 0 : index
    %c0_77 = arith.constant 0 : index
    %343 = vector.load %arg1[%c0_76, %c0_77] : memref<2x16xf32, #tpu.memory_space<vmem>>, vector<2x16xf32>
    %c0_78 = arith.constant 0 : index
    %c0_79 = arith.constant 0 : index
    %344 = vector.load %arg8[%c0_78, %c0_79] : memref<16x8xf32, #tpu.memory_space<vmem>>, vector<16x8xf32>
    %cst_80 = arith.constant dense<0.000000e+00> : vector<2x8xf32>
    %345 = tpu.matmul %343, %344, %cst_80 {dimension_numbers = #tpu.dot_dimension_numbers<[1], [0], [0], [1], [0, 0, 1, 1], [], []>} : vector<2x16xf32>, vector<16x8xf32>, vector<2x8xf32> -> vector<2x8xf32>
    %c0_81 = arith.constant 0 : index
    %c0_82 = arith.constant 0 : index
    %346 = vector.load %arg9[%c0_81, %c0_82] : memref<1x8xf32, #tpu.memory_space<vmem>>, vector<1x8xf32>
    %347 = vector.broadcast %346 : vector<1x8xf32> to vector<2x8xf32>
    %348 = arith.addf %345, %347 : vector<2x8xf32>
    %c0_83 = arith.constant 0 : index
    %c0_84 = arith.constant 0 : index
    %349 = vector.load %arg10[%c0_83, %c0_84] : memref<32x3xf32, #tpu.memory_space<vmem>>, vector<32x3xf32>
    %cst_85 = arith.constant dense<0.000000e+00> : vector<2x3xf32>
    %350 = tpu.matmul %342, %349, %cst_85 {dimension_numbers = #tpu.dot_dimension_numbers<[1], [0], [0], [1], [0, 0, 1, 1], [], []>} : vector<2x32xf32>, vector<32x3xf32>, vector<2x3xf32> -> vector<2x3xf32>
    %c0_86 = arith.constant 0 : index
    %c0_87 = arith.constant 0 : index
    %351 = vector.load %arg11[%c0_86, %c0_87] : memref<8x3xf32, #tpu.memory_space<vmem>>, vector<8x3xf32>
    %cst_88 = arith.constant dense<0.000000e+00> : vector<2x3xf32>
    %352 = tpu.matmul %348, %351, %cst_88 {dimension_numbers = #tpu.dot_dimension_numbers<[1], [0], [0], [1], [0, 0, 1, 1], [], []>} : vector<2x8xf32>, vector<8x3xf32>, vector<2x3xf32> -> vector<2x3xf32>
    %353 = arith.addf %350, %352 : vector<2x3xf32>
    %c0_89 = arith.constant 0 : index
    %c0_90 = arith.constant 0 : index
    %354 = vector.load %arg12[%c0_89, %c0_90] : memref<1x3xf32, #tpu.memory_space<vmem>>, vector<1x3xf32>
    %355 = vector.broadcast %354 : vector<1x3xf32> to vector<2x3xf32>
    %356 = arith.addf %353, %355 : vector<2x3xf32>
    %c0_91 = arith.constant 0 : index
    %c0_92 = arith.constant 0 : index
    %357 = vector.load %arg13[%c0_91, %c0_92] : memref<2x3xf32, #tpu.memory_space<vmem>>, vector<2x3xf32>
    tpu.vector_store %arg13[%c0_91, %c0_92], %356 {strides = array<i32>} : memref<2x3xf32, #tpu.memory_space<vmem>>, vector<2x3xf32>,
    return
  }
}

</mosaic_0001>

<llo_original>
// kernel: lstmtag_forward.1
$region0: #{lstmtag_forward.1}
  #allocation0 [shape = 'u32[]', space=smem, size = 0x4, offset = 0x4, fixed_abs, tag = 'smem constant byte address 0x4 - core index']
  #allocation1 [shape = 'u32[144,128]{1,0:T(1,128)}', space=vmem, size = 0x12000, scoped, tag = 'internal scratch']
  %s0 = inlined_call_operand.vmem [shape: f32[8,2,8], index: 0, kind: input, shape index: {}]
  %s1 = inlined_call_operand.vmem [shape: f32[2,16], index: 1, kind: input, shape index: {}]
  %s2 = inlined_call_operand.vmem [shape: f32[8,128], index: 2, kind: input, shape index: {}]
  %s3 = inlined_call_operand.vmem [shape: f32[32,128], index: 3, kind: input, shape index: {}]
  %s4 = inlined_call_operand.vmem [shape: f32[1,128], index: 4, kind: input, shape index: {}]
  %s5 = inlined_call_operand.vmem [shape: f32[32,128], index: 5, kind: input, shape index: {}]
  %s6 = inlined_call_operand.vmem [shape: f32[32,128], index: 6, kind: input, shape index: {}]
  %s7 = inlined_call_operand.vmem [shape: f32[1,128], index: 7, kind: input, shape index: {}]
  %s8 = inlined_call_operand.vmem [shape: f32[16,8], index: 8, kind: input, shape index: {}]
  %s9 = inlined_call_operand.vmem [shape: f32[1,8], index: 9, kind: input, shape index: {}]
  %s10 = inlined_call_operand.vmem [shape: f32[32,3], index: 10, kind: input, shape index: {}]
  %s11 = inlined_call_operand.vmem [shape: f32[8,3], index: 11, kind: input, shape index: {}]
  %s12 = inlined_call_operand.vmem [shape: f32[1,3], index: 12, kind: input, shape index: {}]
  %s13 = inlined_call_operand.hbm [shape: f32[2,3], index: 13, kind: output, shape index: {}]
  %s14 = sld [smem:[#allocation0]]
  $region62: #{lstmtag_forward.1} parent=0
    _
  %s16 = ssub.s32 1, %s14
  %s17 = scalar_select 0, %s16, %s14
  $region1: #{lstmtag_forward.1} parent=0
    #allocation2 [shape = 'u8[1024]{0}', space=vmem, size = 0x400, scoped, tag = 'output window, operand 0, single buffered']
    #allocation3 [shape = 's32[1]{0}', space=sflag, size = 0x4, scoped, tag = 'scoped memory for lstmtag_forward.1']
    %18 = vsyncpa [#allocation3], 0
    // Predicated region
    $region2: #{lstmtag_forward.1} parent=1 // pred_check
      _
    $region3: #{lstmtag_forward.1} parent=1 // pred_check_branch
      %20 = sbr.rel (0) target = $region5
    $region4: #{lstmtag_forward.1} parent=1 // pred_region
      _
    $region5: #{lstmtag_forward.1} parent=1 // pred_fallthru
      _
    // Predicated region
    $region6: #{lstmtag_forward.1} parent=1 // pred_check
      _
    $region7: #{lstmtag_forward.1} parent=1 // pred_check_branch
      %22 = sbr.rel (0) target = $region9
    $region8: #{lstmtag_forward.1} parent=1 // pred_region
      _
    $region9: #{lstmtag_forward.1} parent=1 // pred_fallthru
      _
    // Predicated region
    $region10: #{lstmtag_forward.1} parent=1 // pred_check
      _
    $region11: #{lstmtag_forward.1} parent=1 // pred_check_branch
      %24 = sbr.rel (0) target = $region13
    $region12: #{lstmtag_forward.1} parent=1 // pred_region
      _
    $region13: #{lstmtag_forward.1} parent=1 // pred_fallthru
      _
    // Predicated region
    $region14: #{lstmtag_forward.1} parent=1 // pred_check
      _
    $region15: #{lstmtag_forward.1} parent=1 // pred_check_branch
      %26 = sbr.rel (0) target = $region17
    $region16: #{lstmtag_forward.1} parent=1 // pred_region
      _
    $region17: #{lstmtag_forward.1} parent=1 // pred_fallthru
      _
    // Predicated region
    $region18: #{lstmtag_forward.1} parent=1 // pred_check
      _
    $region19: #{lstmtag_forward.1} parent=1 // pred_check_branch
      %28 = sbr.rel (0) target = $region21
    $region20: #{lstmtag_forward.1} parent=1 // pred_region
      _
    $region21: #{lstmtag_forward.1} parent=1 // pred_fallthru
      _
    // Predicated region
    $region22: #{lstmtag_forward.1} parent=1 // pred_check
      _
    $region23: #{lstmtag_forward.1} parent=1 // pred_check_branch
      %30 = sbr.rel (0) target = $region25
    $region24: #{lstmtag_forward.1} parent=1 // pred_region
      _
    $region25: #{lstmtag_forward.1} parent=1 // pred_fallthru
      _
    // Predicated region
    $region26: #{lstmtag_forward.1} parent=1 // pred_check
      _
    $region27: #{lstmtag_forward.1} parent=1 // pred_check_branch
      %32 = sbr.rel (0) target = $region29
    $region28: #{lstmtag_forward.1} parent=1 // pred_region
      _
    $region29: #{lstmtag_forward.1} parent=1 // pred_fallthru
      _
    // Predicated region
    $region30: #{lstmtag_forward.1} parent=1 // pred_check
      _
    $region31: #{lstmtag_forward.1} parent=1 // pred_check_branch
      %34 = sbr.rel (0) target = $region33
    $region32: #{lstmtag_forward.1} parent=1 // pred_region
      _
    $region33: #{lstmtag_forward.1} parent=1 // pred_fallthru
      _
    // Predicated region
    $region34: #{lstmtag_forward.1} parent=1 // pred_check
      _
    $region35: #{lstmtag_forward.1} parent=1 // pred_check_branch
      %36 = sbr.rel (0) target = $region37
    $region36: #{lstmtag_forward.1} parent=1 // pred_region
      _
    $region37: #{lstmtag_forward.1} parent=1 // pred_fallthru
      _
    // Predicated region
    $region38: #{lstmtag_forward.1} parent=1 // pred_check
      _
    $region39: #{lstmtag_forward.1} parent=1 // pred_check_branch
      %38 = sbr.rel (0) target = $region41
    $region40: #{lstmtag_forward.1} parent=1 // pred_region
      _
    $region41: #{lstmtag_forward.1} parent=1 // pred_fallthru
      _
    // Predicated region
    $region42: #{lstmtag_forward.1} parent=1 // pred_check
      _
    $region43: #{lstmtag_forward.1} parent=1 // pred_check_branch
      %40 = sbr.rel (0) target = $region45
    $region44: #{lstmtag_forward.1} parent=1 // pred_region
      _
    $region45: #{lstmtag_forward.1} parent=1 // pred_fallthru
      _
    // Predicated region
    $region46: #{lstmtag_forward.1} parent=1 // pred_check
      _
    $region47: #{lstmtag_forward.1} parent=1 // pred_check_branch
      %42 = sbr.rel (0) target = $region49
    $region48: #{lstmtag_forward.1} parent=1 // pred_region
      _
    $region49: #{lstmtag_forward.1} parent=1 // pred_fallthru
      _
    // Predicated region
    $region50: #{lstmtag_forward.1} parent=1 // pred_check
      _
    $region51: #{lstmtag_forward.1} parent=1 // pred_check_branch
      %44 = sbr.rel (0) target = $region53
    $region52: #{lstmtag_forward.1} parent=1 // pred_region
      _
    $region53: #{lstmtag_forward.1} parent=1 // pred_fallthru
      _
    %v45 = vld [vmem:[%s2] sm:$0xff]
    %v46 = vld [vmem:[%s3] sm:$0xff]
    %v47 = vld [vmem:[%s3 + $0x8] sm:$0xff]
    %v48 = vld [vmem:[%s3 + $0x10] sm:$0xff]
    %v49 = vld [vmem:[%s3 + $0x18] sm:$0xff]
    %v50 = vld [vmem:[%s4] sm:$0x1]
    %v51 = vld [vmem:[%s5] sm:$0xff]
    %v52 = vld [vmem:[%s5 + $0x8] sm:$0xff]
    %v53 = vld [vmem:[%s5 + $0x10] sm:$0xff]
    %v54 = vld [vmem:[%s5 + $0x18] sm:$0xff]
    %v55 = vld [vmem:[%s6] sm:$0xff]
    %v56 = vld [vmem:[%s6 + $0x8] sm:$0xff]
    %v57 = vld [vmem:[%s6 + $0x10] sm:$0xff]
    %v58 = vld [vmem:[%s6 + $0x18] sm:$0xff]
    %v59 = vld [vmem:[%s7] sm:$0x1]
    %v60 = vld [vmem:[%s0] sm:$0x3]
    %vm61 = vcmask 261120
    %v63 = vsel %vm61, 0.0, 0
    %65 = vmatprep.subr.mxu0 0.0
    %66 = vmatpush1.msra.mxu0 0.0
    %67 = vmatprep.subr.mxu0 0.0
    %68 = vmatpush1.msra.mxu0 0.0
    %69 = vmatprep.subr.mxu0 0.0
    %70 = vmatpush1.msra.mxu0 0.0
    %71 = vmatprep.subr.mxu0 0.0
    %72 = vmatpush1.msra.mxu0 0.0
    %73 = vmatprep.subr.mxu0 0.0
    %74 = vmatpush1.msra.mxu0 0.0
    %75 = vmatprep.subr.mxu0 0.0
    %76 = vmatpush1.msra.mxu0 0.0
    %77 = vmatprep.subr.mxu0 0.0
    %78 = vmatpush1.msra.mxu0 0.0
    %79 = vmatprep.subr.mxu0 0.0
    %80 = vmatpush1.msra.mxu0 0.0
    %81 = vmatprep.subr.mxu0 0.0
    %82 = vmatpush1.msra.mxu0 0.0
    %83 = vmatprep.subr.mxu0 0.0
    %84 = vmatpush1.msra.mxu0 0.0
    %85 = vmatprep.subr.mxu0 0.0
    %86 = vmatpush1.msra.mxu0 0.0
    %87 = vmatprep.subr.mxu0 0.0
    %88 = vmatpush1.msra.mxu0 0.0
    %89 = vmatprep.subr.mxu0 0.0
    %90 = vmatpush1.msra.mxu0 %v49
    %91 = vmatprep.subr.mxu0 0.0
    %92 = vmatpush1.msra.mxu0 %v48
    %93 = vmatprep.subr.mxu0 0.0
    %94 = vmatpush1.msra.mxu0 %v47
    %95 = vmatprep.subr.mxu0 0.0
    %96 = vmatpush1.msra.mxu0 %v46
    %97 = vmatprep.subr.mxu0 0.0
    %98 = vmatpush2.msra.mxu0 0.0
    %99 = vmatprep.subr.mxu0 0.0
    %100 = vmatpush2.msra.mxu0 0.0
    %101 = vmatprep.subr.mxu0 0.0
    %102 = vmatpush2.msra.mxu0 0.0
    %103 = vmatprep.subr.mxu0 0.0
    %104 = vmatpush2.msra.mxu0 0.0
    %105 = vmatprep.subr.mxu0 0.0
    %106 = vmatpush2.msra.mxu0 0.0
    %107 = vmatprep.subr.mxu0 0.0
    %108 = vmatpush2.msra.mxu0 0.0
    %109 = vmatprep.subr.mxu0 0.0
    %110 = vmatpush2.msra.mxu0 0.0
    %111 = vmatprep.subr.mxu0 0.0
    %112 = vmatpush2.msra.mxu0 0.0
    %113 = vmatprep.subr.mxu0 0.0
    %114 = vmatpush2.msra.mxu0 0.0
    %115 = vmatprep.subr.mxu0 0.0
    %116 = vmatpush2.msra.mxu0 0.0
    %117 = vmatprep.subr.mxu0 0.0
    %118 = vmatpush2.msra.mxu0 0.0
    %119 = vmatprep.subr.mxu0 0.0
    %120 = vmatpush2.msra.mxu0 0.0
    %121 = vmatprep.subr.mxu0 0.0
    %122 = vmatpush2.msra.mxu0 0.0
    %123 = vmatprep.subr.mxu0 0.0
    %124 = vmatpush2.msra.mxu0 0.0
    %125 = vmatprep.subr.mxu0 0.0
    %126 = vmatpush2.msra.mxu0 0.0
    %127 = vmatprep.subr.mxu0 0.0
    %128 = vmatpush2.msra.mxu0 0.0
    %129 = vmatprep.mubr.f32.mxu0 0.0
    %130 = vmatmul.mubr.f32.gmra.mxu0 %v63
    %v131 = vpop.f32.mrf.mxu0
    %v132 = vadd.f32 0.0, %v131
    %v133 = vpop.f32.mrf.mxu0
    %134 = vdwg.mxu0
    %vm135 = vcmask 64512
    %v137 = vsel %vm135, %v60, 0
    %139 = vmatprep.subr.mxu0 0.0
    %140 = vmatpush1.msra.mxu0 0.0
    %141 = vmatprep.subr.mxu0 0.0
    %142 = vmatpush1.msra.mxu0 0.0
    %143 = vmatprep.subr.mxu0 0.0
    %144 = vmatpush1.msra.mxu0 0.0
    %145 = vmatprep.subr.mxu0 0.0
    %146 = vmatpush1.msra.mxu0 0.0
    %147 = vmatprep.subr.mxu0 0.0
    %148 = vmatpush1.msra.mxu0 0.0
    %149 = vmatprep.subr.mxu0 0.0
    %150 = vmatpush1.msra.mxu0 0.0
    %151 = vmatprep.subr.mxu0 0.0
    %152 = vmatpush1.msra.mxu0 0.0
    %153 = vmatprep.subr.mxu0 0.0
    %154 = vmatpush1.msra.mxu0 0.0
    %155 = vmatprep.subr.mxu0 0.0
    %156 = vmatpush1.msra.mxu0 0.0
    %157 = vmatprep.subr.mxu0 0.0
    %158 = vmatpush1.msra.mxu0 0.0
    %159 = vmatprep.subr.mxu0 0.0
    %160 = vmatpush1.msra.mxu0 0.0
    %161 = vmatprep.subr.mxu0 0.0
    %162 = vmatpush1.msra.mxu0 0.0
    %163 = vmatprep.subr.mxu0 0.0
    %164 = vmatpush1.msra.mxu0 0.0
    %165 = vmatprep.subr.mxu0 0.0
    %166 = vmatpush1.msra.mxu0 0.0
    %167 = vmatprep.subr.mxu0 0.0
    %168 = vmatpush1.msra.mxu0 0.0
    %169 = vmatprep.subr.mxu0 0.0
    %170 = vmatpush1.msra.mxu0 %v45
    %171 = vmatprep.subr.mxu0 0.0
    %172 = vmatpush2.msra.mxu0 0.0
    %173 = vmatprep.subr.mxu0 0.0
    %174 = vmatpush2.msra.mxu0 0.0
    %175 = vmatprep.subr.mxu0 0.0
    %176 = vmatpush2.msra.mxu0 0.0
    %177 = vmatprep.subr.mxu0 0.0
    %178 = vmatpush2.msra.mxu0 0.0
    %179 = vmatprep.subr.mxu0 0.0
    %180 = vmatpush2.msra.mxu0 0.0
    %181 = vmatprep.subr.mxu0 0.0
    %182 = vmatpush2.msra.mxu0 0.0
    %183 = vmatprep.subr.mxu0 0.0
    %184 = vmatpush2.msra.mxu0 0.0
    %185 = vmatprep.subr.mxu0 0.0
    %186 = vmatpush2.msra.mxu0 0.0
    %187 = vmatprep.subr.mxu0 0.0
    %188 = vmatpush2.msra.mxu0 0.0
    %189 = vmatprep.subr.mxu0 0.0
    %190 = vmatpush2.msra.mxu0 0.0
    %191 = vmatprep.subr.mxu0 0.0
    %192 = vmatpush2.msra.mxu0 0.0
    %193 = vmatprep.subr.mxu0 0.0
    %194 = vmatpush2.msra.mxu0 0.0
    %195 = vmatprep.subr.mxu0 0.0
    %196 = vmatpush2.msra.mxu0 0.0
    %197 = vmatprep.subr.mxu0 0.0
    %198 = vmatpush2.msra.mxu0 0.0
    %199 = vmatprep.subr.mxu0 0.0
    %200 = vmatpush2.msra.mxu0 0.0
    %201 = vmatprep.subr.mxu0 0.0
    %202 = vmatpush2.msra.mxu0 0.0
    %203 = vmatprep.mubr.f32.mxu0 0.0
    %204 = vmatmul.mubr.f32.gmra.mxu0 %v137
    %v205 = vpop.f32.mrf.mxu0
    %v206 = vadd.f32 %v132, %v205
    %v207 = vpop.f32.mrf.mxu0
    %208 = vdwg.mxu0
    %v210 = vlaneseq
    %v211 = vshrl.u32 %v210, 7
    %v212 = vsub.s32 0, %v211
    %v213 = vrot.slane %v50, %v212
    %v215 = vadd.f32 %v206, %v213
    %v216 = vxor.u32 %v215, 2147483648
    %v217 = vmul.f32 %v216, 1.442695
    %v218 = vpow.pop %v217
    %v219 = vadd.f32 %v218, 1.0
    %v220 = vrcp.pop %v219
    %v221 = vmul.f32 1.0, %v220
    %v222 = vtanh.pop %v215
    %v223 = vmul.f32 %v221, 0.0
    %225 = vrot.lane.b32.xlu0 %v222, 64
    %v226 = vpop.permute.xlu0 %225
    %v228 = vmul.f32 %v221, %v226
    %230 = vrot.lane.b32.xlu0 %v228, 32
    %v231 = vpop.permute.xlu0 %230
    %v233 = vadd.f32 %v223, %v231
    %v234 = vtanh.pop %v233
    %236 = vrot.lane.b32.xlu0 %v234, 64
    %v237 = vpop.permute.xlu0 %236
    %v239 = vmul.f32 %v221, %v237
    %240 = vmatprep.subr.mxu0 0.0
    %241 = vmatpush1.msra.mxu0 0.0
    %242 = vmatprep.subr.mxu0 0.0
    %243 = vmatpush1.msra.mxu0 0.0
    %244 = vmatprep.subr.mxu0 0.0
    %245 = vmatpush1.msra.mxu0 0.0
    %246 = vmatprep.subr.mxu0 0.0
    %247 = vmatpush1.msra.mxu0 0.0
    %248 = vmatprep.subr.mxu0 0.0
    %249 = vmatpush1.msra.mxu0 0.0
    %250 = vmatprep.subr.mxu0 0.0
    %251 = vmatpush1.msra.mxu0 0.0
    %252 = vmatprep.subr.mxu0 0.0
    %253 = vmatpush1.msra.mxu0 0.0
    %254 = vmatprep.subr.mxu0 0.0
    %255 = vmatpush1.msra.mxu0 0.0
    %256 = vmatprep.subr.mxu0 0.0
    %257 = vmatpush1.msra.mxu0 0.0
    %258 = vmatprep.subr.mxu0 0.0
    %259 = vmatpush1.msra.mxu0 0.0
    %260 = vmatprep.subr.mxu0 0.0
    %261 = vmatpush1.msra.mxu0 0.0
    %262 = vmatprep.subr.mxu0 0.0
    %263 = vmatpush1.msra.mxu0 0.0
    %264 = vmatprep.subr.mxu0 0.0
    %265 = vmatpush1.msra.mxu0 %v58
    %266 = vmatprep.subr.mxu0 0.0
    %267 = vmatpush1.msra.mxu0 %v57
    %268 = vmatprep.subr.mxu0 0.0
    %269 = vmatpush1.msra.mxu0 %v56
    %270 = vmatprep.subr.mxu0 0.0
    %271 = vmatpush1.msra.mxu0 %v55
    %272 = vmatprep.subr.mxu0 0.0
    %273 = vmatpush2.msra.mxu0 0.0
    %274 = vmatprep.subr.mxu0 0.0
    %275 = vmatpush2.msra.mxu0 0.0
    %276 = vmatprep.subr.mxu0 0.0
    %277 = vmatpush2.msra.mxu0 0.0
    %278 = vmatprep.subr.mxu0 0.0
    %279 = vmatpush2.msra.mxu0 0.0
    %280 = vmatprep.subr.mxu0 0.0
    %281 = vmatpush2.msra.mxu0 0.0
    %282 = vmatprep.subr.mxu0 0.0
    %283 = vmatpush2.msra.mxu0 0.0
    %284 = vmatprep.subr.mxu0 0.0
    %285 = vmatpush2.msra.mxu0 0.0
    %286 = vmatprep.subr.mxu0 0.0
    %287 = vmatpush2.msra.mxu0 0.0
    %288 = vmatprep.subr.mxu0 0.0
    %289 = vmatpush2.msra.mxu0 0.0
    %290 = vmatprep.subr.mxu0 0.0
    %291 = vmatpush2.msra.mxu0 0.0
    %292 = vmatprep.subr.mxu0 0.0
    %293 = vmatpush2.msra.mxu0 0.0
    %294 = vmatprep.subr.mxu0 0.0
    %295 = vmatpush2.msra.mxu0 0.0
    %296 = vmatprep.subr.mxu0 0.0
    %297 = vmatpush2.msra.mxu0 0.0
    %298 = vmatprep.subr.mxu0 0.0
    %299 = vmatpush2.msra.mxu0 0.0
    %300 = vmatprep.subr.mxu0 0.0
    %301 = vmatpush2.msra.mxu0 0.0
    %302 = vmatprep.subr.mxu0 0.0
    %303 = vmatpush2.msra.mxu0 0.0
    %304 = vmatprep.mubr.f32.mxu0 0.0
    %305 = vmatmul.mubr.f32.gmra.mxu0 %v63
    %v306 = vpop.f32.mrf.mxu0
    %v307 = vadd.f32 0.0, %v306
    %v308 = vpop.f32.mrf.mxu0
    %309 = vdwg.mxu0
    %311 = vrot.lane.b32.xlu0 %v239, 32
    %v312 = vpop.permute.xlu0 %311
    %v313 = vsel %vm61, %v312, 0
    %315 = vmatprep.subr.mxu0 0.0
    %316 = vmatpush1.msra.mxu0 0.0
    %317 = vmatprep.subr.mxu0 0.0
    %318 = vmatpush1.msra.mxu0 0.0
    %319 = vmatprep.subr.mxu0 0.0
    %320 = vmatpush1.msra.mxu0 0.0
    %321 = vmatprep.subr.mxu0 0.0
    %322 = vmatpush1.msra.mxu0 0.0
    %323 = vmatprep.subr.mxu0 0.0
    %324 = vmatpush1.msra.mxu0 0.0
    %325 = vmatprep.subr.mxu0 0.0
    %326 = vmatpush1.msra.mxu0 0.0
    %327 = vmatprep.subr.mxu0 0.0
    %328 = vmatpush1.msra.mxu0 0.0
    %329 = vmatprep.subr.mxu0 0.0
    %330 = vmatpush1.msra.mxu0 0.0
    %331 = vmatprep.subr.mxu0 0.0
    %332 = vmatpush1.msra.mxu0 0.0
    %333 = vmatprep.subr.mxu0 0.0
    %334 = vmatpush1.msra.mxu0 0.0
    %335 = vmatprep.subr.mxu0 0.0
    %336 = vmatpush1.msra.mxu0 0.0
    %337 = vmatprep.subr.mxu0 0.0
    %338 = vmatpush1.msra.mxu0 0.0
    %339 = vmatprep.subr.mxu0 0.0
    %340 = vmatpush1.msra.mxu0 %v54
    %341 = vmatprep.subr.mxu0 0.0
    %342 = vmatpush1.msra.mxu0 %v53
    %343 = vmatprep.subr.mxu0 0.0
    %344 = vmatpush1.msra.mxu0 %v52
    %345 = vmatprep.subr.mxu0 0.0
    %346 = vmatpush1.msra.mxu0 %v51
    %347 = vmatprep.subr.mxu0 0.0
    %348 = vmatpush2.msra.mxu0 0.0
    %349 = vmatprep.subr.mxu0 0.0
    %350 = vmatpush2.msra.mxu0 0.0
    %351 = vmatprep.subr.mxu0 0.0
    %352 = vmatpush2.msra.mxu0 0.0
    %353 = vmatprep.subr.mxu0 0.0
    %354 = vmatpush2.msra.mxu0 0.0
    %355 = vmatprep.subr.mxu0 0.0
    %356 = vmatpush2.msra.mxu0 0.0
    %357 = vmatprep.subr.mxu0 0.0
    %358 = vmatpush2.msra.mxu0 0.0
    %359 = vmatprep.subr.mxu0 0.0
    %360 = vmatpush2.msra.mxu0 0.0
    %361 = vmatprep.subr.mxu0 0.0
    %362 = vmatpush2.msra.mxu0 0.0
    %363 = vmatprep.subr.mxu0 0.0
    %364 = vmatpush2.msra.mxu0 0.0
    %365 = vmatprep.subr.mxu0 0.0
    %366 = vmatpush2.msra.mxu0 0.0
    %367 = vmatprep.subr.mxu0 0.0
    %368 = vmatpush2.msra.mxu0 0.0
    %369 = vmatprep.subr.mxu0 0.0
    %370 = vmatpush2.msra.mxu0 0.0
    %371 = vmatprep.subr.mxu0 0.0
    %372 = vmatpush2.msra.mxu0 0.0
    %373 = vmatprep.subr.mxu0 0.0
    %374 = vmatpush2.msra.mxu0 0.0
    %375 = vmatprep.subr.mxu0 0.0
    %376 = vmatpush2.msra.mxu0 0.0
    %377 = vmatprep.subr.mxu0 0.0
    %378 = vmatpush2.msra.mxu0 0.0
    %379 = vmatprep.mubr.f32.mxu0 0.0
    %380 = vmatmul.mubr.f32.gmra.mxu0 %v313
    %v381 = vpop.f32.mrf.mxu0
    %v382 = vadd.f32 %v307, %v381
    %v383 = vpop.f32.mrf.mxu0
    %384 = vdwg.mxu0
    %v386 = vlaneseq
    %v387 = vshrl.u32 %v386, 7
    %v388 = vsub.s32 0, %v387
    %v389 = vrot.slane %v59, %v388
    %v391 = vadd.f32 %v382, %v389
    %v392 = vxor.u32 %v391, 2147483648
    %v393 = vmul.f32 %v392, 1.442695
    %v394 = vpow.pop %v393
    %v395 = vadd.f32 %v394, 1.0
    %v396 = vrcp.pop %v395
    %v397 = vmul.f32 1.0, %v396
    %v398 = vtanh.pop %v391
    %v399 = vmul.f32 %v397, 0.0
    %401 = vrot.lane.b32.xlu0 %v398, 64
    %v402 = vpop.permute.xlu0 %401
    %v404 = vmul.f32 %v397, %v402
    %406 = vrot.lane.b32.xlu0 %v404, 32
    %v407 = vpop.permute.xlu0 %406
    %v409 = vadd.f32 %v399, %v407
    %v410 = vtanh.pop %v409
    %412 = vrot.lane.b32.xlu0 %v410, 64
    %v413 = vpop.permute.xlu0 %412
    %v415 = vmul.f32 %v397, %v413
    %s416 = scalar_lea.vmem %s0, 2
    %v417 = vld [vmem:[%s416] sm:$0x3]
    %418 = vmatprep.subr.mxu0 0.0
    %419 = vmatpush1.msra.mxu0 0.0
    %420 = vmatprep.subr.mxu0 0.0
    %421 = vmatpush1.msra.mxu0 0.0
    %422 = vmatprep.subr.mxu0 0.0
    %423 = vmatpush1.msra.mxu0 0.0
    %424 = vmatprep.subr.mxu0 0.0
    %425 = vmatpush1.msra.mxu0 0.0
    %426 = vmatprep.subr.mxu0 0.0
    %427 = vmatpush1.msra.mxu0 0.0
    %428 = vmatprep.subr.mxu0 0.0
    %429 = vmatpush1.msra.mxu0 0.0
    %430 = vmatprep.subr.mxu0 0.0
    %431 = vmatpush1.msra.mxu0 0.0
    %432 = vmatprep.subr.mxu0 0.0
    %433 = vmatpush1.msra.mxu0 0.0
    %434 = vmatprep.subr.mxu0 0.0
    %435 = vmatpush1.msra.mxu0 0.0
    %436 = vmatprep.subr.mxu0 0.0
    %437 = vmatpush1.msra.mxu0 0.0
    %438 = vmatprep.subr.mxu0 0.0
    %439 = vmatpush1.msra.mxu0 0.0
    %440 = vmatprep.subr.mxu0 0.0
    %441 = vmatpush1.msra.mxu0 0.0
    %442 = vmatprep.subr.mxu0 0.0
    %443 = vmatpush1.msra.mxu0 %v49
    %444 = vmatprep.subr.mxu0 0.0
    %445 = vmatpush1.msra.mxu0 %v48
    %446 = vmatprep.subr.mxu0 0.0
    %447 = vmatpush1.msra.mxu0 %v47
    %448 = vmatprep.subr.mxu0 0.0
    %449 = vmatpush1.msra.mxu0 %v46
    %450 = vmatprep.subr.mxu0 0.0
    %451 = vmatpush2.msra.mxu0 0.0
    %452 = vmatprep.subr.mxu0 0.0
    %453 = vmatpush2.msra.mxu0 0.0
    %454 = vmatprep.subr.mxu0 0.0
    %455 = vmatpush2.msra.mxu0 0.0
    %456 = vmatprep.subr.mxu0 0.0
    %457 = vmatpush2.msra.mxu0 0.0
    %458 = vmatprep.subr.mxu0 0.0
    %459 = vmatpush2.msra.mxu0 0.0
    %460 = vmatprep.subr.mxu0 0.0
    %461 = vmatpush2.msra.mxu0 0.0
    %462 = vmatprep.subr.mxu0 0.0
    %463 = vmatpush2.msra.mxu0 0.0
    %464 = vmatprep.subr.mxu0 0.0
    %465 = vmatpush2.msra.mxu0 0.0
    %466 = vmatprep.subr.mxu0 0.0
    %467 = vmatpush2.msra.mxu0 0.0
    %468 = vmatprep.subr.mxu0 0.0
    %469 = vmatpush2.msra.mxu0 0.0
    %470 = vmatprep.subr.mxu0 0.0
    %471 = vmatpush2.msra.mxu0 0.0
    %472 = vmatprep.subr.mxu0 0.0
    %473 = vmatpush2.msra.mxu0 0.0
    %474 = vmatprep.subr.mxu0 0.0
    %475 = vmatpush2.msra.mxu0 0.0
    %476 = vmatprep.subr.mxu0 0.0
    %477 = vmatpush2.msra.mxu0 0.0
    %478 = vmatprep.subr.mxu0 0.0
    %479 = vmatpush2.msra.mxu0 0.0
    %480 = vmatprep.subr.mxu0 0.0
    %481 = vmatpush2.msra.mxu0 0.0
    %482 = vmatprep.mubr.f32.mxu0 0.0
    %483 = vmatmul.mubr.f32.gmra.mxu0 %v313
    %v484 = vpop.f32.mrf.mxu0
    %v485 = vadd.f32 0.0, %v484
    %v486 = vpop.f32.mrf.mxu0
    %487 = vdwg.mxu0
    %v489 = vsel %vm135, %v417, 0
    %491 = vmatprep.subr.mxu0 0.0
    %492 = vmatpush1.msra.mxu0 0.0
    %493 = vmatprep.subr.mxu0 0.0
    %494 = vmatpush1.msra.mxu0 0.0
    %495 = vmatprep.subr.mxu0 0.0
    %496 = vmatpush1.msra.mxu0 0.0
    %497 = vmatprep.subr.mxu0 0.0
    %498 = vmatpush1.msra.mxu0 0.0
    %499 = vmatprep.subr.mxu0 0.0
    %500 = vmatpush1.msra.mxu0 0.0
    %501 = vmatprep.subr.mxu0 0.0
    %502 = vmatpush1.msra.mxu0 0.0
    %503 = vmatprep.subr.mxu0 0.0
    %504 = vmatpush1.msra.mxu0 0.0
    %505 = vmatprep.subr.mxu0 0.0
    %506 = vmatpush1.msra.mxu0 0.0
    %507 = vmatprep.subr.mxu0 0.0
    %508 = vmatpush1.msra.mxu0 0.0
    %509 = vmatprep.subr.mxu0 0.0
    %510 = vmatpush1.msra.mxu0 0.0
    %511 = vmatprep.subr.mxu0 0.0
    %512 = vmatpush1.msra.mxu0 0.0
    %513 = vmatprep.subr.mxu0 0.0
    %514 = vmatpush1.msra.mxu0 0.0
    %515 = vmatprep.subr.mxu0 0.0
    %516 = vmatpush1.msra.mxu0 0.0
    %517 = vmatprep.subr.mxu0 0.0
    %518 = vmatpush1.msra.mxu0 0.0
    %519 = vmatprep.subr.mxu0 0.0
    %520 = vmatpush1.msra.mxu0 0.0
    %521 = vmatprep.subr.mxu0 0.0
    %522 = vmatpush1.msra.mxu0 %v45
    %523 = vmatprep.subr.mxu0 0.0
    %524 = vmatpush2.msra.mxu0 0.0
    %525 = vmatprep.subr.mxu0 0.0
    %526 = vmatpush2.msra.mxu0 0.0
    %527 = vmatprep.subr.mxu0 0.0
    %528 = vmatpush2.msra.mxu0 0.0
    %529 = vmatprep.subr.mxu0 0.0
    %530 = vmatpush2.msra.mxu0 0.0
    %531 = vmatprep.subr.mxu0 0.0
    %532 = vmatpush2.msra.mxu0 0.0
    %533 = vmatprep.subr.mxu0 0.0
    %534 = vmatpush2.msra.mxu0 0.0
    %535 = vmatprep.subr.mxu0 0.0
    %536 = vmatpush2.msra.mxu0 0.0
    %537 = vmatprep.subr.mxu0 0.0
    %538 = vmatpush2.msra.mxu0 0.0
    %539 = vmatprep.subr.mxu0 0.0
    %540 = vmatpush2.msra.mxu0 0.0
    %541 = vmatprep.subr.mxu0 0.0
    %542 = vmatpush2.msra.mxu0 0.0
    %543 = vmatprep.subr.mxu0 0.0
    %544 = vmatpush2.msra.mxu0 0.0
    %545 = vmatprep.subr.mxu0 0.0
    %546 = vmatpush2.msra.mxu0 0.0
    %547 = vmatprep.subr.mxu0 0.0
    %548 = vmatpush2.msra.mxu0 0.0
    %549 = vmatprep.subr.mxu0 0.0
    %550 = vmatpush2.msra.mxu0 0.0
    %551 = vmatprep.subr.mxu0 0.0
    %552 = vmatpush2.msra.mxu0 0.0
    %553 = vmatprep.subr.mxu0 0.0
    %554 = vmatpush2.msra.mxu0 0.0
    %555 = vmatprep.mubr.f32.mxu0 0.0
    %556 = vmatmul.mubr.f32.gmra.mxu0 %v489
    %v557 = vpop.f32.mrf.mxu0
    %v558 = vadd.f32 %v485, %v557
    %v559 = vpop.f32.mrf.mxu0
    %560 = vdwg.mxu0
    %v561 = vadd.f32 %v558, %v213
    %v562 = vxor.u32 %v561, 2147483648
    %v563 = vmul.f32 %v562, 1.442695
    %v564 = vpow.pop %v563
    %v565 = vadd.f32 %v564, 1.0
    %v566 = vrcp.pop %v565
    %v567 = vmul.f32 1.0, %v566
    %v568 = vtanh.pop %v561
    %v569 = vmul.f32 %v567, %v233
    %571 = vrot.lane.b32.xlu0 %v568, 64
    %v572 = vpop.permute.xlu0 %571
    %v574 = vmul.f32 %v567, %v572
    %576 = vrot.lane.b32.xlu0 %v574, 32
    %v577 = vpop.permute.xlu0 %576
    %v579 = vadd.f32 %v569, %v577
    %v580 = vtanh.pop %v579
    %582 = vrot.lane.b32.xlu0 %v580, 64
    %v583 = vpop.permute.xlu0 %582
    %v585 = vmul.f32 %v567, %v583
    %587 = vrot.lane.b32.xlu0 %v415, 32
    %v588 = vpop.permute.xlu0 %587
    %v589 = vsel %vm61, %v588, 0
    %591 = vmatprep.subr.mxu0 0.0
    %592 = vmatpush1.msra.mxu0 0.0
    %593 = vmatprep.subr.mxu0 0.0
    %594 = vmatpush1.msra.mxu0 0.0
    %595 = vmatprep.subr.mxu0 0.0
    %596 = vmatpush1.msra.mxu0 0.0
    %597 = vmatprep.subr.mxu0 0.0
    %598 = vmatpush1.msra.mxu0 0.0
    %599 = vmatprep.subr.mxu0 0.0
    %600 = vmatpush1.msra.mxu0 0.0
    %601 = vmatprep.subr.mxu0 0.0
    %602 = vmatpush1.msra.mxu0 0.0
    %603 = vmatprep.subr.mxu0 0.0
    %604 = vmatpush1.msra.mxu0 0.0
    %605 = vmatprep.subr.mxu0 0.0
    %606 = vmatpush1.msra.mxu0 0.0
    %607 = vmatprep.subr.mxu0 0.0
    %608 = vmatpush1.msra.mxu0 0.0
    %609 = vmatprep.subr.mxu0 0.0
    %610 = vmatpush1.msra.mxu0 0.0
    %611 = vmatprep.subr.mxu0 0.0
    %612 = vmatpush1.msra.mxu0 0.0
    %613 = vmatprep.subr.mxu0 0.0
    %614 = vmatpush1.msra.mxu0 0.0
    %615 = vmatprep.subr.mxu0 0.0
    %616 = vmatpush1.msra.mxu0 %v58
    %617 = vmatprep.subr.mxu0 0.0
    %618 = vmatpush1.msra.mxu0 %v57
    %619 = vmatprep.subr.mxu0 0.0
    %620 = vmatpush1.msra.mxu0 %v56
    %621 = vmatprep.subr.mxu0 0.0
    %622 = vmatpush1.msra.mxu0 %v55
    %623 = vmatprep.subr.mxu0 0.0
    %624 = vmatpush2.msra.mxu0 0.0
    %625 = vmatprep.subr.mxu0 0.0
    %626 = vmatpush2.msra.mxu0 0.0
    %627 = vmatprep.subr.mxu0 0.0
    %628 = vmatpush2.msra.mxu0 0.0
    %629 = vmatprep.subr.mxu0 0.0
    %630 = vmatpush2.msra.mxu0 0.0
    %631 = vmatprep.subr.mxu0 0.0
    %632 = vmatpush2.msra.mxu0 0.0
    %633 = vmatprep.subr.mxu0 0.0
    %634 = vmatpush2.msra.mxu0 0.0
    %635 = vmatprep.subr.mxu0 0.0
    %636 = vmatpush2.msra.mxu0 0.0
    %637 = vmatprep.subr.mxu0 0.0
    %638 = vmatpush2.msra.mxu0 0.0
    %639 = vmatprep.subr.mxu0 0.0
    %640 = vmatpush2.msra.mxu0 0.0
    %641 = vmatprep.subr.mxu0 0.0
    %642 = vmatpush2.msra.mxu0 0.0
    %643 = vmatprep.subr.mxu0 0.0
    %644 = vmatpush2.msra.mxu0 0.0
    %645 = vmatprep.subr.mxu0 0.0
    %646 = vmatpush2.msra.mxu0 0.0
    %647 = vmatprep.subr.mxu0 0.0
    %648 = vmatpush2.msra.mxu0 0.0
    %649 = vmatprep.subr.mxu0 0.0
    %650 = vmatpush2.msra.mxu0 0.0
    %651 = vmatprep.subr.mxu0 0.0
    %652 = vmatpush2.msra.mxu0 0.0
    %653 = vmatprep.subr.mxu0 0.0
    %654 = vmatpush2.msra.mxu0 0.0
    %655 = vmatprep.mubr.f32.mxu0 0.0
    %656 = vmatmul.mubr.f32.gmra.mxu0 %v589
    %v657 = vpop.f32.mrf.mxu0
    %v658 = vadd.f32 0.0, %v657
    %v659 = vpop.f32.mrf.mxu0
    %660 = vdwg.mxu0
    %662 = vrot.lane.b32.xlu0 %v585, 32
    %v663 = vpop.permute.xlu0 %662
    %v664 = vsel %vm61, %v663, 0
    %666 = vmatprep.subr.mxu0 0.0
    %667 = vmatpush1.msra.mxu0 0.0
    %668 = vmatprep.subr.mxu0 0.0
    %669 = vmatpush1.msra.mxu0 0.0
    %670 = vmatprep.subr.mxu0 0.0
    %671 = vmatpush1.msra.mxu0 0.0
    %672 = vmatprep.subr.mxu0 0.0
    %673 = vmatpush1.msra.mxu0 0.0
    %674 = vmatprep.subr.mxu0 0.0
    %675 = vmatpush1.msra.mxu0 0.0
    %676 = vmatprep.subr.mxu0 0.0
    %677 = vmatpush1.msra.mxu0 0.0
    %678 = vmatprep.subr.mxu0 0.0
    %679 = vmatpush1.msra.mxu0 0.0
    %680 = vmatprep.subr.mxu0 0.0
    %681 = vmatpush1.msra.mxu0 0.0
    %682 = vmatprep.subr.mxu0 0.0
    %683 = vmatpush1.msra.mxu0 0.0
    %684 = vmatprep.subr.mxu0 0.0
    %685 = vmatpush1.msra.mxu0 0.0
    %686 = vmatprep.subr.mxu0 0.0
    %687 = vmatpush1.msra.mxu0 0.0
    %688 = vmatprep.subr.mxu0 0.0
    %689 = vmatpush1.msra.mxu0 0.0
    %690 = vmatprep.subr.mxu0 0.0
    %691 = vmatpush1.msra.mxu0 %v54
    %692 = vmatprep.subr.mxu0 0.0
    %693 = vmatpush1.msra.mxu0 %v53
    %694 = vmatprep.subr.mxu0 0.0
    %695 = vmatpush1.msra.mxu0 %v52
    %696 = vmatprep.subr.mxu0 0.0
    %697 = vmatpush1.msra.mxu0 %v51
    %698 = vmatprep.subr.mxu0 0.0
    %699 = vmatpush2.msra.mxu0 0.0
    %700 = vmatprep.subr.mxu0 0.0
    %701 = vmatpush2.msra.mxu0 0.0
    %702 = vmatprep.subr.mxu0 0.0
    %703 = vmatpush2.msra.mxu0 0.0
    %704 = vmatprep.subr.mxu0 0.0
    %705 = vmatpush2.msra.mxu0 0.0
    %706 = vmatprep.subr.mxu0 0.0
    %707 = vmatpush2.msra.mxu0 0.0
    %708 = vmatprep.subr.mxu0 0.0
    %709 = vmatpush2.msra.mxu0 0.0
    %710 = vmatprep.subr.mxu0 0.0
    %711 = vmatpush2.msra.mxu0 0.0
    %712 = vmatprep.subr.mxu0 0.0
    %713 = vmatpush2.msra.mxu0 0.0
    %714 = vmatprep.subr.mxu0 0.0
    %715 = vmatpush2.msra.mxu0 0.0
    %716 = vmatprep.subr.mxu0 0.0
    %717 = vmatpush2.msra.mxu0 0.0
    %718 = vmatprep.subr.mxu0 0.0
    %719 = vmatpush2.msra.mxu0 0.0
    %720 = vmatprep.subr.mxu0 0.0
    %721 = vmatpush2.msra.mxu0 0.0
    %722 = vmatprep.subr.mxu0 0.0
    %723 = vmatpush2.msra.mxu0 0.0
    %724 = vmatprep.subr.mxu0 0.0
    %725 = vmatpush2.msra.mxu0 0.0
    %726 = vmatprep.subr.mxu0 0.0
    %727 = vmatpush2.msra.mxu0 0.0
    %728 = vmatprep.subr.mxu0 0.0
    %729 = vmatpush2.msra.mxu0 0.0
    %730 = vmatprep.mubr.f32.mxu0 0.0
    %731 = vmatmul.mubr.f32.gmra.mxu0 %v664
    %v732 = vpop.f32.mrf.mxu0
    %v733 = vadd.f32 %v658, %v732
    %v734 = vpop.f32.mrf.mxu0
    %735 = vdwg.mxu0
    %v736 = vadd.f32 %v733, %v389
    %v737 = vxor.u32 %v736, 2147483648
    %v738 = vmul.f32 %v737, 1.442695
    %v739 = vpow.pop %v738
    %v740 = vadd.f32 %v739, 1.0
    %v741 = vrcp.pop %v740
    %v742 = vmul.f32 1.0, %v741
    %v743 = vtanh.pop %v736
    %v744 = vmul.f32 %v742, %v409
    %746 = vrot.lane.b32.xlu0 %v743, 64
    %v747 = vpop.permute.xlu0 %746
    %v749 = vmul.f32 %v742, %v747
    %751 = vrot.lane.b32.xlu0 %v749, 32
    %v752 = vpop.permute.xlu0 %751
    %v754 = vadd.f32 %v744, %v752
    %v755 = vtanh.pop %v754
    %757 = vrot.lane.b32.xlu0 %v755, 64
    %v758 = vpop.permute.xlu0 %757
    %v760 = vmul.f32 %v742, %v758
    %s761 = scalar_lea.vmem %s0, 4
    %v762 = vld [vmem:[%s761] sm:$0x3]
    %763 = vmatprep.subr.mxu0 0.0
    %764 = vmatpush1.msra.mxu0 0.0
    %765 = vmatprep.subr.mxu0 0.0
    %766 = vmatpush1.msra.mxu0 0.0
    %767 = vmatprep.subr.mxu0 0.0
    %768 = vmatpush1.msra.mxu0 0.0
    %769 = vmatprep.subr.mxu0 0.0
    %770 = vmatpush1.msra.mxu0 0.0
    %771 = vmatprep.subr.mxu0 0.0
    %772 = vmatpush1.msra.mxu0 0.0
    %773 = vmatprep.subr.mxu0 0.0
    %774 = vmatpush1.msra.mxu0 0.0
    %775 = vmatprep.subr.mxu0 0.0
    %776 = vmatpush1.msra.mxu0 0.0
    %777 = vmatprep.subr.mxu0 0.0
    %778 = vmatpush1.msra.mxu0 0.0
    %779 = vmatprep.subr.mxu0 0.0
    %780 = vmatpush1.msra.mxu0 0.0
    %781 = vmatprep.subr.mxu0 0.0
    %782 = vmatpush1.msra.mxu0 0.0
    %783 = vmatprep.subr.mxu0 0.0
    %784 = vmatpush1.msra.mxu0 0.0
    %785 = vmatprep.subr.mxu0 0.0
    %786 = vmatpush1.msra.mxu0 0.0
    %787 = vmatprep.subr.mxu0 0.0
    %788 = vmatpush1.msra.mxu0 %v49
    %789 = vmatprep.subr.mxu0 0.0
    %790 = vmatpush1.msra.mxu0 %v48
    %791 = vmatprep.subr.mxu0 0.0
    %792 = vmatpush1.msra.mxu0 %v47
    %793 = vmatprep.subr.mxu0 0.0
    %794 = vmatpush1.msra.mxu0 %v46
    %795 = vmatprep.subr.mxu0 0.0
    %796 = vmatpush2.msra.mxu0 0.0
    %797 = vmatprep.subr.mxu0 0.0
    %798 = vmatpush2.msra.mxu0 0.0
    %799 = vmatprep.subr.mxu0 0.0
    %800 = vmatpush2.msra.mxu0 0.0
    %801 = vmatprep.subr.mxu0 0.0
    %802 = vmatpush2.msra.mxu0 0.0
    %803 = vmatprep.subr.mxu0 0.0
    %804 = vmatpush2.msra.mxu0 0.0
    %805 = vmatprep.subr.mxu0 0.0
    %806 = vmatpush2.msra.mxu0 0.0
    %807 = vmatprep.subr.mxu0 0.0
    %808 = vmatpush2.msra.mxu0 0.0
    %809 = vmatprep.subr.mxu0 0.0
    %810 = vmatpush2.msra.mxu0 0.0
    %811 = vmatprep.subr.mxu0 0.0
    %812 = vmatpush2.msra.mxu0 0.0
    %813 = vmatprep.subr.mxu0 0.0
    %814 = vmatpush2.msra.mxu0 0.0
    %815 = vmatprep.subr.mxu0 0.0
    %816 = vmatpush2.msra.mxu0 0.0
    %817 = vmatprep.subr.mxu0 0.0
    %818 = vmatpush2.msra.mxu0 0.0
    %819 = vmatprep.subr.mxu0 0.0
    %820 = vmatpush2.msra.mxu0 0.0
    %821 = vmatprep.subr.mxu0 0.0
    %822 = vmatpush2.msra.mxu0 0.0
    %823 = vmatprep.subr.mxu0 0.0
    %824 = vmatpush2.msra.mxu0 0.0
    %825 = vmatprep.subr.mxu0 0.0
    %826 = vmatpush2.msra.mxu0 0.0
    %827 = vmatprep.mubr.f32.mxu0 0.0
    %828 = vmatmul.mubr.f32.gmra.mxu0 %v664
    %v829 = vpop.f32.mrf.mxu0
    %v830 = vadd.f32 0.0, %v829
    %v831 = vpop.f32.mrf.mxu0
    %832 = vdwg.mxu0
    %v834 = vsel %vm135, %v762, 0
    %836 = vmatprep.subr.mxu0 0.0
    %837 = vmatpush1.msra.mxu0 0.0
    %838 = vmatprep.subr.mxu0 0.0
    %839 = vmatpush1.msra.mxu0 0.0
    %840 = vmatprep.subr.mxu0 0.0
    %841 = vmatpush1.msra.mxu0 0.0
    %842 = vmatprep.subr.mxu0 0.0
    %843 = vmatpush1.msra.mxu0 0.0
    %844 = vmatprep.subr.mxu0 0.0
    %845 = vmatpush1.msra.mxu0 0.0
    %846 = vmatprep.subr.mxu0 0.0
    %847 = vmatpush1.msra.mxu0 0.0
    %848 = vmatprep.subr.mxu0 0.0
    %849 = vmatpush1.msra.mxu0 0.0
    %850 = vmatprep.subr.mxu0 0.0
    %851 = vmatpush1.msra.mxu0 0.0
    %852 = vmatprep.subr.mxu0 0.0
    %853 = vmatpush1.msra.mxu0 0.0
    %854 = vmatprep.subr.mxu0 0.0
    %855 = vmatpush1.msra.mxu0 0.0
    %856 = vmatprep.subr.mxu0 0.0
    %857 = vmatpush1.msra.mxu0 0.0
    %858 = vmatprep.subr.mxu0 0.0
    %859 = vmatpush1.msra.mxu0 0.0
    %860 = vmatprep.subr.mxu0 0.0
    %861 = vmatpush1.msra.mxu0 0.0
    %862 = vmatprep.subr.mxu0 0.0
    %863 = vmatpush1.msra.mxu0 0.0
    %864 = vmatprep.subr.mxu0 0.0
    %865 = vmatpush1.msra.mxu0 0.0
    %866 = vmatprep.subr.mxu0 0.0
    %867 = vmatpush1.msra.mxu0 %v45
    %868 = vmatprep.subr.mxu0 0.0
    %869 = vmatpush2.msra.mxu0 0.0
    %870 = vmatprep.subr.mxu0 0.0
    %871 = vmatpush2.msra.mxu0 0.0
    %872 = vmatprep.subr.mxu0 0.0
    %873 = vmatpush2.msra.mxu0 0.0
    %874 = vmatprep.subr.mxu0 0.0
    %875 = vmatpush2.msra.mxu0 0.0
    %876 = vmatprep.subr.mxu0 0.0
    %877 = vmatpush2.msra.mxu0 0.0
    %878 = vmatprep.subr.mxu0 0.0
    %879 = vmatpush2.msra.mxu0 0.0
    %880 = vmatprep.subr.mxu0 0.0
    %881 = vmatpush2.msra.mxu0 0.0
    %882 = vmatprep.subr.mxu0 0.0
    %883 = vmatpush2.msra.mxu0 0.0
    %884 = vmatprep.subr.mxu0 0.0
    %885 = vmatpush2.msra.mxu0 0.0
    %886 = vmatprep.subr.mxu0 0.0
    %887 = vmatpush2.msra.mxu0 0.0
    %888 = vmatprep.subr.mxu0 0.0
    %889 = vmatpush2.msra.mxu0 0.0
    %890 = vmatprep.subr.mxu0 0.0
    %891 = vmatpush2.msra.mxu0 0.0
    %892 = vmatprep.subr.mxu0 0.0
    %893 = vmatpush2.msra.mxu0 0.0
    %894 = vmatprep.subr.mxu0 0.0
    %895 = vmatpush2.msra.mxu0 0.0
    %896 = vmatprep.subr.mxu0 0.0
    %897 = vmatpush2.msra.mxu0 0.0
    %898 = vmatprep.subr.mxu0 0.0
    %899 = vmatpush2.msra.mxu0 0.0
    %900 = vmatprep.mubr.f32.mxu0 0.0
    %901 = vmatmul.mubr.f32.gmra.mxu0 %v834
    %v902 = vpop.f32.mrf.mxu0
    %v903 = vadd.f32 %v830, %v902
    %v904 = vpop.f32.mrf.mxu0
    %905 = vdwg.mxu0
    %v906 = vadd.f32 %v903, %v213
    %v907 = vxor.u32 %v906, 2147483648
    %v908 = vmul.f32 %v907, 1.442695
    %v909 = vpow.pop %v908
    %v910 = vadd.f32 %v909, 1.0
    %v911 = vrcp.pop %v910
    %v912 = vmul.f32 1.0, %v911
    %v913 = vtanh.pop %v906
    %v914 = vmul.f32 %v912, %v579
    %916 = vrot.lane.b32.xlu0 %v913, 64
    %v917 = vpop.permute.xlu0 %916
    %v919 = vmul.f32 %v912, %v917
    %921 = vrot.lane.b32.xlu0 %v919, 32
    %v922 = vpop.permute.xlu0 %921
    %v924 = vadd.f32 %v914, %v922
    %v925 = vtanh.pop %v924
    %927 = vrot.lane.b32.xlu0 %v925, 64
    %v928 = vpop.permute.xlu0 %927
    %v930 = vmul.f32 %v912, %v928
    %932 = vrot.lane.b32.xlu0 %v760, 32
    %v933 = vpop.permute.xlu0 %932
    %v934 = vsel %vm61, %v933, 0
    %936 = vmatprep.subr.mxu0 0.0
    %937 = vmatpush1.msra.mxu0 0.0
    %938 = vmatprep.subr.mxu0 0.0
    %939 = vmatpush1.msra.mxu0 0.0
    %940 = vmatprep.subr.mxu0 0.0
    %941 = vmatpush1.msra.mxu0 0.0
    %942 = vmatprep.subr.mxu0 0.0
    %943 = vmatpush1.msra.mxu0 0.0
    %944 = vmatprep.subr.mxu0 0.0
    %945 = vmatpush1.msra.mxu0 0.0
    %946 = vmatprep.subr.mxu0 0.0
    %947 = vmatpush1.msra.mxu0 0.0
    %948 = vmatprep.subr.mxu0 0.0
    %949 = vmatpush1.msra.mxu0 0.0
    %950 = vmatprep.subr.mxu0 0.0
    %951 = vmatpush1.msra.mxu0 0.0
    %952 = vmatprep.subr.mxu0 0.0
    %953 = vmatpush1.msra.mxu0 0.0
    %954 = vmatprep.subr.mxu0 0.0
    %955 = vmatpush1.msra.mxu0 0.0
    %956 = vmatprep.subr.mxu0 0.0
    %957 = vmatpush1.msra.mxu0 0.0
    %958 = vmatprep.subr.mxu0 0.0
    %959 = vmatpush1.msra.mxu0 0.0
    %960 = vmatprep.subr.mxu0 0.0
    %961 = vmatpush1.msra.mxu0 %v58
    %962 = vmatprep.subr.mxu0 0.0
    %963 = vmatpush1.msra.mxu0 %v57
    %964 = vmatprep.subr.mxu0 0.0
    %965 = vmatpush1.msra.mxu0 %v56
    %966 = vmatprep.subr.mxu0 0.0
    %967 = vmatpush1.msra.mxu0 %v55
    %968 = vmatprep.subr.mxu0 0.0
    %969 = vmatpush2.msra.mxu0 0.0
    %970 = vmatprep.subr.mxu0 0.0
    %971 = vmatpush2.msra.mxu0 0.0
    %972 = vmatprep.subr.mxu0 0.0
    %973 = vmatpush2.msra.mxu0 0.0
    %974 = vmatprep.subr.mxu0 0.0
    %975 = vmatpush2.msra.mxu0 0.0
    %976 = vmatprep.subr.mxu0 0.0
    %977 = vmatpush2.msra.mxu0 0.0
    %978 = vmatprep.subr.mxu0 0.0
    %979 = vmatpush2.msra.mxu0 0.0
    %980 = vmatprep.subr.mxu0 0.0
    %981 = vmatpush2.msra.mxu0 0.0
    %982 = vmatprep.subr.mxu0 0.0
    %983 = vmatpush2.msra.mxu0 0.0
    %984 = vmatprep.subr.mxu0 0.0
    %985 = vmatpush2.msra.mxu0 0.0
    %986 = vmatprep.subr.mxu0 0.0
    %987 = vmatpush2.msra.mxu0 0.0
    %988 = vmatprep.subr.mxu0 0.0
    %989 = vmatpush2.msra.mxu0 0.0
    %990 = vmatprep.subr.mxu0 0.0
    %991 = vmatpush2.msra.mxu0 0.0
    %992 = vmatprep.subr.mxu0 0.0
    %993 = vmatpush2.msra.mxu0 0.0
    %994 = vmatprep.subr.mxu0 0.0
    %995 = vmatpush2.msra.mxu0 0.0
    %996 = vmatprep.subr.mxu0 0.0
    %997 = vmatpush2.msra.mxu0 0.0
    %998 = vmatprep.subr.mxu0 0.0
    %999 = vmatpush2.msra.mxu0 0.0
    %1000 = vmatprep.mubr.f32.mxu0 0.0
    %1001 = vmatmul.mubr.f32.gmra.mxu0 %v934
    %v1002 = vpop.f32.mrf.mxu0
    %v1003 = vadd.f32 0.0, %v1002
    %v1004 = vpop.f32.mrf.mxu0
    %1005 = vdwg.mxu0
    %1007 = vrot.lane.b32.xlu0 %v930, 32
    %v1008 = vpop.permute.xlu0 %1007
    %v1009 = vsel %vm61, %v1008, 0
    %1011 = vmatprep.subr.mxu0 0.0
    %1012 = vmatpush1.msra.mxu0 0.0
    %1013 = vmatprep.subr.mxu0 0.0
    %1014 = vmatpush1.msra.mxu0 0.0
    %1015 = vmatprep.subr.mxu0 0.0
    %1016 = vmatpush1.msra.mxu0 0.0
    %1017 = vmatprep.subr.mxu0 0.0
    %1018 = vmatpush1.msra.mxu0 0.0
    %1019 = vmatprep.subr.mxu0 0.0
    %1020 = vmatpush1.msra.mxu0 0.0
    %1021 = vmatprep.subr.mxu0 0.0
    %1022 = vmatpush1.msra.mxu0 0.0
    %1023 = vmatprep.subr.mxu0 0.0
    %1024 = vmatpush1.msra.mxu0 0.0
    %1025 = vmatprep.subr.mxu0 0.0
    %1026 = vmatpush1.msra.mxu0 0.0
    %1027 = vmatprep.subr.mxu0 0.0
    %1028 = vmatpush1.msra.mxu0 0.0
    %1029 = vmatprep.subr.mxu0 0.0
    %1030 = vmatpush1.msra.mxu0 0.0
    %1031 = vmatprep.subr.mxu0 0.0
    %1032 = vmatpush1.msra.mxu0 0.0
    %1033 = vmatprep.subr.mxu0 0.0
    %1034 = vmatpush1.msra.mxu0 0.0
    %1035 = vmatprep.subr.mxu0 0.0
    %1036 = vmatpush1.msra.mxu0 %v54
    %1037 = vmatprep.subr.mxu0 0.0
    %1038 = vmatpush1.msra.mxu0 %v53
    %1039 = vmatprep.subr.mxu0 0.0
    %1040 = vmatpush1.msra.mxu0 %v52
    %1041 = vmatprep.subr.mxu0 0.0
    %1042 = vmatpush1.msra.mxu0 %v51
    %1043 = vmatprep.subr.mxu0 0.0
    %1044 = vmatpush2.msra.mxu0 0.0
    %1045 = vmatprep.subr.mxu0 0.0
    %1046 = vmatpush2.msra.mxu0 0.0
    %1047 = vmatprep.subr.mxu0 0.0
    %1048 = vmatpush2.msra.mxu0 0.0
    %1049 = vmatprep.subr.mxu0 0.0
    %1050 = vmatpush2.msra.mxu0 0.0
    %1051 = vmatprep.subr.mxu0 0.0
    %1052 = vmatpush2.msra.mxu0 0.0
    %1053 = vmatprep.subr.mxu0 0.0
    %1054 = vmatpush2.msra.mxu0 0.0
    %1055 = vmatprep.subr.mxu0 0.0
    %1056 = vmatpush2.msra.mxu0 0.0
    %1057 = vmatprep.subr.mxu0 0.0
    %1058 = vmatpush2.msra.mxu0 0.0
    %1059 = vmatprep.subr.mxu0 0.0
    %1060 = vmatpush2.msra.mxu0 0.0
    %1061 = vmatprep.subr.mxu0 0.0
    %1062 = vmatpush2.msra.mxu0 0.0
    %1063 = vmatprep.subr.mxu0 0.0
    %1064 = vmatpush2.msra.mxu0 0.0
    %1065 = vmatprep.subr.mxu0 0.0
    %1066 = vmatpush2.msra.mxu0 0.0
    %1067 = vmatprep.subr.mxu0 0.0
    %1068 = vmatpush2.msra.mxu0 0.0
    %1069 = vmatprep.subr.mxu0 0.0
    %1070 = vmatpush2.msra.mxu0 0.0
    %1071 = vmatprep.subr.mxu0 0.0
    %1072 = vmatpush2.msra.mxu0 0.0
    %1073 = vmatprep.subr.mxu0 0.0
    %1074 = vmatpush2.msra.mxu0 0.0
    %1075 = vmatprep.mubr.f32.mxu0 0.0
    %1076 = vmatmul.mubr.f32.gmra.mxu0 %v1009
    %v1077 = vpop.f32.mrf.mxu0
    %v1078 = vadd.f32 %v1003, %v1077
    %v1079 = vpop.f32.mrf.mxu0
    %1080 = vdwg.mxu0
    %v1081 = vadd.f32 %v1078, %v389
    %v1082 = vxor.u32 %v1081, 2147483648
    %v1083 = vmul.f32 %v1082, 1.442695
    %v1084 = vpow.pop %v1083
    %v1085 = vadd.f32 %v1084, 1.0
    %v1086 = vrcp.pop %v1085
    %v1087 = vmul.f32 1.0, %v1086
    %v1088 = vtanh.pop %v1081
    %v1089 = vmul.f32 %v1087, %v754
    %1091 = vrot.lane.b32.xlu0 %v1088, 64
    %v1092 = vpop.permute.xlu0 %1091
    %v1094 = vmul.f32 %v1087, %v1092
    %1096 = vrot.lane.b32.xlu0 %v1094, 32
    %v1097 = vpop.permute.xlu0 %1096
    %v1099 = vadd.f32 %v1089, %v1097
    %v1100 = vtanh.pop %v1099
    %1102 = vrot.lane.b32.xlu0 %v1100, 64
    %v1103 = vpop.permute.xlu0 %1102
    %v1105 = vmul.f32 %v1087, %v1103
    %s1106 = scalar_lea.vmem %s0, 6
    %v1107 = vld [vmem:[%s1106] sm:$0x3]
    %1108 = vmatprep.subr.mxu0 0.0
    %1109 = vmatpush1.msra.mxu0 0.0
    %1110 = vmatprep.subr.mxu0 0.0
    %1111 = vmatpush1.msra.mxu0 0.0
    %1112 = vmatprep.subr.mxu0 0.0
    %1113 = vmatpush1.msra.mxu0 0.0
    %1114 = vmatprep.subr.mxu0 0.0
    %1115 = vmatpush1.msra.mxu0 0.0
    %1116 = vmatprep.subr.mxu0 0.0
    %1117 = vmatpush1.msra.mxu0 0.0
    %1118 = vmatprep.subr.mxu0 0.0
    %1119 = vmatpush1.msra.mxu0 0.0
    %1120 = vmatprep.subr.mxu0 0.0
    %1121 = vmatpush1.msra.mxu0 0.0
    %1122 = vmatprep.subr.mxu0 0.0
    %1123 = vmatpush1.msra.mxu0 0.0
    %1124 = vmatprep.subr.mxu0 0.0
    %1125 = vmatpush1.msra.mxu0 0.0
    %1126 = vmatprep.subr.mxu0 0.0
    %1127 = vmatpush1.msra.mxu0 0.0
    %1128 = vmatprep.subr.mxu0 0.0
    %1129 = vmatpush1.msra.mxu0 0.0
    %1130 = vmatprep.subr.mxu0 0.0
    %1131 = vmatpush1.msra.mxu0 0.0
    %1132 = vmatprep.subr.mxu0 0.0
    %1133 = vmatpush1.msra.mxu0 %v49
    %1134 = vmatprep.subr.mxu0 0.0
    %1135 = vmatpush1.msra.mxu0 %v48
    %1136 = vmatprep.subr.mxu0 0.0
    %1137 = vmatpush1.msra.mxu0 %v47
    %1138 = vmatprep.subr.mxu0 0.0
    %1139 = vmatpush1.msra.mxu0 %v46
    %1140 = vmatprep.subr.mxu0 0.0
    %1141 = vmatpush2.msra.mxu0 0.0
    %1142 = vmatprep.subr.mxu0 0.0
    %1143 = vmatpush2.msra.mxu0 0.0
    %1144 = vmatprep.subr.mxu0 0.0
    %1145 = vmatpush2.msra.mxu0 0.0
    %1146 = vmatprep.subr.mxu0 0.0
    %1147 = vmatpush2.msra.mxu0 0.0
    %1148 = vmatprep.subr.mxu0 0.0
    %1149 = vmatpush2.msra.mxu0 0.0
    %1150 = vmatprep.subr.mxu0 0.0
    %1151 = vmatpush2.msra.mxu0 0.0
    %1152 = vmatprep.subr.mxu0 0.0
    %1153 = vmatpush2.msra.mxu0 0.0
    %1154 = vmatprep.subr.mxu0 0.0
    %1155 = vmatpush2.msra.mxu0 0.0
    %1156 = vmatprep.subr.mxu0 0.0
    %1157 = vmatpush2.msra.mxu0 0.0
    %1158 = vmatprep.subr.mxu0 0.0
    %1159 = vmatpush2.msra.mxu0 0.0
    %1160 = vmatprep.subr.mxu0 0.0
    %1161 = vmatpush2.msra.mxu0 0.0
    %1162 = vmatprep.subr.mxu0 0.0
    %1163 = vmatpush2.msra.mxu0 0.0
    %1164 = vmatprep.subr.mxu0 0.0
    %1165 = vmatpush2.msra.mxu0 0.0
    %1166 = vmatprep.subr.mxu0 0.0
    %1167 = vmatpush2.msra.mxu0 0.0
    %1168 = vmatprep.subr.mxu0 0.0
    %1169 = vmatpush2.msra.mxu0 0.0
    %1170 = vmatprep.subr.mxu0 0.0
    %1171 = vmatpush2.msra.mxu0 0.0
    %1172 = vmatprep.mubr.f32.mxu0 0.0
    %1173 = vmatmul.mubr.f32.gmra.mxu0 %v1009
    %v1174 = vpop.f32.mrf.mxu0
    %v1175 = vadd.f32 0.0, %v1174
    %v1176 = vpop.f32.mrf.mxu0
    %1177 = vdwg.mxu0
    %v1179 = vsel %vm135, %v1107, 0
    %1181 = vmatprep.subr.mxu0 0.0
    %1182 = vmatpush1.msra.mxu0 0.0
    %1183 = vmatprep.subr.mxu0 0.0
    %1184 = vmatpush1.msra.mxu0 0.0
    %1185 = vmatprep.subr.mxu0 0.0
    %1186 = vmatpush1.msra.mxu0 0.0
    %1187 = vmatprep.subr.mxu0 0.0
    %1188 = vmatpush1.msra.mxu0 0.0
    %1189 = vmatprep.subr.mxu0 0.0
    %1190 = vmatpush1.msra.mxu0 0.0
    %1191 = vmatprep.subr.mxu0 0.0
    %1192 = vmatpush1.msra.mxu0 0.0
    %1193 = vmatprep.subr.mxu0 0.0
    %1194 = vmatpush1.msra.mxu0 0.0
    %1195 = vmatprep.subr.mxu0 0.0
    %1196 = vmatpush1.msra.mxu0 0.0
    %1197 = vmatprep.subr.mxu0 0.0
    %1198 = vmatpush1.msra.mxu0 0.0
    %1199 = vmatprep.subr.mxu0 0.0
    %1200 = vmatpush1.msra.mxu0 0.0
    %1201 = vmatprep.subr.mxu0 0.0
    %1202 = vmatpush1.msra.mxu0 0.0
    %1203 = vmatprep.subr.mxu0 0.0
    %1204 = vmatpush1.msra.mxu0 0.0
    %1205 = vmatprep.subr.mxu0 0.0
    %1206 = vmatpush1.msra.mxu0 0.0
    %1207 = vmatprep.subr.mxu0 0.0
    %1208 = vmatpush1.msra.mxu0 0.0
    %1209 = vmatprep.subr.mxu0 0.0
    %1210 = vmatpush1.msra.mxu0 0.0
    %1211 = vmatprep.subr.mxu0 0.0
    %1212 = vmatpush1.msra.mxu0 %v45
    %1213 = vmatprep.subr.mxu0 0.0
    %1214 = vmatpush2.msra.mxu0 0.0
    %1215 = vmatprep.subr.mxu0 0.0
    %1216 = vmatpush2.msra.mxu0 0.0
    %1217 = vmatprep.subr.mxu0 0.0
    %1218 = vmatpush2.msra.mxu0 0.0
    %1219 = vmatprep.subr.mxu0 0.0
    %1220 = vmatpush2.msra.mxu0 0.0
    %1221 = vmatprep.subr.mxu0 0.0
    %1222 = vmatpush2.msra.mxu0 0.0
    %1223 = vmatprep.subr.mxu0 0.0
    %1224 = vmatpush2.msra.mxu0 0.0
    %1225 = vmatprep.subr.mxu0 0.0
    %1226 = vmatpush2.msra.mxu0 0.0
    %1227 = vmatprep.subr.mxu0 0.0
    %1228 = vmatpush2.msra.mxu0 0.0
    %1229 = vmatprep.subr.mxu0 0.0
    %1230 = vmatpush2.msra.mxu0 0.0
    %1231 = vmatprep.subr.mxu0 0.0
    %1232 = vmatpush2.msra.mxu0 0.0
    %1233 = vmatprep.subr.mxu0 0.0
    %1234 = vmatpush2.msra.mxu0 0.0
    %1235 = vmatprep.subr.mxu0 0.0
    %1236 = vmatpush2.msra.mxu0 0.0
    %1237 = vmatprep.subr.mxu0 0.0
    %1238 = vmatpush2.msra.mxu0 0.0
    %1239 = vmatprep.subr.mxu0 0.0
    %1240 = vmatpush2.msra.mxu0 0.0
    %1241 = vmatprep.subr.mxu0 0.0
    %1242 = vmatpush2.msra.mxu0 0.0
    %1243 = vmatprep.subr.mxu0 0.0
    %1244 = vmatpush2.msra.mxu0 0.0
    %1245 = vmatprep.mubr.f32.mxu0 0.0
    %1246 = vmatmul.mubr.f32.gmra.mxu0 %v1179
    %v1247 = vpop.f32.mrf.mxu0
    %v1248 = vadd.f32 %v1175, %v1247
    %v1249 = vpop.f32.mrf.mxu0
    %1250 = vdwg.mxu0
    %v1251 = vadd.f32 %v1248, %v213
    %v1252 = vxor.u32 %v1251, 2147483648
    %v1253 = vmul.f32 %v1252, 1.442695
    %v1254 = vpow.pop %v1253
    %v1255 = vadd.f32 %v1254, 1.0
    %v1256 = vrcp.pop %v1255
    %v1257 = vmul.f32 1.0, %v1256
    %v1258 = vtanh.pop %v1251
    %v1259 = vmul.f32 %v1257, %v924
    %1261 = vrot.lane.b32.xlu0 %v1258, 64
    %v1262 = vpop.permute.xlu0 %1261
    %v1264 = vmul.f32 %v1257, %v1262
    %1266 = vrot.lane.b32.xlu0 %v1264, 32
    %v1267 = vpop.permute.xlu0 %1266
    %v1269 = vadd.f32 %v1259, %v1267
    %v1270 = vtanh.pop %v1269
    %1272 = vrot.lane.b32.xlu0 %v1270, 64
    %v1273 = vpop.permute.xlu0 %1272
    %v1275 = vmul.f32 %v1257, %v1273
    %1277 = vrot.lane.b32.xlu0 %v1105, 32
    %v1278 = vpop.permute.xlu0 %1277
    %v1279 = vsel %vm61, %v1278, 0
    %1281 = vmatprep.subr.mxu0 0.0
    %1282 = vmatpush1.msra.mxu0 0.0
    %1283 = vmatprep.subr.mxu0 0.0
    %1284 = vmatpush1.msra.mxu0 0.0
    %1285 = vmatprep.subr.mxu0 0.0
    %1286 = vmatpush1.msra.mxu0 0.0
    %1287 = vmatprep.subr.mxu0 0.0
    %1288 = vmatpush1.msra.mxu0 0.0
    %1289 = vmatprep.subr.mxu0 0.0
    %1290 = vmatpush1.msra.mxu0 0.0
    %1291 = vmatprep.subr.mxu0 0.0
    %1292 = vmatpush1.msra.mxu0 0.0
    %1293 = vmatprep.subr.mxu0 0.0
    %1294 = vmatpush1.msra.mxu0 0.0
    %1295 = vmatprep.subr.mxu0 0.0
    %1296 = vmatpush1.msra.mxu0 0.0
    %1297 = vmatprep.subr.mxu0 0.0
    %1298 = vmatpush1.msra.mxu0 0.0
    %1299 = vmatprep.subr.mxu0 0.0
    %1300 = vmatpush1.msra.mxu0 0.0
    %1301 = vmatprep.subr.mxu0 0.0
    %1302 = vmatpush1.msra.mxu0 0.0
    %1303 = vmatprep.subr.mxu0 0.0
    %1304 = vmatpush1.msra.mxu0 0.0
    %1305 = vmatprep.subr.mxu0 0.0
    %1306 = vmatpush1.msra.mxu0 %v58
    %1307 = vmatprep.subr.mxu0 0.0
    %1308 = vmatpush1.msra.mxu0 %v57
    %1309 = vmatprep.subr.mxu0 0.0
    %1310 = vmatpush1.msra.mxu0 %v56
    %1311 = vmatprep.subr.mxu0 0.0
    %1312 = vmatpush1.msra.mxu0 %v55
    %1313 = vmatprep.subr.mxu0 0.0
    %1314 = vmatpush2.msra.mxu0 0.0
    %1315 = vmatprep.subr.mxu0 0.0
    %1316 = vmatpush2.msra.mxu0 0.0
    %1317 = vmatprep.subr.mxu0 0.0
    %1318 = vmatpush2.msra.mxu0 0.0
    %1319 = vmatprep.subr.mxu0 0.0
    %1320 = vmatpush2.msra.mxu0 0.0
    %1321 = vmatprep.subr.mxu0 0.0
    %1322 = vmatpush2.msra.mxu0 0.0
    %1323 = vmatprep.subr.mxu0 0.0
    %1324 = vmatpush2.msra.mxu0 0.0
    %1325 = vmatprep.subr.mxu0 0.0
    %1326 = vmatpush2.msra.mxu0 0.0
    %1327 = vmatprep.subr.mxu0 0.0
    %1328 = vmatpush2.msra.mxu0 0.0
    %1329 = vmatprep.subr.mxu0 0.0
    %1330 = vmatpush2.msra.mxu0 0.0
    %1331 = vmatprep.subr.mxu0 0.0
    %1332 = vmatpush2.msra.mxu0 0.0
    %1333 = vmatprep.subr.mxu0 0.0
    %1334 = vmatpush2.msra.mxu0 0.0
    %1335 = vmatprep.subr.mxu0 0.0
    %1336 = vmatpush2.msra.mxu0 0.0
    %1337 = vmatprep.subr.mxu0 0.0
    %1338 = vmatpush2.msra.mxu0 0.0
    %1339 = vmatprep.subr.mxu0 0.0
    %1340 = vmatpush2.msra.mxu0 0.0
    %1341 = vmatprep.subr.mxu0 0.0
    %1342 = vmatpush2.msra.mxu0 0.0
    %1343 = vmatprep.subr.mxu0 0.0
    %1344 = vmatpush2.msra.mxu0 0.0
    %1345 = vmatprep.mubr.f32.mxu0 0.0
    %1346 = vmatmul.mubr.f32.gmra.mxu0 %v1279
    %v1347 = vpop.f32.mrf.mxu0
    %v1348 = vadd.f32 0.0, %v1347
    %v1349 = vpop.f32.mrf.mxu0
    %1350 = vdwg.mxu0
    %1352 = vrot.lane.b32.xlu0 %v1275, 32
    %v1353 = vpop.permute.xlu0 %1352
    %v1354 = vsel %vm61, %v1353, 0
    %1356 = vmatprep.subr.mxu0 0.0
    %1357 = vmatpush1.msra.mxu0 0.0
    %1358 = vmatprep.subr.mxu0 0.0
    %1359 = vmatpush1.msra.mxu0 0.0
    %1360 = vmatprep.subr.mxu0 0.0
    %1361 = vmatpush1.msra.mxu0 0.0
    %1362 = vmatprep.subr.mxu0 0.0
    %1363 = vmatpush1.msra.mxu0 0.0
    %1364 = vmatprep.subr.mxu0 0.0
    %1365 = vmatpush1.msra.mxu0 0.0
    %1366 = vmatprep.subr.mxu0 0.0
    %1367 = vmatpush1.msra.mxu0 0.0
    %1368 = vmatprep.subr.mxu0 0.0
    %1369 = vmatpush1.msra.mxu0 0.0
    %1370 = vmatprep.subr.mxu0 0.0
    %1371 = vmatpush1.msra.mxu0 0.0
    %1372 = vmatprep.subr.mxu0 0.0
    %1373 = vmatpush1.msra.mxu0 0.0
    %1374 = vmatprep.subr.mxu0 0.0
    %1375 = vmatpush1.msra.mxu0 0.0
    %1376 = vmatprep.subr.mxu0 0.0
    %1377 = vmatpush1.msra.mxu0 0.0
    %1378 = vmatprep.subr.mxu0 0.0
    %1379 = vmatpush1.msra.mxu0 0.0
    %1380 = vmatprep.subr.mxu0 0.0
    %1381 = vmatpush1.msra.mxu0 %v54
    %1382 = vmatprep.subr.mxu0 0.0
    %1383 = vmatpush1.msra.mxu0 %v53
    %1384 = vmatprep.subr.mxu0 0.0
    %1385 = vmatpush1.msra.mxu0 %v52
    %1386 = vmatprep.subr.mxu0 0.0
    %1387 = vmatpush1.msra.mxu0 %v51
    %1388 = vmatprep.subr.mxu0 0.0
    %1389 = vmatpush2.msra.mxu0 0.0
    %1390 = vmatprep.subr.mxu0 0.0
    %1391 = vmatpush2.msra.mxu0 0.0
    %1392 = vmatprep.subr.mxu0 0.0
    %1393 = vmatpush2.msra.mxu0 0.0
    %1394 = vmatprep.subr.mxu0 0.0
    %1395 = vmatpush2.msra.mxu0 0.0
    %1396 = vmatprep.subr.mxu0 0.0
    %1397 = vmatpush2.msra.mxu0 0.0
    %1398 = vmatprep.subr.mxu0 0.0
    %1399 = vmatpush2.msra.mxu0 0.0
    %1400 = vmatprep.subr.mxu0 0.0
    %1401 = vmatpush2.msra.mxu0 0.0
    %1402 = vmatprep.subr.mxu0 0.0
    %1403 = vmatpush2.msra.mxu0 0.0
    %1404 = vmatprep.subr.mxu0 0.0
    %1405 = vmatpush2.msra.mxu0 0.0
    %1406 = vmatprep.subr.mxu0 0.0
    %1407 = vmatpush2.msra.mxu0 0.0
    %1408 = vmatprep.subr.mxu0 0.0
    %1409 = vmatpush2.msra.mxu0 0.0
    %1410 = vmatprep.subr.mxu0 0.0
    %1411 = vmatpush2.msra.mxu0 0.0
    %1412 = vmatprep.subr.mxu0 0.0
    %1413 = vmatpush2.msra.mxu0 0.0
    %1414 = vmatprep.subr.mxu0 0.0
    %1415 = vmatpush2.msra.mxu0 0.0
    %1416 = vmatprep.subr.mxu0 0.0
    %1417 = vmatpush2.msra.mxu0 0.0
    %1418 = vmatprep.subr.mxu0 0.0
    %1419 = vmatpush2.msra.mxu0 0.0
    %1420 = vmatprep.mubr.f32.mxu0 0.0
    %1421 = vmatmul.mubr.f32.gmra.mxu0 %v1354
    %v1422 = vpop.f32.mrf.mxu0
    %v1423 = vadd.f32 %v1348, %v1422
    %v1424 = vpop.f32.mrf.mxu0
    %1425 = vdwg.mxu0
    %v1426 = vadd.f32 %v1423, %v389
    %v1427 = vxor.u32 %v1426, 2147483648
    %v1428 = vmul.f32 %v1427, 1.442695
    %v1429 = vpow.pop %v1428
    %v1430 = vadd.f32 %v1429, 1.0
    %v1431 = vrcp.pop %v1430
    %v1432 = vmul.f32 1.0, %v1431
    %v1433 = vtanh.pop %v1426
    %v1434 = vmul.f32 %v1432, %v1099
    %1436 = vrot.lane.b32.xlu0 %v1433, 64
    %v1437 = vpop.permute.xlu0 %1436
    %v1439 = vmul.f32 %v1432, %v1437
    %1441 = vrot.lane.b32.xlu0 %v1439, 32
    %v1442 = vpop.permute.xlu0 %1441
    %v1444 = vadd.f32 %v1434, %v1442
    %v1445 = vtanh.pop %v1444
    %1447 = vrot.lane.b32.xlu0 %v1445, 64
    %v1448 = vpop.permute.xlu0 %1447
    %v1450 = vmul.f32 %v1432, %v1448
    %s1451 = scalar_lea.vmem %s0, 8
    %v1452 = vld [vmem:[%s1451] sm:$0x3]
    %1453 = vmatprep.subr.mxu0 0.0
    %1454 = vmatpush1.msra.mxu0 0.0
    %1455 = vmatprep.subr.mxu0 0.0
    %1456 = vmatpush1.msra.mxu0 0.0
    %1457 = vmatprep.subr.mxu0 0.0
    %1458 = vmatpush1.msra.mxu0 0.0
    %1459 = vmatprep.subr.mxu0 0.0
    %1460 = vmatpush1.msra.mxu0 0.0
    %1461 = vmatprep.subr.mxu0 0.0
    %1462 = vmatpush1.msra.mxu0 0.0
    %1463 = vmatprep.subr.mxu0 0.0
    %1464 = vmatpush1.msra.mxu0 0.0
    %1465 = vmatprep.subr.mxu0 0.0
    %1466 = vmatpush1.msra.mxu0 0.0
    %1467 = vmatprep.subr.mxu0 0.0
    %1468 = vmatpush1.msra.mxu0 0.0
    %1469 = vmatprep.subr.mxu0 0.0
    %1470 = vmatpush1.msra.mxu0 0.0
    %1471 = vmatprep.subr.mxu0 0.0
    %1472 = vmatpush1.msra.mxu0 0.0
    %1473 = vmatprep.subr.mxu0 0.0
    %1474 = vmatpush1.msra.mxu0 0.0
    %1475 = vmatprep.subr.mxu0 0.0
    %1476 = vmatpush1.msra.mxu0 0.0
    %1477 = vmatprep.subr.mxu0 0.0
    %1478 = vmatpush1.msra.mxu0 %v49
    %1479 = vmatprep.subr.mxu0 0.0
    %1480 = vmatpush1.msra.mxu0 %v48
    %1481 = vmatprep.subr.mxu0 0.0
    %1482 = vmatpush1.msra.mxu0 %v47
    %1483 = vmatprep.subr.mxu0 0.0
    %1484 = vmatpush1.msra.mxu0 %v46
    %1485 = vmatprep.subr.mxu0 0.0
    %1486 = vmatpush2.msra.mxu0 0.0
    %1487 = vmatprep.subr.mxu0 0.0
    %1488 = vmatpush2.msra.mxu0 0.0
    %1489 = vmatprep.subr.mxu0 0.0
    %1490 = vmatpush2.msra.mxu0 0.0
    %1491 = vmatprep.subr.mxu0 0.0
    %1492 = vmatpush2.msra.mxu0 0.0
    %1493 = vmatprep.subr.mxu0 0.0
    %1494 = vmatpush2.msra.mxu0 0.0
    %1495 = vmatprep.subr.mxu0 0.0
    %1496 = vmatpush2.msra.mxu0 0.0
    %1497 = vmatprep.subr.mxu0 0.0
    %1498 = vmatpush2.msra.mxu0 0.0
    %1499 = vmatprep.subr.mxu0 0.0
    %1500 = vmatpush2.msra.mxu0 0.0
    %1501 = vmatprep.subr.mxu0 0.0
    %1502 = vmatpush2.msra.mxu0 0.0
    %1503 = vmatprep.subr.mxu0 0.0
    %1504 = vmatpush2.msra.mxu0 0.0
    %1505 = vmatprep.subr.mxu0 0.0
    %1506 = vmatpush2.msra.mxu0 0.0
    %1507 = vmatprep.subr.mxu0 0.0
    %1508 = vmatpush2.msra.mxu0 0.0
    %1509 = vmatprep.subr.mxu0 0.0
    %1510 = vmatpush2.msra.mxu0 0.0
    %1511 = vmatprep.subr.mxu0 0.0
    %1512 = vmatpush2.msra.mxu0 0.0
    %1513 = vmatprep.subr.mxu0 0.0
    %1514 = vmatpush2.msra.mxu0 0.0
    %1515 = vmatprep.subr.mxu0 0.0
    %1516 = vmatpush2.msra.mxu0 0.0
    %1517 = vmatprep.mubr.f32.mxu0 0.0
    %1518 = vmatmul.mubr.f32.gmra.mxu0 %v1354
    %v1519 = vpop.f32.mrf.mxu0
    %v1520 = vadd.f32 0.0, %v1519
    %v1521 = vpop.f32.mrf.mxu0
    %1522 = vdwg.mxu0
    %v1524 = vsel %vm135, %v1452, 0
    %1526 = vmatprep.subr.mxu0 0.0
    %1527 = vmatpush1.msra.mxu0 0.0
    %1528 = vmatprep.subr.mxu0 0.0
    %1529 = vmatpush1.msra.mxu0 0.0
    %1530 = vmatprep.subr.mxu0 0.0
    %1531 = vmatpush1.msra.mxu0 0.0
    %1532 = vmatprep.subr.mxu0 0.0
    %1533 = vmatpush1.msra.mxu0 0.0
    %1534 = vmatprep.subr.mxu0 0.0
    %1535 = vmatpush1.msra.mxu0 0.0
    %1536 = vmatprep.subr.mxu0 0.0
    %1537 = vmatpush1.msra.mxu0 0.0
    %1538 = vmatprep.subr.mxu0 0.0
    %1539 = vmatpush1.msra.mxu0 0.0
    %1540 = vmatprep.subr.mxu0 0.0
    %1541 = vmatpush1.msra.mxu0 0.0
    %1542 = vmatprep.subr.mxu0 0.0
    %1543 = vmatpush1.msra.mxu0 0.0
    %1544 = vmatprep.subr.mxu0 0.0
    %1545 = vmatpush1.msra.mxu0 0.0
    %1546 = vmatprep.subr.mxu0 0.0
    %1547 = vmatpush1.msra.mxu0 0.0
    %1548 = vmatprep.subr.mxu0 0.0
    %1549 = vmatpush1.msra.mxu0 0.0
    %1550 = vmatprep.subr.mxu0 0.0
    %1551 = vmatpush1.msra.mxu0 0.0
    %1552 = vmatprep.subr.mxu0 0.0
    %1553 = vmatpush1.msra.mxu0 0.0
    %1554 = vmatprep.subr.mxu0 0.0
    %1555 = vmatpush1.msra.mxu0 0.0
    %1556 = vmatprep.subr.mxu0 0.0
    %1557 = vmatpush1.msra.mxu0 %v45
    %1558 = vmatprep.subr.mxu0 0.0
    %1559 = vmatpush2.msra.mxu0 0.0
    %1560 = vmatprep.subr.mxu0 0.0
    %1561 = vmatpush2.msra.mxu0 0.0
    %1562 = vmatprep.subr.mxu0 0.0
    %1563 = vmatpush2.msra.mxu0 0.0
    %1564 = vmatprep.subr.mxu0 0.0
    %1565 = vmatpush2.msra.mxu0 0.0
    %1566 = vmatprep.subr.mxu0 0.0
    %1567 = vmatpush2.msra.mxu0 0.0
    %1568 = vmatprep.subr.mxu0 0.0
    %1569 = vmatpush2.msra.mxu0 0.0
    %1570 = vmatprep.subr.mxu0 0.0
    %1571 = vmatpush2.msra.mxu0 0.0
    %1572 = vmatprep.subr.mxu0 0.0
    %1573 = vmatpush2.msra.mxu0 0.0
    %1574 = vmatprep.subr.mxu0 0.0
    %1575 = vmatpush2.msra.mxu0 0.0
    %1576 = vmatprep.subr.mxu0 0.0
    %1577 = vmatpush2.msra.mxu0 0.0
    %1578 = vmatprep.subr.mxu0 0.0
    %1579 = vmatpush2.msra.mxu0 0.0
    %1580 = vmatprep.subr.mxu0 0.0
    %1581 = vmatpush2.msra.mxu0 0.0
    %1582 = vmatprep.subr.mxu0 0.0
    %1583 = vmatpush2.msra.mxu0 0.0
    %1584 = vmatprep.subr.mxu0 0.0
    %1585 = vmatpush2.msra.mxu0 0.0
    %1586 = vmatprep.subr.mxu0 0.0
    %1587 = vmatpush2.msra.mxu0 0.0
    %1588 = vmatprep.subr.mxu0 0.0
    %1589 = vmatpush2.msra.mxu0 0.0
    %1590 = vmatprep.mubr.f32.mxu0 0.0
    %1591 = vmatmul.mubr.f32.gmra.mxu0 %v1524
    %v1592 = vpop.f32.mrf.mxu0
    %v1593 = vadd.f32 %v1520, %v1592
    %v1594 = vpop.f32.mrf.mxu0
    %1595 = vdwg.mxu0
    %v1596 = vadd.f32 %v1593, %v213
    %v1597 = vxor.u32 %v1596, 2147483648
    %v1598 = vmul.f32 %v1597, 1.442695
    %v1599 = vpow.pop %v1598
    %v1600 = vadd.f32 %v1599, 1.0
    %v1601 = vrcp.pop %v1600
    %v1602 = vmul.f32 1.0, %v1601
    %v1603 = vtanh.pop %v1596
    %v1604 = vmul.f32 %v1602, %v1269
    %1606 = vrot.lane.b32.xlu0 %v1603, 64
    %v1607 = vpop.permute.xlu0 %1606
    %v1609 = vmul.f32 %v1602, %v1607
    %1611 = vrot.lane.b32.xlu0 %v1609, 32
    %v1612 = vpop.permute.xlu0 %1611
    %v1614 = vadd.f32 %v1604, %v1612
    %v1615 = vtanh.pop %v1614
    %1617 = vrot.lane.b32.xlu0 %v1615, 64
    %v1618 = vpop.permute.xlu0 %1617
    %v1620 = vmul.f32 %v1602, %v1618
    %1622 = vrot.lane.b32.xlu0 %v1450, 32
    %v1623 = vpop.permute.xlu0 %1622
    %v1624 = vsel %vm61, %v1623, 0
    %1626 = vmatprep.subr.mxu0 0.0
    %1627 = vmatpush1.msra.mxu0 0.0
    %1628 = vmatprep.subr.mxu0 0.0
    %1629 = vmatpush1.msra.mxu0 0.0
    %1630 = vmatprep.subr.mxu0 0.0
    %1631 = vmatpush1.msra.mxu0 0.0
    %1632 = vmatprep.subr.mxu0 0.0
    %1633 = vmatpush1.msra.mxu0 0.0
    %1634 = vmatprep.subr.mxu0 0.0
    %1635 = vmatpush1.msra.mxu0 0.0
    %1636 = vmatprep.subr.mxu0 0.0
    %1637 = vmatpush1.msra.mxu0 0.0
    %1638 = vmatprep.subr.mxu0 0.0
    %1639 = vmatpush1.msra.mxu0 0.0
    %1640 = vmatprep.subr.mxu0 0.0
    %1641 = vmatpush1.msra.mxu0 0.0
    %1642 = vmatprep.subr.mxu0 0.0
    %1643 = vmatpush1.msra.mxu0 0.0
    %1644 = vmatprep.subr.mxu0 0.0
    %1645 = vmatpush1.msra.mxu0 0.0
    %1646 = vmatprep.subr.mxu0 0.0
    %1647 = vmatpush1.msra.mxu0 0.0
    %1648 = vmatprep.subr.mxu0 0.0
    %1649 = vmatpush1.msra.mxu0 0.0
    %1650 = vmatprep.subr.mxu0 0.0
    %1651 = vmatpush1.msra.mxu0 %v58
    %1652 = vmatprep.subr.mxu0 0.0
    %1653 = vmatpush1.msra.mxu0 %v57
    %1654 = vmatprep.subr.mxu0 0.0
    %1655 = vmatpush1.msra.mxu0 %v56
    %1656 = vmatprep.subr.mxu0 0.0
    %1657 = vmatpush1.msra.mxu0 %v55
    %1658 = vmatprep.subr.mxu0 0.0
    %1659 = vmatpush2.msra.mxu0 0.0
    %1660 = vmatprep.subr.mxu0 0.0
    %1661 = vmatpush2.msra.mxu0 0.0
    %1662 = vmatprep.subr.mxu0 0.0
    %1663 = vmatpush2.msra.mxu0 0.0
    %1664 = vmatprep.subr.mxu0 0.0
    %1665 = vmatpush2.msra.mxu0 0.0
    %1666 = vmatprep.subr.mxu0 0.0
    %1667 = vmatpush2.msra.mxu0 0.0
    %1668 = vmatprep.subr.mxu0 0.0
    %1669 = vmatpush2.msra.mxu0 0.0
    %1670 = vmatprep.subr.mxu0 0.0
    %1671 = vmatpush2.msra.mxu0 0.0
    %1672 = vmatprep.subr.mxu0 0.0
    %1673 = vmatpush2.msra.mxu0 0.0
    %1674 = vmatprep.subr.mxu0 0.0
    %1675 = vmatpush2.msra.mxu0 0.0
    %1676 = vmatprep.subr.mxu0 0.0
    %1677 = vmatpush2.msra.mxu0 0.0
    %1678 = vmatprep.subr.mxu0 0.0
    %1679 = vmatpush2.msra.mxu0 0.0
    %1680 = vmatprep.subr.mxu0 0.0
    %1681 = vmatpush2.msra.mxu0 0.0
    %1682 = vmatprep.subr.mxu0 0.0
    %1683 = vmatpush2.msra.mxu0 0.0
    %1684 = vmatprep.subr.mxu0 0.0
    %1685 = vmatpush2.msra.mxu0 0.0
    %1686 = vmatprep.subr.mxu0 0.0
    %1687 = vmatpush2.msra.mxu0 0.0
    %1688 = vmatprep.subr.mxu0 0.0
    %1689 = vmatpush2.msra.mxu0 0.0
    %1690 = vmatprep.mubr.f32.mxu0 0.0
    %1691 = vmatmul.mubr.f32.gmra.mxu0 %v1624
    %v1692 = vpop.f32.mrf.mxu0
    %v1693 = vadd.f32 0.0, %v1692
    %v1694 = vpop.f32.mrf.mxu0
    %1695 = vdwg.mxu0
    %1697 = vrot.lane.b32.xlu0 %v1620, 32
    %v1698 = vpop.permute.xlu0 %1697
    %v1699 = vsel %vm61, %v1698, 0
    %1701 = vmatprep.subr.mxu0 0.0
    %1702 = vmatpush1.msra.mxu0 0.0
    %1703 = vmatprep.subr.mxu0 0.0
    %1704 = vmatpush1.msra.mxu0 0.0
    %1705 = vmatprep.subr.mxu0 0.0
    %1706 = vmatpush1.msra.mxu0 0.0
    %1707 = vmatprep.subr.mxu0 0.0
    %1708 = vmatpush1.msra.mxu0 0.0
    %1709 = vmatprep.subr.mxu0 0.0
    %1710 = vmatpush1.msra.mxu0 0.0
    %1711 = vmatprep.subr.mxu0 0.0
    %1712 = vmatpush1.msra.mxu0 0.0
    %1713 = vmatprep.subr.mxu0 0.0
    %1714 = vmatpush1.msra.mxu0 0.0
    %1715 = vmatprep.subr.mxu0 0.0
    %1716 = vmatpush1.msra.mxu0 0.0
    %1717 = vmatprep.subr.mxu0 0.0
    %1718 = vmatpush1.msra.mxu0 0.0
    %1719 = vmatprep.subr.mxu0 0.0
    %1720 = vmatpush1.msra.mxu0 0.0
    %1721 = vmatprep.subr.mxu0 0.0
    %1722 = vmatpush1.msra.mxu0 0.0
    %1723 = vmatprep.subr.mxu0 0.0
    %1724 = vmatpush1.msra.mxu0 0.0
    %1725 = vmatprep.subr.mxu0 0.0
    %1726 = vmatpush1.msra.mxu0 %v54
    %1727 = vmatprep.subr.mxu0 0.0
    %1728 = vmatpush1.msra.mxu0 %v53
    %1729 = vmatprep.subr.mxu0 0.0
    %1730 = vmatpush1.msra.mxu0 %v52
    %1731 = vmatprep.subr.mxu0 0.0
    %1732 = vmatpush1.msra.mxu0 %v51
    %1733 = vmatprep.subr.mxu0 0.0
    %1734 = vmatpush2.msra.mxu0 0.0
    %1735 = vmatprep.subr.mxu0 0.0
    %1736 = vmatpush2.msra.mxu0 0.0
    %1737 = vmatprep.subr.mxu0 0.0
    %1738 = vmatpush2.msra.mxu0 0.0
    %1739 = vmatprep.subr.mxu0 0.0
    %1740 = vmatpush2.msra.mxu0 0.0
    %1741 = vmatprep.subr.mxu0 0.0
    %1742 = vmatpush2.msra.mxu0 0.0
    %1743 = vmatprep.subr.mxu0 0.0
    %1744 = vmatpush2.msra.mxu0 0.0
    %1745 = vmatprep.subr.mxu0 0.0
    %1746 = vmatpush2.msra.mxu0 0.0
    %1747 = vmatprep.subr.mxu0 0.0
    %1748 = vmatpush2.msra.mxu0 0.0
    %1749 = vmatprep.subr.mxu0 0.0
    %1750 = vmatpush2.msra.mxu0 0.0
    %1751 = vmatprep.subr.mxu0 0.0
    %1752 = vmatpush2.msra.mxu0 0.0
    %1753 = vmatprep.subr.mxu0 0.0
    %1754 = vmatpush2.msra.mxu0 0.0
    %1755 = vmatprep.subr.mxu0 0.0
    %1756 = vmatpush2.msra.mxu0 0.0
    %1757 = vmatprep.subr.mxu0 0.0
    %1758 = vmatpush2.msra.mxu0 0.0
    %1759 = vmatprep.subr.mxu0 0.0
    %1760 = vmatpush2.msra.mxu0 0.0
    %1761 = vmatprep.subr.mxu0 0.0
    %1762 = vmatpush2.msra.mxu0 0.0
    %1763 = vmatprep.subr.mxu0 0.0
    %1764 = vmatpush2.msra.mxu0 0.0
    %1765 = vmatprep.mubr.f32.mxu0 0.0
    %1766 = vmatmul.mubr.f32.gmra.mxu0 %v1699
    %v1767 = vpop.f32.mrf.mxu0
    %v1768 = vadd.f32 %v1693, %v1767
    %v1769 = vpop.f32.mrf.mxu0
    %1770 = vdwg.mxu0
    %v1771 = vadd.f32 %v1768, %v389
    %v1772 = vxor.u32 %v1771, 2147483648
    %v1773 = vmul.f32 %v1772, 1.442695
    %v1774 = vpow.pop %v1773
    %v1775 = vadd.f32 %v1774, 1.0
    %v1776 = vrcp.pop %v1775
    %v1777 = vmul.f32 1.0, %v1776
    %v1778 = vtanh.pop %v1771
    %v1779 = vmul.f32 %v1777, %v1444
    %1781 = vrot.lane.b32.xlu0 %v1778, 64
    %v1782 = vpop.permute.xlu0 %1781
    %v1784 = vmul.f32 %v1777, %v1782
    %1786 = vrot.lane.b32.xlu0 %v1784, 32
    %v1787 = vpop.permute.xlu0 %1786
    %v1789 = vadd.f32 %v1779, %v1787
    %v1790 = vtanh.pop %v1789
    %1792 = vrot.lane.b32.xlu0 %v1790, 64
    %v1793 = vpop.permute.xlu0 %1792
    %v1795 = vmul.f32 %v1777, %v1793
    %s1796 = scalar_lea.vmem %s0, 10
    %v1797 = vld [vmem:[%s1796] sm:$0x3]
    %1798 = vmatprep.subr.mxu0 0.0
    %1799 = vmatpush1.msra.mxu0 0.0
    %1800 = vmatprep.subr.mxu0 0.0
    %1801 = vmatpush1.msra.mxu0 0.0
    %1802 = vmatprep.subr.mxu0 0.0
    %1803 = vmatpush1.msra.mxu0 0.0
    %1804 = vmatprep.subr.mxu0 0.0
    %1805 = vmatpush1.msra.mxu0 0.0
    %1806 = vmatprep.subr.mxu0 0.0
    %1807 = vmatpush1.msra.mxu0 0.0
    %1808 = vmatprep.subr.mxu0 0.0
    %1809 = vmatpush1.msra.mxu0 0.0
    %1810 = vmatprep.subr.mxu0 0.0
    %1811 = vmatpush1.msra.mxu0 0.0
    %1812 = vmatprep.subr.mxu0 0.0
    %1813 = vmatpush1.msra.mxu0 0.0
    %1814 = vmatprep.subr.mxu0 0.0
    %1815 = vmatpush1.msra.mxu0 0.0
    %1816 = vmatprep.subr.mxu0 0.0
    %1817 = vmatpush1.msra.mxu0 0.0
    %1818 = vmatprep.subr.mxu0 0.0
    %1819 = vmatpush1.msra.mxu0 0.0
    %1820 = vmatprep.subr.mxu0 0.0
    %1821 = vmatpush1.msra.mxu0 0.0
    %1822 = vmatprep.subr.mxu0 0.0
    %1823 = vmatpush1.msra.mxu0 %v49
    %1824 = vmatprep.subr.mxu0 0.0
    %1825 = vmatpush1.msra.mxu0 %v48
    %1826 = vmatprep.subr.mxu0 0.0
    %1827 = vmatpush1.msra.mxu0 %v47
    %1828 = vmatprep.subr.mxu0 0.0
    %1829 = vmatpush1.msra.mxu0 %v46
    %1830 = vmatprep.subr.mxu0 0.0
    %1831 = vmatpush2.msra.mxu0 0.0
    %1832 = vmatprep.subr.mxu0 0.0
    %1833 = vmatpush2.msra.mxu0 0.0
    %1834 = vmatprep.subr.mxu0 0.0
    %1835 = vmatpush2.msra.mxu0 0.0
    %1836 = vmatprep.subr.mxu0 0.0
    %1837 = vmatpush2.msra.mxu0 0.0
    %1838 = vmatprep.subr.mxu0 0.0
    %1839 = vmatpush2.msra.mxu0 0.0
    %1840 = vmatprep.subr.mxu0 0.0
    %1841 = vmatpush2.msra.mxu0 0.0
    %1842 = vmatprep.subr.mxu0 0.0
    %1843 = vmatpush2.msra.mxu0 0.0
    %1844 = vmatprep.subr.mxu0 0.0
    %1845 = vmatpush2.msra.mxu0 0.0
    %1846 = vmatprep.subr.mxu0 0.0
    %1847 = vmatpush2.msra.mxu0 0.0
    %1848 = vmatprep.subr.mxu0 0.0
    %1849 = vmatpush2.msra.mxu0 0.0
    %1850 = vmatprep.subr.mxu0 0.0
    %1851 = vmatpush2.msra.mxu0 0.0
    %1852 = vmatprep.subr.mxu0 0.0
    %1853 = vmatpush2.msra.mxu0 0.0
    %1854 = vmatprep.subr.mxu0 0.0
    %1855 = vmatpush2.msra.mxu0 0.0
    %1856 = vmatprep.subr.mxu0 0.0
    %1857 = vmatpush2.msra.mxu0 0.0
    %1858 = vmatprep.subr.mxu0 0.0
    %1859 = vmatpush2.msra.mxu0 0.0
    %1860 = vmatprep.subr.mxu0 0.0
    %1861 = vmatpush2.msra.mxu0 0.0
    %1862 = vmatprep.mubr.f32.mxu0 0.0
    %1863 = vmatmul.mubr.f32.gmra.mxu0 %v1699
    %v1864 = vpop.f32.mrf.mxu0
    %v1865 = vadd.f32 0.0, %v1864
    %v1866 = vpop.f32.mrf.mxu0
    %1867 = vdwg.mxu0
    %v1869 = vsel %vm135, %v1797, 0
    %1871 = vmatprep.subr.mxu0 0.0
    %1872 = vmatpush1.msra.mxu0 0.0
    %1873 = vmatprep.subr.mxu0 0.0
    %1874 = vmatpush1.msra.mxu0 0.0
    %1875 = vmatprep.subr.mxu0 0.0
    %1876 = vmatpush1.msra.mxu0 0.0
    %1877 = vmatprep.subr.mxu0 0.0
    %1878 = vmatpush1.msra.mxu0 0.0
    %1879 = vmatprep.subr.mxu0 0.0
    %1880 = vmatpush1.msra.mxu0 0.0
    %1881 = vmatprep.subr.mxu0 0.0
    %1882 = vmatpush1.msra.mxu0 0.0
    %1883 = vmatprep.subr.mxu0 0.0
    %1884 = vmatpush1.msra.mxu0 0.0
    %1885 = vmatprep.subr.mxu0 0.0
    %1886 = vmatpush1.msra.mxu0 0.0
    %1887 = vmatprep.subr.mxu0 0.0
    %1888 = vmatpush1.msra.mxu0 0.0
    %1889 = vmatprep.subr.mxu0 0.0
    %1890 = vmatpush1.msra.mxu0 0.0
    %1891 = vmatprep.subr.mxu0 0.0
    %1892 = vmatpush1.msra.mxu0 0.0
    %1893 = vmatprep.subr.mxu0 0.0
    %1894 = vmatpush1.msra.mxu0 0.0
    %1895 = vmatprep.subr.mxu0 0.0
    %1896 = vmatpush1.msra.mxu0 0.0
    %1897 = vmatprep.subr.mxu0 0.0
    %1898 = vmatpush1.msra.mxu0 0.0
    %1899 = vmatprep.subr.mxu0 0.0
    %1900 = vmatpush1.msra.mxu0 0.0
    %1901 = vmatprep.subr.mxu0 0.0
    %1902 = vmatpush1.msra.mxu0 %v45
    %1903 = vmatprep.subr.mxu0 0.0
    %1904 = vmatpush2.msra.mxu0 0.0
    %1905 = vmatprep.subr.mxu0 0.0
    %1906 = vmatpush2.msra.mxu0 0.0
    %1907 = vmatprep.subr.mxu0 0.0
    %1908 = vmatpush2.msra.mxu0 0.0
    %1909 = vmatprep.subr.mxu0 0.0
    %1910 = vmatpush2.msra.mxu0 0.0
    %1911 = vmatprep.subr.mxu0 0.0
    %1912 = vmatpush2.msra.mxu0 0.0
    %1913 = vmatprep.subr.mxu0 0.0
    %1914 = vmatpush2.msra.mxu0 0.0
    %1915 = vmatprep.subr.mxu0 0.0
    %1916 = vmatpush2.msra.mxu0 0.0
    %1917 = vmatprep.subr.mxu0 0.0
    %1918 = vmatpush2.msra.mxu0 0.0
    %1919 = vmatprep.subr.mxu0 0.0
    %1920 = vmatpush2.msra.mxu0 0.0
    %1921 = vmatprep.subr.mxu0 0.0
    %1922 = vmatpush2.msra.mxu0 0.0
    %1923 = vmatprep.subr.mxu0 0.0
    %1924 = vmatpush2.msra.mxu0 0.0
    %1925 = vmatprep.subr.mxu0 0.0
    %1926 = vmatpush2.msra.mxu0 0.0
    %1927 = vmatprep.subr.mxu0 0.0
    %1928 = vmatpush2.msra.mxu0 0.0
    %1929 = vmatprep.subr.mxu0 0.0
    %1930 = vmatpush2.msra.mxu0 0.0
    %1931 = vmatprep.subr.mxu0 0.0
    %1932 = vmatpush2.msra.mxu0 0.0
    %1933 = vmatprep.subr.mxu0 0.0
    %1934 = vmatpush2.msra.mxu0 0.0
    %1935 = vmatprep.mubr.f32.mxu0 0.0
    %1936 = vmatmul.mubr.f32.gmra.mxu0 %v1869
    %v1937 = vpop.f32.mrf.mxu0
    %v1938 = vadd.f32 %v1865, %v1937
    %v1939 = vpop.f32.mrf.mxu0
    %1940 = vdwg.mxu0
    %v1941 = vadd.f32 %v1938, %v213
    %v1942 = vxor.u32 %v1941, 2147483648
    %v1943 = vmul.f32 %v1942, 1.442695
    %v1944 = vpow.pop %v1943
    %v1945 = vadd.f32 %v1944, 1.0
    %v1946 = vrcp.pop %v1945
    %v1947 = vmul.f32 1.0, %v1946
    %v1948 = vtanh.pop %v1941
    %v1949 = vmul.f32 %v1947, %v1614
    %1951 = vrot.lane.b32.xlu0 %v1948, 64
    %v1952 = vpop.permute.xlu0 %1951
    %v1954 = vmul.f32 %v1947, %v1952
    %1956 = vrot.lane.b32.xlu0 %v1954, 32
    %v1957 = vpop.permute.xlu0 %1956
    %v1959 = vadd.f32 %v1949, %v1957
    %v1960 = vtanh.pop %v1959
    %1962 = vrot.lane.b32.xlu0 %v1960, 64
    %v1963 = vpop.permute.xlu0 %1962
    %v1965 = vmul.f32 %v1947, %v1963
    %1967 = vrot.lane.b32.xlu0 %v1795, 32
    %v1968 = vpop.permute.xlu0 %1967
    %v1969 = vsel %vm61, %v1968, 0
    %1971 = vmatprep.subr.mxu0 0.0
    %1972 = vmatpush1.msra.mxu0 0.0
    %1973 = vmatprep.subr.mxu0 0.0
    %1974 = vmatpush1.msra.mxu0 0.0
    %1975 = vmatprep.subr.mxu0 0.0
    %1976 = vmatpush1.msra.mxu0 0.0
    %1977 = vmatprep.subr.mxu0 0.0
    %1978 = vmatpush1.msra.mxu0 0.0
    %1979 = vmatprep.subr.mxu0 0.0
    %1980 = vmatpush1.msra.mxu0 0.0
    %1981 = vmatprep.subr.mxu0 0.0
    %1982 = vmatpush1.msra.mxu0 0.0
    %1983 = vmatprep.subr.mxu0 0.0
    %1984 = vmatpush1.msra.mxu0 0.0
    %1985 = vmatprep.subr.mxu0 0.0
    %1986 = vmatpush1.msra.mxu0 0.0
    %1987 = vmatprep.subr.mxu0 0.0
    %1988 = vmatpush1.msra.mxu0 0.0
    %1989 = vmatprep.subr.mxu0 0.0
    %1990 = vmatpush1.msra.mxu0 0.0
    %1991 = vmatprep.subr.mxu0 0.0
    %1992 = vmatpush1.msra.mxu0 0.0
    %1993 = vmatprep.subr.mxu0 0.0
    %1994 = vmatpush1.msra.mxu0 0.0
    %1995 = vmatprep.subr.mxu0 0.0
    %1996 = vmatpush1.msra.mxu0 %v58
    %1997 = vmatprep.subr.mxu0 0.0
    %1998 = vmatpush1.msra.mxu0 %v57
    %1999 = vmatprep.subr.mxu0 0.0
    %2000 = vmatpush1.msra.mxu0 %v56
    %2001 = vmatprep.subr.mxu0 0.0
    %2002 = vmatpush1.msra.mxu0 %v55
    %2003 = vmatprep.subr.mxu0 0.0
    %2004 = vmatpush2.msra.mxu0 0.0
    %2005 = vmatprep.subr.mxu0 0.0
    %2006 = vmatpush2.msra.mxu0 0.0
    %2007 = vmatprep.subr.mxu0 0.0
    %2008 = vmatpush2.msra.mxu0 0.0
    %2009 = vmatprep.subr.mxu0 0.0
    %2010 = vmatpush2.msra.mxu0 0.0
    %2011 = vmatprep.subr.mxu0 0.0
    %2012 = vmatpush2.msra.mxu0 0.0
    %2013 = vmatprep.subr.mxu0 0.0
    %2014 = vmatpush2.msra.mxu0 0.0
    %2015 = vmatprep.subr.mxu0 0.0
    %2016 = vmatpush2.msra.mxu0 0.0
    %2017 = vmatprep.subr.mxu0 0.0
    %2018 = vmatpush2.msra.mxu0 0.0
    %2019 = vmatprep.subr.mxu0 0.0
    %2020 = vmatpush2.msra.mxu0 0.0
    %2021 = vmatprep.subr.mxu0 0.0
    %2022 = vmatpush2.msra.mxu0 0.0
    %2023 = vmatprep.subr.mxu0 0.0
    %2024 = vmatpush2.msra.mxu0 0.0
    %2025 = vmatprep.subr.mxu0 0.0
    %2026 = vmatpush2.msra.mxu0 0.0
    %2027 = vmatprep.subr.mxu0 0.0
    %2028 = vmatpush2.msra.mxu0 0.0
    %2029 = vmatprep.subr.mxu0 0.0
    %2030 = vmatpush2.msra.mxu0 0.0
    %2031 = vmatprep.subr.mxu0 0.0
    %2032 = vmatpush2.msra.mxu0 0.0
    %2033 = vmatprep.subr.mxu0 0.0
    %2034 = vmatpush2.msra.mxu0 0.0
    %2035 = vmatprep.mubr.f32.mxu0 0.0
    %2036 = vmatmul.mubr.f32.gmra.mxu0 %v1969
    %v2037 = vpop.f32.mrf.mxu0
    %v2038 = vadd.f32 0.0, %v2037
    %v2039 = vpop.f32.mrf.mxu0
    %2040 = vdwg.mxu0
    %2042 = vrot.lane.b32.xlu0 %v1965, 32
    %v2043 = vpop.permute.xlu0 %2042
    %v2044 = vsel %vm61, %v2043, 0
    %2046 = vmatprep.subr.mxu0 0.0
    %2047 = vmatpush1.msra.mxu0 0.0
    %2048 = vmatprep.subr.mxu0 0.0
    %2049 = vmatpush1.msra.mxu0 0.0
    %2050 = vmatprep.subr.mxu0 0.0
    %2051 = vmatpush1.msra.mxu0 0.0
    %2052 = vmatprep.subr.mxu0 0.0
    %2053 = vmatpush1.msra.mxu0 0.0
    %2054 = vmatprep.subr.mxu0 0.0
    %2055 = vmatpush1.msra.mxu0 0.0
    %2056 = vmatprep.subr.mxu0 0.0
    %2057 = vmatpush1.msra.mxu0 0.0
    %2058 = vmatprep.subr.mxu0 0.0
    %2059 = vmatpush1.msra.mxu0 0.0
    %2060 = vmatprep.subr.mxu0 0.0
    %2061 = vmatpush1.msra.mxu0 0.0
    %2062 = vmatprep.subr.mxu0 0.0
    %2063 = vmatpush1.msra.mxu0 0.0
    %2064 = vmatprep.subr.mxu0 0.0
    %2065 = vmatpush1.msra.mxu0 0.0
    %2066 = vmatprep.subr.mxu0 0.0
    %2067 = vmatpush1.msra.mxu0 0.0
    %2068 = vmatprep.subr.mxu0 0.0
    %2069 = vmatpush1.msra.mxu0 0.0
    %2070 = vmatprep.subr.mxu0 0.0
    %2071 = vmatpush1.msra.mxu0 %v54
    %2072 = vmatprep.subr.mxu0 0.0
    %2073 = vmatpush1.msra.mxu0 %v53
    %2074 = vmatprep.subr.mxu0 0.0
    %2075 = vmatpush1.msra.mxu0 %v52
    %2076 = vmatprep.subr.mxu0 0.0
    %2077 = vmatpush1.msra.mxu0 %v51
    %2078 = vmatprep.subr.mxu0 0.0
    %2079 = vmatpush2.msra.mxu0 0.0
    %2080 = vmatprep.subr.mxu0 0.0
    %2081 = vmatpush2.msra.mxu0 0.0
    %2082 = vmatprep.subr.mxu0 0.0
    %2083 = vmatpush2.msra.mxu0 0.0
    %2084 = vmatprep.subr.mxu0 0.0
    %2085 = vmatpush2.msra.mxu0 0.0
    %2086 = vmatprep.subr.mxu0 0.0
    %2087 = vmatpush2.msra.mxu0 0.0
    %2088 = vmatprep.subr.mxu0 0.0
    %2089 = vmatpush2.msra.mxu0 0.0
    %2090 = vmatprep.subr.mxu0 0.0
    %2091 = vmatpush2.msra.mxu0 0.0
    %2092 = vmatprep.subr.mxu0 0.0
    %2093 = vmatpush2.msra.mxu0 0.0
    %2094 = vmatprep.subr.mxu0 0.0
    %2095 = vmatpush2.msra.mxu0 0.0
    %2096 = vmatprep.subr.mxu0 0.0
    %2097 = vmatpush2.msra.mxu0 0.0
    %2098 = vmatprep.subr.mxu0 0.0
    %2099 = vmatpush2.msra.mxu0 0.0
    %2100 = vmatprep.subr.mxu0 0.0
    %2101 = vmatpush2.msra.mxu0 0.0
    %2102 = vmatprep.subr.mxu0 0.0
    %2103 = vmatpush2.msra.mxu0 0.0
    %2104 = vmatprep.subr.mxu0 0.0
    %2105 = vmatpush2.msra.mxu0 0.0
    %2106 = vmatprep.subr.mxu0 0.0
    %2107 = vmatpush2.msra.mxu0 0.0
    %2108 = vmatprep.subr.mxu0 0.0
    %2109 = vmatpush2.msra.mxu0 0.0
    %2110 = vmatprep.mubr.f32.mxu0 0.0
    %2111 = vmatmul.mubr.f32.gmra.mxu0 %v2044
    %v2112 = vpop.f32.mrf.mxu0
    %v2113 = vadd.f32 %v2038, %v2112
    %v2114 = vpop.f32.mrf.mxu0
    %2115 = vdwg.mxu0
    %v2116 = vadd.f32 %v2113, %v389
    %v2117 = vxor.u32 %v2116, 2147483648
    %v2118 = vmul.f32 %v2117, 1.442695
    %v2119 = vpow.pop %v2118
    %v2120 = vadd.f32 %v2119, 1.0
    %v2121 = vrcp.pop %v2120
    %v2122 = vmul.f32 1.0, %v2121
    %v2123 = vtanh.pop %v2116
    %v2124 = vmul.f32 %v2122, %v1789
    %2126 = vrot.lane.b32.xlu0 %v2123, 64
    %v2127 = vpop.permute.xlu0 %2126
    %v2129 = vmul.f32 %v2122, %v2127
    %2131 = vrot.lane.b32.xlu0 %v2129, 32
    %v2132 = vpop.permute.xlu0 %2131
    %v2134 = vadd.f32 %v2124, %v2132
    %v2135 = vtanh.pop %v2134
    %2137 = vrot.lane.b32.xlu0 %v2135, 64
    %v2138 = vpop.permute.xlu0 %2137
    %v2140 = vmul.f32 %v2122, %v2138
    %s2141 = scalar_lea.vmem %s0, 12
    %v2142 = vld [vmem:[%s2141] sm:$0x3]
    %2143 = vmatprep.subr.mxu0 0.0
    %2144 = vmatpush1.msra.mxu0 0.0
    %2145 = vmatprep.subr.mxu0 0.0
    %2146 = vmatpush1.msra.mxu0 0.0
    %2147 = vmatprep.subr.mxu0 0.0
    %2148 = vmatpush1.msra.mxu0 0.0
    %2149 = vmatprep.subr.mxu0 0.0
    %2150 = vmatpush1.msra.mxu0 0.0
    %2151 = vmatprep.subr.mxu0 0.0
    %2152 = vmatpush1.msra.mxu0 0.0
    %2153 = vmatprep.subr.mxu0 0.0
    %2154 = vmatpush1.msra.mxu0 0.0
    %2155 = vmatprep.subr.mxu0 0.0
    %2156 = vmatpush1.msra.mxu0 0.0
    %2157 = vmatprep.subr.mxu0 0.0
    %2158 = vmatpush1.msra.mxu0 0.0
    %2159 = vmatprep.subr.mxu0 0.0
    %2160 = vmatpush1.msra.mxu0 0.0
    %2161 = vmatprep.subr.mxu0 0.0
    %2162 = vmatpush1.msra.mxu0 0.0
    %2163 = vmatprep.subr.mxu0 0.0
    %2164 = vmatpush1.msra.mxu0 0.0
    %2165 = vmatprep.subr.mxu0 0.0
    %2166 = vmatpush1.msra.mxu0 0.0
    %2167 = vmatprep.subr.mxu0 0.0
    %2168 = vmatpush1.msra.mxu0 %v49
    %2169 = vmatprep.subr.mxu0 0.0
    %2170 = vmatpush1.msra.mxu0 %v48
    %2171 = vmatprep.subr.mxu0 0.0
    %2172 = vmatpush1.msra.mxu0 %v47
    %2173 = vmatprep.subr.mxu0 0.0
    %2174 = vmatpush1.msra.mxu0 %v46
    %2175 = vmatprep.subr.mxu0 0.0
    %2176 = vmatpush2.msra.mxu0 0.0
    %2177 = vmatprep.subr.mxu0 0.0
    %2178 = vmatpush2.msra.mxu0 0.0
    %2179 = vmatprep.subr.mxu0 0.0
    %2180 = vmatpush2.msra.mxu0 0.0
    %2181 = vmatprep.subr.mxu0 0.0
    %2182 = vmatpush2.msra.mxu0 0.0
    %2183 = vmatprep.subr.mxu0 0.0
    %2184 = vmatpush2.msra.mxu0 0.0
    %2185 = vmatprep.subr.mxu0 0.0
    %2186 = vmatpush2.msra.mxu0 0.0
    %2187 = vmatprep.subr.mxu0 0.0
    %2188 = vmatpush2.msra.mxu0 0.0
    %2189 = vmatprep.subr.mxu0 0.0
    %2190 = vmatpush2.msra.mxu0 0.0
    %2191 = vmatprep.subr.mxu0 0.0
    %2192 = vmatpush2.msra.mxu0 0.0
    %2193 = vmatprep.subr.mxu0 0.0
    %2194 = vmatpush2.msra.mxu0 0.0
    %2195 = vmatprep.subr.mxu0 0.0
    %2196 = vmatpush2.msra.mxu0 0.0
    %2197 = vmatprep.subr.mxu0 0.0
    %2198 = vmatpush2.msra.mxu0 0.0
    %2199 = vmatprep.subr.mxu0 0.0
    %2200 = vmatpush2.msra.mxu0 0.0
    %2201 = vmatprep.subr.mxu0 0.0
    %2202 = vmatpush2.msra.mxu0 0.0
    %2203 = vmatprep.subr.mxu0 0.0
    %2204 = vmatpush2.msra.mxu0 0.0
    %2205 = vmatprep.subr.mxu0 0.0
    %2206 = vmatpush2.msra.mxu0 0.0
    %2207 = vmatprep.mubr.f32.mxu0 0.0
    %2208 = vmatmul.mubr.f32.gmra.mxu0 %v2044
    %v2209 = vpop.f32.mrf.mxu0
    %v2210 = vadd.f32 0.0, %v2209
    %v2211 = vpop.f32.mrf.mxu0
    %2212 = vdwg.mxu0
    %v2214 = vsel %vm135, %v2142, 0
    %2216 = vmatprep.subr.mxu0 0.0
    %2217 = vmatpush1.msra.mxu0 0.0
    %2218 = vmatprep.subr.mxu0 0.0
    %2219 = vmatpush1.msra.mxu0 0.0
    %2220 = vmatprep.subr.mxu0 0.0
    %2221 = vmatpush1.msra.mxu0 0.0
    %2222 = vmatprep.subr.mxu0 0.0
    %2223 = vmatpush1.msra.mxu0 0.0
    %2224 = vmatprep.subr.mxu0 0.0
    %2225 = vmatpush1.msra.mxu0 0.0
    %2226 = vmatprep.subr.mxu0 0.0
    %2227 = vmatpush1.msra.mxu0 0.0
    %2228 = vmatprep.subr.mxu0 0.0
    %2229 = vmatpush1.msra.mxu0 0.0
    %2230 = vmatprep.subr.mxu0 0.0
    %2231 = vmatpush1.msra.mxu0 0.0
    %2232 = vmatprep.subr.mxu0 0.0
    %2233 = vmatpush1.msra.mxu0 0.0
    %2234 = vmatprep.subr.mxu0 0.0
    %2235 = vmatpush1.msra.mxu0 0.0
    %2236 = vmatprep.subr.mxu0 0.0
    %2237 = vmatpush1.msra.mxu0 0.0
    %2238 = vmatprep.subr.mxu0 0.0
    %2239 = vmatpush1.msra.mxu0 0.0
    %2240 = vmatprep.subr.mxu0 0.0
    %2241 = vmatpush1.msra.mxu0 0.0
    %2242 = vmatprep.subr.mxu0 0.0
    %2243 = vmatpush1.msra.mxu0 0.0
    %2244 = vmatprep.subr.mxu0 0.0
    %2245 = vmatpush1.msra.mxu0 0.0
    %2246 = vmatprep.subr.mxu0 0.0
    %2247 = vmatpush1.msra.mxu0 %v45
    %2248 = vmatprep.subr.mxu0 0.0
    %2249 = vmatpush2.msra.mxu0 0.0
    %2250 = vmatprep.subr.mxu0 0.0
    %2251 = vmatpush2.msra.mxu0 0.0
    %2252 = vmatprep.subr.mxu0 0.0
    %2253 = vmatpush2.msra.mxu0 0.0
    %2254 = vmatprep.subr.mxu0 0.0
    %2255 = vmatpush2.msra.mxu0 0.0
    %2256 = vmatprep.subr.mxu0 0.0
    %2257 = vmatpush2.msra.mxu0 0.0
    %2258 = vmatprep.subr.mxu0 0.0
    %2259 = vmatpush2.msra.mxu0 0.0
    %2260 = vmatprep.subr.mxu0 0.0
    %2261 = vmatpush2.msra.mxu0 0.0
    %2262 = vmatprep.subr.mxu0 0.0
    %2263 = vmatpush2.msra.mxu0 0.0
    %2264 = vmatprep.subr.mxu0 0.0
    %2265 = vmatpush2.msra.mxu0 0.0
    %2266 = vmatprep.subr.mxu0 0.0
    %2267 = vmatpush2.msra.mxu0 0.0
    %2268 = vmatprep.subr.mxu0 0.0
    %2269 = vmatpush2.msra.mxu0 0.0
    %2270 = vmatprep.subr.mxu0 0.0
    %2271 = vmatpush2.msra.mxu0 0.0
    %2272 = vmatprep.subr.mxu0 0.0
    %2273 = vmatpush2.msra.mxu0 0.0
    %2274 = vmatprep.subr.mxu0 0.0
    %2275 = vmatpush2.msra.mxu0 0.0
    %2276 = vmatprep.subr.mxu0 0.0
    %2277 = vmatpush2.msra.mxu0 0.0
    %2278 = vmatprep.subr.mxu0 0.0
    %2279 = vmatpush2.msra.mxu0 0.0
    %2280 = vmatprep.mubr.f32.mxu0 0.0
    %2281 = vmatmul.mubr.f32.gmra.mxu0 %v2214
    %v2282 = vpop.f32.mrf.mxu0
    %v2283 = vadd.f32 %v2210, %v2282
    %v2284 = vpop.f32.mrf.mxu0
    %2285 = vdwg.mxu0
    %v2286 = vadd.f32 %v2283, %v213
    %v2287 = vxor.u32 %v2286, 2147483648
    %v2288 = vmul.f32 %v2287, 1.442695
    %v2289 = vpow.pop %v2288
    %v2290 = vadd.f32 %v2289, 1.0
    %v2291 = vrcp.pop %v2290
    %v2292 = vmul.f32 1.0, %v2291
    %v2293 = vtanh.pop %v2286
    %v2294 = vmul.f32 %v2292, %v1959
    %2296 = vrot.lane.b32.xlu0 %v2293, 64
    %v2297 = vpop.permute.xlu0 %2296
    %v2299 = vmul.f32 %v2292, %v2297
    %2301 = vrot.lane.b32.xlu0 %v2299, 32
    %v2302 = vpop.permute.xlu0 %2301
    %v2304 = vadd.f32 %v2294, %v2302
    %v2305 = vtanh.pop %v2304
    %2307 = vrot.lane.b32.xlu0 %v2305, 64
    %v2308 = vpop.permute.xlu0 %2307
    %v2310 = vmul.f32 %v2292, %v2308
    %2312 = vrot.lane.b32.xlu0 %v2140, 32
    %v2313 = vpop.permute.xlu0 %2312
    %v2314 = vsel %vm61, %v2313, 0
    %2316 = vmatprep.subr.mxu0 0.0
    %2317 = vmatpush1.msra.mxu0 0.0
    %2318 = vmatprep.subr.mxu0 0.0
    %2319 = vmatpush1.msra.mxu0 0.0
    %2320 = vmatprep.subr.mxu0 0.0
    %2321 = vmatpush1.msra.mxu0 0.0
    %2322 = vmatprep.subr.mxu0 0.0
    %2323 = vmatpush1.msra.mxu0 0.0
    %2324 = vmatprep.subr.mxu0 0.0
    %2325 = vmatpush1.msra.mxu0 0.0
    %2326 = vmatprep.subr.mxu0 0.0
    %2327 = vmatpush1.msra.mxu0 0.0
    %2328 = vmatprep.subr.mxu0 0.0
    %2329 = vmatpush1.msra.mxu0 0.0
    %2330 = vmatprep.subr.mxu0 0.0
    %2331 = vmatpush1.msra.mxu0 0.0
    %2332 = vmatprep.subr.mxu0 0.0
    %2333 = vmatpush1.msra.mxu0 0.0
    %2334 = vmatprep.subr.mxu0 0.0
    %2335 = vmatpush1.msra.mxu0 0.0
    %2336 = vmatprep.subr.mxu0 0.0
    %2337 = vmatpush1.msra.mxu0 0.0
    %2338 = vmatprep.subr.mxu0 0.0
    %2339 = vmatpush1.msra.mxu0 0.0
    %2340 = vmatprep.subr.mxu0 0.0
    %2341 = vmatpush1.msra.mxu0 %v58
    %2342 = vmatprep.subr.mxu0 0.0
    %2343 = vmatpush1.msra.mxu0 %v57
    %2344 = vmatprep.subr.mxu0 0.0
    %2345 = vmatpush1.msra.mxu0 %v56
    %2346 = vmatprep.subr.mxu0 0.0
    %2347 = vmatpush1.msra.mxu0 %v55
    %2348 = vmatprep.subr.mxu0 0.0
    %2349 = vmatpush2.msra.mxu0 0.0
    %2350 = vmatprep.subr.mxu0 0.0
    %2351 = vmatpush2.msra.mxu0 0.0
    %2352 = vmatprep.subr.mxu0 0.0
    %2353 = vmatpush2.msra.mxu0 0.0
    %2354 = vmatprep.subr.mxu0 0.0
    %2355 = vmatpush2.msra.mxu0 0.0
    %2356 = vmatprep.subr.mxu0 0.0
    %2357 = vmatpush2.msra.mxu0 0.0
    %2358 = vmatprep.subr.mxu0 0.0
    %2359 = vmatpush2.msra.mxu0 0.0
    %2360 = vmatprep.subr.mxu0 0.0
    %2361 = vmatpush2.msra.mxu0 0.0
    %2362 = vmatprep.subr.mxu0 0.0
    %2363 = vmatpush2.msra.mxu0 0.0
    %2364 = vmatprep.subr.mxu0 0.0
    %2365 = vmatpush2.msra.mxu0 0.0
    %2366 = vmatprep.subr.mxu0 0.0
    %2367 = vmatpush2.msra.mxu0 0.0
    %2368 = vmatprep.subr.mxu0 0.0
    %2369 = vmatpush2.msra.mxu0 0.0
    %2370 = vmatprep.subr.mxu0 0.0
    %2371 = vmatpush2.msra.mxu0 0.0
    %2372 = vmatprep.subr.mxu0 0.0
    %2373 = vmatpush2.msra.mxu0 0.0
    %2374 = vmatprep.subr.mxu0 0.0
    %2375 = vmatpush2.msra.mxu0 0.0
    %2376 = vmatprep.subr.mxu0 0.0
    %2377 = vmatpush2.msra.mxu0 0.0
    %2378 = vmatprep.subr.mxu0 0.0
    %2379 = vmatpush2.msra.mxu0 0.0
    %2380 = vmatprep.mubr.f32.mxu0 0.0
    %2381 = vmatmul.mubr.f32.gmra.mxu0 %v2314
    %v2382 = vpop.f32.mrf.mxu0
    %v2383 = vadd.f32 0.0, %v2382
    %v2384 = vpop.f32.mrf.mxu0
    %2385 = vdwg.mxu0
    %2387 = vrot.lane.b32.xlu0 %v2310, 32
    %v2388 = vpop.permute.xlu0 %2387
    %v2389 = vsel %vm61, %v2388, 0
    %2391 = vmatprep.subr.mxu0 0.0
    %2392 = vmatpush1.msra.mxu0 0.0
    %2393 = vmatprep.subr.mxu0 0.0
    %2394 = vmatpush1.msra.mxu0 0.0
    %2395 = vmatprep.subr.mxu0 0.0
    %2396 = vmatpush1.msra.mxu0 0.0
    %2397 = vmatprep.subr.mxu0 0.0
    %2398 = vmatpush1.msra.mxu0 0.0
    %2399 = vmatprep.subr.mxu0 0.0
    %2400 = vmatpush1.msra.mxu0 0.0
    %2401 = vmatprep.subr.mxu0 0.0
    %2402 = vmatpush1.msra.mxu0 0.0
    %2403 = vmatprep.subr.mxu0 0.0
    %2404 = vmatpush1.msra.mxu0 0.0
    %2405 = vmatprep.subr.mxu0 0.0
    %2406 = vmatpush1.msra.mxu0 0.0
    %2407 = vmatprep.subr.mxu0 0.0
    %2408 = vmatpush1.msra.mxu0 0.0
    %2409 = vmatprep.subr.mxu0 0.0
    %2410 = vmatpush1.msra.mxu0 0.0
    %2411 = vmatprep.subr.mxu0 0.0
    %2412 = vmatpush1.msra.mxu0 0.0
    %2413 = vmatprep.subr.mxu0 0.0
    %2414 = vmatpush1.msra.mxu0 0.0
    %2415 = vmatprep.subr.mxu0 0.0
    %2416 = vmatpush1.msra.mxu0 %v54
    %2417 = vmatprep.subr.mxu0 0.0
    %2418 = vmatpush1.msra.mxu0 %v53
    %2419 = vmatprep.subr.mxu0 0.0
    %2420 = vmatpush1.msra.mxu0 %v52
    %2421 = vmatprep.subr.mxu0 0.0
    %2422 = vmatpush1.msra.mxu0 %v51
    %2423 = vmatprep.subr.mxu0 0.0
    %2424 = vmatpush2.msra.mxu0 0.0
    %2425 = vmatprep.subr.mxu0 0.0
    %2426 = vmatpush2.msra.mxu0 0.0
    %2427 = vmatprep.subr.mxu0 0.0
    %2428 = vmatpush2.msra.mxu0 0.0
    %2429 = vmatprep.subr.mxu0 0.0
    %2430 = vmatpush2.msra.mxu0 0.0
    %2431 = vmatprep.subr.mxu0 0.0
    %2432 = vmatpush2.msra.mxu0 0.0
    %2433 = vmatprep.subr.mxu0 0.0
    %2434 = vmatpush2.msra.mxu0 0.0
    %2435 = vmatprep.subr.mxu0 0.0
    %2436 = vmatpush2.msra.mxu0 0.0
    %2437 = vmatprep.subr.mxu0 0.0
    %2438 = vmatpush2.msra.mxu0 0.0
    %2439 = vmatprep.subr.mxu0 0.0
    %2440 = vmatpush2.msra.mxu0 0.0
    %2441 = vmatprep.subr.mxu0 0.0
    %2442 = vmatpush2.msra.mxu0 0.0
    %2443 = vmatprep.subr.mxu0 0.0
    %2444 = vmatpush2.msra.mxu0 0.0
    %2445 = vmatprep.subr.mxu0 0.0
    %2446 = vmatpush2.msra.mxu0 0.0
    %2447 = vmatprep.subr.mxu0 0.0
    %2448 = vmatpush2.msra.mxu0 0.0
    %2449 = vmatprep.subr.mxu0 0.0
    %2450 = vmatpush2.msra.mxu0 0.0
    %2451 = vmatprep.subr.mxu0 0.0
    %2452 = vmatpush2.msra.mxu0 0.0
    %2453 = vmatprep.subr.mxu0 0.0
    %2454 = vmatpush2.msra.mxu0 0.0
    %2455 = vmatprep.mubr.f32.mxu0 0.0
    %2456 = vmatmul.mubr.f32.gmra.mxu0 %v2389
    %v2457 = vpop.f32.mrf.mxu0
    %v2458 = vadd.f32 %v2383, %v2457
    %v2459 = vpop.f32.mrf.mxu0
    %2460 = vdwg.mxu0
    %v2461 = vadd.f32 %v2458, %v389
    %v2462 = vxor.u32 %v2461, 2147483648
    %v2463 = vmul.f32 %v2462, 1.442695
    %v2464 = vpow.pop %v2463
    %v2465 = vadd.f32 %v2464, 1.0
    %v2466 = vrcp.pop %v2465
    %v2467 = vmul.f32 1.0, %v2466
    %v2468 = vtanh.pop %v2461
    %v2469 = vmul.f32 %v2467, %v2134
    %2471 = vrot.lane.b32.xlu0 %v2468, 64
    %v2472 = vpop.permute.xlu0 %2471
    %v2474 = vmul.f32 %v2467, %v2472
    %2476 = vrot.lane.b32.xlu0 %v2474, 32
    %v2477 = vpop.permute.xlu0 %2476
    %v2479 = vadd.f32 %v2469, %v2477
    %v2480 = vtanh.pop %v2479
    %2482 = vrot.lane.b32.xlu0 %v2480, 64
    %v2483 = vpop.permute.xlu0 %2482
    %v2485 = vmul.f32 %v2467, %v2483
    %s2486 = scalar_lea.vmem %s0, 14
    %v2487 = vld [vmem:[%s2486] sm:$0x3]
    %2488 = vmatprep.subr.mxu0 0.0
    %2489 = vmatpush1.msra.mxu0 0.0
    %2490 = vmatprep.subr.mxu0 0.0
    %2491 = vmatpush1.msra.mxu0 0.0
    %2492 = vmatprep.subr.mxu0 0.0
    %2493 = vmatpush1.msra.mxu0 0.0
    %2494 = vmatprep.subr.mxu0 0.0
    %2495 = vmatpush1.msra.mxu0 0.0
    %2496 = vmatprep.subr.mxu0 0.0
    %2497 = vmatpush1.msra.mxu0 0.0
    %2498 = vmatprep.subr.mxu0 0.0
    %2499 = vmatpush1.msra.mxu0 0.0
    %2500 = vmatprep.subr.mxu0 0.0
    %2501 = vmatpush1.msra.mxu0 0.0
    %2502 = vmatprep.subr.mxu0 0.0
    %2503 = vmatpush1.msra.mxu0 0.0
    %2504 = vmatprep.subr.mxu0 0.0
    %2505 = vmatpush1.msra.mxu0 0.0
    %2506 = vmatprep.subr.mxu0 0.0
    %2507 = vmatpush1.msra.mxu0 0.0
    %2508 = vmatprep.subr.mxu0 0.0
    %2509 = vmatpush1.msra.mxu0 0.0
    %2510 = vmatprep.subr.mxu0 0.0
    %2511 = vmatpush1.msra.mxu0 0.0
    %2512 = vmatprep.subr.mxu0 0.0
    %2513 = vmatpush1.msra.mxu0 %v49
    %2514 = vmatprep.subr.mxu0 0.0
    %2515 = vmatpush1.msra.mxu0 %v48
    %2516 = vmatprep.subr.mxu0 0.0
    %2517 = vmatpush1.msra.mxu0 %v47
    %2518 = vmatprep.subr.mxu0 0.0
    %2519 = vmatpush1.msra.mxu0 %v46
    %2520 = vmatprep.subr.mxu0 0.0
    %2521 = vmatpush2.msra.mxu0 0.0
    %2522 = vmatprep.subr.mxu0 0.0
    %2523 = vmatpush2.msra.mxu0 0.0
    %2524 = vmatprep.subr.mxu0 0.0
    %2525 = vmatpush2.msra.mxu0 0.0
    %2526 = vmatprep.subr.mxu0 0.0
    %2527 = vmatpush2.msra.mxu0 0.0
    %2528 = vmatprep.subr.mxu0 0.0
    %2529 = vmatpush2.msra.mxu0 0.0
    %2530 = vmatprep.subr.mxu0 0.0
    %2531 = vmatpush2.msra.mxu0 0.0
    %2532 = vmatprep.subr.mxu0 0.0
    %2533 = vmatpush2.msra.mxu0 0.0
    %2534 = vmatprep.subr.mxu0 0.0
    %2535 = vmatpush2.msra.mxu0 0.0
    %2536 = vmatprep.subr.mxu0 0.0
    %2537 = vmatpush2.msra.mxu0 0.0
    %2538 = vmatprep.subr.mxu0 0.0
    %2539 = vmatpush2.msra.mxu0 0.0
    %2540 = vmatprep.subr.mxu0 0.0
    %2541 = vmatpush2.msra.mxu0 0.0
    %2542 = vmatprep.subr.mxu0 0.0
    %2543 = vmatpush2.msra.mxu0 0.0
    %2544 = vmatprep.subr.mxu0 0.0
    %2545 = vmatpush2.msra.mxu0 0.0
    %2546 = vmatprep.subr.mxu0 0.0
    %2547 = vmatpush2.msra.mxu0 0.0
    %2548 = vmatprep.subr.mxu0 0.0
    %2549 = vmatpush2.msra.mxu0 0.0
    %2550 = vmatprep.subr.mxu0 0.0
    %2551 = vmatpush2.msra.mxu0 0.0
    %2552 = vmatprep.mubr.f32.mxu0 0.0
    %2553 = vmatmul.mubr.f32.gmra.mxu0 %v2389
    %v2554 = vpop.f32.mrf.mxu0
    %v2555 = vadd.f32 0.0, %v2554
    %v2556 = vpop.f32.mrf.mxu0
    %2557 = vdwg.mxu0
    %v2559 = vsel %vm135, %v2487, 0
    %2561 = vmatprep.subr.mxu0 0.0
    %2562 = vmatpush1.msra.mxu0 0.0
    %2563 = vmatprep.subr.mxu0 0.0
    %2564 = vmatpush1.msra.mxu0 0.0
    %2565 = vmatprep.subr.mxu0 0.0
    %2566 = vmatpush1.msra.mxu0 0.0
    %2567 = vmatprep.subr.mxu0 0.0
    %2568 = vmatpush1.msra.mxu0 0.0
    %2569 = vmatprep.subr.mxu0 0.0
    %2570 = vmatpush1.msra.mxu0 0.0
    %2571 = vmatprep.subr.mxu0 0.0
    %2572 = vmatpush1.msra.mxu0 0.0
    %2573 = vmatprep.subr.mxu0 0.0
    %2574 = vmatpush1.msra.mxu0 0.0
    %2575 = vmatprep.subr.mxu0 0.0
    %2576 = vmatpush1.msra.mxu0 0.0
    %2577 = vmatprep.subr.mxu0 0.0
    %2578 = vmatpush1.msra.mxu0 0.0
    %2579 = vmatprep.subr.mxu0 0.0
    %2580 = vmatpush1.msra.mxu0 0.0
    %2581 = vmatprep.subr.mxu0 0.0
    %2582 = vmatpush1.msra.mxu0 0.0
    %2583 = vmatprep.subr.mxu0 0.0
    %2584 = vmatpush1.msra.mxu0 0.0
    %2585 = vmatprep.subr.mxu0 0.0
    %2586 = vmatpush1.msra.mxu0 0.0
    %2587 = vmatprep.subr.mxu0 0.0
    %2588 = vmatpush1.msra.mxu0 0.0
    %2589 = vmatprep.subr.mxu0 0.0
    %2590 = vmatpush1.msra.mxu0 0.0
    %2591 = vmatprep.subr.mxu0 0.0
    %2592 = vmatpush1.msra.mxu0 %v45
    %2593 = vmatprep.subr.mxu0 0.0
    %2594 = vmatpush2.msra.mxu0 0.0
    %2595 = vmatprep.subr.mxu0 0.0
    %2596 = vmatpush2.msra.mxu0 0.0
    %2597 = vmatprep.subr.mxu0 0.0
    %2598 = vmatpush2.msra.mxu0 0.0
    %2599 = vmatprep.subr.mxu0 0.0
    %2600 = vmatpush2.msra.mxu0 0.0
    %2601 = vmatprep.subr.mxu0 0.0
    %2602 = vmatpush2.msra.mxu0 0.0
    %2603 = vmatprep.subr.mxu0 0.0
    %2604 = vmatpush2.msra.mxu0 0.0
    %2605 = vmatprep.subr.mxu0 0.0
    %2606 = vmatpush2.msra.mxu0 0.0
    %2607 = vmatprep.subr.mxu0 0.0
    %2608 = vmatpush2.msra.mxu0 0.0
    %2609 = vmatprep.subr.mxu0 0.0
    %2610 = vmatpush2.msra.mxu0 0.0
    %2611 = vmatprep.subr.mxu0 0.0
    %2612 = vmatpush2.msra.mxu0 0.0
    %2613 = vmatprep.subr.mxu0 0.0
    %2614 = vmatpush2.msra.mxu0 0.0
    %2615 = vmatprep.subr.mxu0 0.0
    %2616 = vmatpush2.msra.mxu0 0.0
    %2617 = vmatprep.subr.mxu0 0.0
    %2618 = vmatpush2.msra.mxu0 0.0
    %2619 = vmatprep.subr.mxu0 0.0
    %2620 = vmatpush2.msra.mxu0 0.0
    %2621 = vmatprep.subr.mxu0 0.0
    %2622 = vmatpush2.msra.mxu0 0.0
    %2623 = vmatprep.subr.mxu0 0.0
    %2624 = vmatpush2.msra.mxu0 0.0
    %2625 = vmatprep.mubr.f32.mxu0 0.0
    %2626 = vmatmul.mubr.f32.gmra.mxu0 %v2559
    %v2627 = vpop.f32.mrf.mxu0
    %v2628 = vadd.f32 %v2555, %v2627
    %v2629 = vpop.f32.mrf.mxu0
    %2630 = vdwg.mxu0
    %v2631 = vadd.f32 %v2628, %v213
    %v2632 = vxor.u32 %v2631, 2147483648
    %v2633 = vmul.f32 %v2632, 1.442695
    %v2634 = vpow.pop %v2633
    %v2635 = vadd.f32 %v2634, 1.0
    %v2636 = vrcp.pop %v2635
    %v2637 = vmul.f32 1.0, %v2636
    %v2638 = vtanh.pop %v2631
    %v2639 = vmul.f32 %v2637, %v2304
    %2641 = vrot.lane.b32.xlu0 %v2638, 64
    %v2642 = vpop.permute.xlu0 %2641
    %v2644 = vmul.f32 %v2637, %v2642
    %2646 = vrot.lane.b32.xlu0 %v2644, 32
    %v2647 = vpop.permute.xlu0 %2646
    %v2649 = vadd.f32 %v2639, %v2647
    %v2650 = vtanh.pop %v2649
    %2652 = vrot.lane.b32.xlu0 %v2650, 64
    %v2653 = vpop.permute.xlu0 %2652
    %v2655 = vmul.f32 %v2637, %v2653
    %2657 = vrot.lane.b32.xlu0 %v2485, 32
    %v2658 = vpop.permute.xlu0 %2657
    %v2659 = vsel %vm61, %v2658, 0
    %2661 = vmatprep.subr.mxu0 0.0
    %2662 = vmatpush1.msra.mxu0 0.0
    %2663 = vmatprep.subr.mxu0 0.0
    %2664 = vmatpush1.msra.mxu0 0.0
    %2665 = vmatprep.subr.mxu0 0.0
    %2666 = vmatpush1.msra.mxu0 0.0
    %2667 = vmatprep.subr.mxu0 0.0
    %2668 = vmatpush1.msra.mxu0 0.0
    %2669 = vmatprep.subr.mxu0 0.0
    %2670 = vmatpush1.msra.mxu0 0.0
    %2671 = vmatprep.subr.mxu0 0.0
    %2672 = vmatpush1.msra.mxu0 0.0
    %2673 = vmatprep.subr.mxu0 0.0
    %2674 = vmatpush1.msra.mxu0 0.0
    %2675 = vmatprep.subr.mxu0 0.0
    %2676 = vmatpush1.msra.mxu0 0.0
    %2677 = vmatprep.subr.mxu0 0.0
    %2678 = vmatpush1.msra.mxu0 0.0
    %2679 = vmatprep.subr.mxu0 0.0
    %2680 = vmatpush1.msra.mxu0 0.0
    %2681 = vmatprep.subr.mxu0 0.0
    %2682 = vmatpush1.msra.mxu0 0.0
    %2683 = vmatprep.subr.mxu0 0.0
    %2684 = vmatpush1.msra.mxu0 0.0
    %2685 = vmatprep.subr.mxu0 0.0
    %2686 = vmatpush1.msra.mxu0 %v58
    %2687 = vmatprep.subr.mxu0 0.0
    %2688 = vmatpush1.msra.mxu0 %v57
    %2689 = vmatprep.subr.mxu0 0.0
    %2690 = vmatpush1.msra.mxu0 %v56
    %2691 = vmatprep.subr.mxu0 0.0
    %2692 = vmatpush1.msra.mxu0 %v55
    %2693 = vmatprep.subr.mxu0 0.0
    %2694 = vmatpush2.msra.mxu0 0.0
    %2695 = vmatprep.subr.mxu0 0.0
    %2696 = vmatpush2.msra.mxu0 0.0
    %2697 = vmatprep.subr.mxu0 0.0
    %2698 = vmatpush2.msra.mxu0 0.0
    %2699 = vmatprep.subr.mxu0 0.0
    %2700 = vmatpush2.msra.mxu0 0.0
    %2701 = vmatprep.subr.mxu0 0.0
    %2702 = vmatpush2.msra.mxu0 0.0
    %2703 = vmatprep.subr.mxu0 0.0
    %2704 = vmatpush2.msra.mxu0 0.0
    %2705 = vmatprep.subr.mxu0 0.0
    %2706 = vmatpush2.msra.mxu0 0.0
    %2707 = vmatprep.subr.mxu0 0.0
    %2708 = vmatpush2.msra.mxu0 0.0
    %2709 = vmatprep.subr.mxu0 0.0
    %2710 = vmatpush2.msra.mxu0 0.0
    %2711 = vmatprep.subr.mxu0 0.0
    %2712 = vmatpush2.msra.mxu0 0.0
    %2713 = vmatprep.subr.mxu0 0.0
    %2714 = vmatpush2.msra.mxu0 0.0
    %2715 = vmatprep.subr.mxu0 0.0
    %2716 = vmatpush2.msra.mxu0 0.0
    %2717 = vmatprep.subr.mxu0 0.0
    %2718 = vmatpush2.msra.mxu0 0.0
    %2719 = vmatprep.subr.mxu0 0.0
    %2720 = vmatpush2.msra.mxu0 0.0
    %2721 = vmatprep.subr.mxu0 0.0
    %2722 = vmatpush2.msra.mxu0 0.0
    %2723 = vmatprep.subr.mxu0 0.0
    %2724 = vmatpush2.msra.mxu0 0.0
    %2725 = vmatprep.mubr.f32.mxu0 0.0
    %2726 = vmatmul.mubr.f32.gmra.mxu0 %v2659
    %v2727 = vpop.f32.mrf.mxu0
    %v2728 = vadd.f32 0.0, %v2727
    %v2729 = vpop.f32.mrf.mxu0
    %2730 = vdwg.mxu0
    %2732 = vrot.lane.b32.xlu0 %v2655, 32
    %v2733 = vpop.permute.xlu0 %2732
    %v2734 = vsel %vm61, %v2733, 0
    %2736 = vmatprep.subr.mxu0 0.0
    %2737 = vmatpush1.msra.mxu0 0.0
    %2738 = vmatprep.subr.mxu0 0.0
    %2739 = vmatpush1.msra.mxu0 0.0
    %2740 = vmatprep.subr.mxu0 0.0
    %2741 = vmatpush1.msra.mxu0 0.0
    %2742 = vmatprep.subr.mxu0 0.0
    %2743 = vmatpush1.msra.mxu0 0.0
    %2744 = vmatprep.subr.mxu0 0.0
    %2745 = vmatpush1.msra.mxu0 0.0
    %2746 = vmatprep.subr.mxu0 0.0
    %2747 = vmatpush1.msra.mxu0 0.0
    %2748 = vmatprep.subr.mxu0 0.0
    %2749 = vmatpush1.msra.mxu0 0.0
    %2750 = vmatprep.subr.mxu0 0.0
    %2751 = vmatpush1.msra.mxu0 0.0
    %2752 = vmatprep.subr.mxu0 0.0
    %2753 = vmatpush1.msra.mxu0 0.0
    %2754 = vmatprep.subr.mxu0 0.0
    %2755 = vmatpush1.msra.mxu0 0.0
    %2756 = vmatprep.subr.mxu0 0.0
    %2757 = vmatpush1.msra.mxu0 0.0
    %2758 = vmatprep.subr.mxu0 0.0
    %2759 = vmatpush1.msra.mxu0 0.0
    %2760 = vmatprep.subr.mxu0 0.0
    %2761 = vmatpush1.msra.mxu0 %v54
    %2762 = vmatprep.subr.mxu0 0.0
    %2763 = vmatpush1.msra.mxu0 %v53
    %2764 = vmatprep.subr.mxu0 0.0
    %2765 = vmatpush1.msra.mxu0 %v52
    %2766 = vmatprep.subr.mxu0 0.0
    %2767 = vmatpush1.msra.mxu0 %v51
    %2768 = vmatprep.subr.mxu0 0.0
    %2769 = vmatpush2.msra.mxu0 0.0
    %2770 = vmatprep.subr.mxu0 0.0
    %2771 = vmatpush2.msra.mxu0 0.0
    %2772 = vmatprep.subr.mxu0 0.0
    %2773 = vmatpush2.msra.mxu0 0.0
    %2774 = vmatprep.subr.mxu0 0.0
    %2775 = vmatpush2.msra.mxu0 0.0
    %2776 = vmatprep.subr.mxu0 0.0
    %2777 = vmatpush2.msra.mxu0 0.0
    %2778 = vmatprep.subr.mxu0 0.0
    %2779 = vmatpush2.msra.mxu0 0.0
    %2780 = vmatprep.subr.mxu0 0.0
    %2781 = vmatpush2.msra.mxu0 0.0
    %2782 = vmatprep.subr.mxu0 0.0
    %2783 = vmatpush2.msra.mxu0 0.0
    %2784 = vmatprep.subr.mxu0 0.0
    %2785 = vmatpush2.msra.mxu0 0.0
    %2786 = vmatprep.subr.mxu0 0.0
    %2787 = vmatpush2.msra.mxu0 0.0
    %2788 = vmatprep.subr.mxu0 0.0
    %2789 = vmatpush2.msra.mxu0 0.0
    %2790 = vmatprep.subr.mxu0 0.0
    %2791 = vmatpush2.msra.mxu0 0.0
    %2792 = vmatprep.subr.mxu0 0.0
    %2793 = vmatpush2.msra.mxu0 0.0
    %2794 = vmatprep.subr.mxu0 0.0
    %2795 = vmatpush2.msra.mxu0 0.0
    %2796 = vmatprep.subr.mxu0 0.0
    %2797 = vmatpush2.msra.mxu0 0.0
    %2798 = vmatprep.subr.mxu0 0.0
    %2799 = vmatpush2.msra.mxu0 0.0
    %2800 = vmatprep.mubr.f32.mxu0 0.0
    %2801 = vmatmul.mubr.f32.gmra.mxu0 %v2734
    %v2802 = vpop.f32.mrf.mxu0
    %v2803 = vadd.f32 %v2728, %v2802
    %v2804 = vpop.f32.mrf.mxu0
    %2805 = vdwg.mxu0
    %v2806 = vadd.f32 %v2803, %v389
    %v2807 = vxor.u32 %v2806, 2147483648
    %v2808 = vmul.f32 %v2807, 1.442695
    %v2809 = vpow.pop %v2808
    %v2810 = vadd.f32 %v2809, 1.0
    %v2811 = vrcp.pop %v2810
    %v2812 = vmul.f32 1.0, %v2811
    %v2813 = vtanh.pop %v2806
    %v2814 = vmul.f32 %v2812, %v2479
    %2816 = vrot.lane.b32.xlu0 %v2813, 64
    %v2817 = vpop.permute.xlu0 %2816
    %v2819 = vmul.f32 %v2812, %v2817
    %2821 = vrot.lane.b32.xlu0 %v2819, 32
    %v2822 = vpop.permute.xlu0 %2821
    %v2824 = vadd.f32 %v2814, %v2822
    %v2825 = vtanh.pop %v2824
    %2827 = vrot.lane.b32.xlu0 %v2825, 64
    %v2828 = vpop.permute.xlu0 %2827
    %v2830 = vmul.f32 %v2812, %v2828
    %v2831 = vld [vmem:[%s1] sm:$0x3]
    %v2832 = vld [vmem:[%s8] sm:$0xff]
    %v2833 = vld [vmem:[%s8 + $0x8] sm:$0xff]
    %v2834 = vld [vmem:[%s9] sm:$0x1]
    %v2836 = vlaneseq
    %v2837 = vshrl.u32 %v2836, 7
    %v2838 = vsub.s32 0, %v2837
    %v2839 = vrot.slane %v2834, %v2838
    %vm2841 = vcmask 130048
    %v2843 = vsel %vm2841, %v2831, 0
    %2845 = vmatprep.subr.mxu0 0.0
    %2846 = vmatpush1.msra.mxu0 0.0
    %2847 = vmatprep.subr.mxu0 0.0
    %2848 = vmatpush1.msra.mxu0 0.0
    %2849 = vmatprep.subr.mxu0 0.0
    %2850 = vmatpush1.msra.mxu0 0.0
    %2851 = vmatprep.subr.mxu0 0.0
    %2852 = vmatpush1.msra.mxu0 0.0
    %2853 = vmatprep.subr.mxu0 0.0
    %2854 = vmatpush1.msra.mxu0 0.0
    %2855 = vmatprep.subr.mxu0 0.0
    %2856 = vmatpush1.msra.mxu0 0.0
    %2857 = vmatprep.subr.mxu0 0.0
    %2858 = vmatpush1.msra.mxu0 0.0
    %2859 = vmatprep.subr.mxu0 0.0
    %2860 = vmatpush1.msra.mxu0 0.0
    %2861 = vmatprep.subr.mxu0 0.0
    %2862 = vmatpush1.msra.mxu0 0.0
    %2863 = vmatprep.subr.mxu0 0.0
    %2864 = vmatpush1.msra.mxu0 0.0
    %2865 = vmatprep.subr.mxu0 0.0
    %2866 = vmatpush1.msra.mxu0 0.0
    %2867 = vmatprep.subr.mxu0 0.0
    %2868 = vmatpush1.msra.mxu0 0.0
    %2869 = vmatprep.subr.mxu0 0.0
    %2870 = vmatpush1.msra.mxu0 0.0
    %2871 = vmatprep.subr.mxu0 0.0
    %2872 = vmatpush1.msra.mxu0 0.0
    %2873 = vmatprep.subr.mxu0 0.0
    %2874 = vmatpush1.msra.mxu0 %v2833
    %2875 = vmatprep.subr.mxu0 0.0
    %2876 = vmatpush1.msra.mxu0 %v2832
    %2877 = vmatprep.subr.mxu0 0.0
    %2878 = vmatpush2.msra.mxu0 0.0
    %2879 = vmatprep.subr.mxu0 0.0
    %2880 = vmatpush2.msra.mxu0 0.0
    %2881 = vmatprep.subr.mxu0 0.0
    %2882 = vmatpush2.msra.mxu0 0.0
    %2883 = vmatprep.subr.mxu0 0.0
    %2884 = vmatpush2.msra.mxu0 0.0
    %2885 = vmatprep.subr.mxu0 0.0
    %2886 = vmatpush2.msra.mxu0 0.0
    %2887 = vmatprep.subr.mxu0 0.0
    %2888 = vmatpush2.msra.mxu0 0.0
    %2889 = vmatprep.subr.mxu0 0.0
    %2890 = vmatpush2.msra.mxu0 0.0
    %2891 = vmatprep.subr.mxu0 0.0
    %2892 = vmatpush2.msra.mxu0 0.0
    %2893 = vmatprep.subr.mxu0 0.0
    %2894 = vmatpush2.msra.mxu0 0.0
    %2895 = vmatprep.subr.mxu0 0.0
    %2896 = vmatpush2.msra.mxu0 0.0
    %2897 = vmatprep.subr.mxu0 0.0
    %2898 = vmatpush2.msra.mxu0 0.0
    %2899 = vmatprep.subr.mxu0 0.0
    %2900 = vmatpush2.msra.mxu0 0.0
    %2901 = vmatprep.subr.mxu0 0.0
    %2902 = vmatpush2.msra.mxu0 0.0
    %2903 = vmatprep.subr.mxu0 0.0
    %2904 = vmatpush2.msra.mxu0 0.0
    %2905 = vmatprep.subr.mxu0 0.0
    %2906 = vmatpush2.msra.mxu0 0.0
    %2907 = vmatprep.subr.mxu0 0.0
    %2908 = vmatpush2.msra.mxu0 0.0
    %2909 = vmatprep.mubr.f32.mxu0 0.0
    %2910 = vmatmul.mubr.f32.gmra.mxu0 %v2843
    %v2911 = vpop.f32.mrf.mxu0
    %v2912 = vadd.f32 %v2839, %v2911
    %v2913 = vpop.f32.mrf.mxu0
    %2914 = vdwg.mxu0
    %v2915 = vld [vmem:[%s10] sm:$0xff]
    %v2916 = vld [vmem:[%s10 + $0x8] sm:$0xff]
    %v2917 = vld [vmem:[%s10 + $0x10] sm:$0xff]
    %v2918 = vld [vmem:[%s10 + $0x18] sm:$0xff]
    %v2919 = vld [vmem:[%s11] sm:$0xff]
    %v2921 = vsel %vm135, %v2912, 0
    %2923 = vmatprep.subr.mxu0 0.0
    %2924 = vmatpush1.msra.mxu0 0.0
    %2925 = vmatprep.subr.mxu0 0.0
    %2926 = vmatpush1.msra.mxu0 0.0
    %2927 = vmatprep.subr.mxu0 0.0
    %2928 = vmatpush1.msra.mxu0 0.0
    %2929 = vmatprep.subr.mxu0 0.0
    %2930 = vmatpush1.msra.mxu0 0.0
    %2931 = vmatprep.subr.mxu0 0.0
    %2932 = vmatpush1.msra.mxu0 0.0
    %2933 = vmatprep.subr.mxu0 0.0
    %2934 = vmatpush1.msra.mxu0 0.0
    %2935 = vmatprep.subr.mxu0 0.0
    %2936 = vmatpush1.msra.mxu0 0.0
    %2937 = vmatprep.subr.mxu0 0.0
    %2938 = vmatpush1.msra.mxu0 0.0
    %2939 = vmatprep.subr.mxu0 0.0
    %2940 = vmatpush1.msra.mxu0 0.0
    %2941 = vmatprep.subr.mxu0 0.0
    %2942 = vmatpush1.msra.mxu0 0.0
    %2943 = vmatprep.subr.mxu0 0.0
    %2944 = vmatpush1.msra.mxu0 0.0
    %2945 = vmatprep.subr.mxu0 0.0
    %2946 = vmatpush1.msra.mxu0 0.0
    %2947 = vmatprep.subr.mxu0 0.0
    %2948 = vmatpush1.msra.mxu0 0.0
    %2949 = vmatprep.subr.mxu0 0.0
    %2950 = vmatpush1.msra.mxu0 0.0
    %2951 = vmatprep.subr.mxu0 0.0
    %2952 = vmatpush1.msra.mxu0 0.0
    %2953 = vmatprep.subr.mxu0 0.0
    %2954 = vmatpush1.msra.mxu0 %v2919
    %2955 = vmatprep.subr.mxu0 0.0
    %2956 = vmatpush2.msra.mxu0 0.0
    %2957 = vmatprep.subr.mxu0 0.0
    %2958 = vmatpush2.msra.mxu0 0.0
    %2959 = vmatprep.subr.mxu0 0.0
    %2960 = vmatpush2.msra.mxu0 0.0
    %2961 = vmatprep.subr.mxu0 0.0
    %2962 = vmatpush2.msra.mxu0 0.0
    %2963 = vmatprep.subr.mxu0 0.0
    %2964 = vmatpush2.msra.mxu0 0.0
    %2965 = vmatprep.subr.mxu0 0.0
    %2966 = vmatpush2.msra.mxu0 0.0
    %2967 = vmatprep.subr.mxu0 0.0
    %2968 = vmatpush2.msra.mxu0 0.0
    %2969 = vmatprep.subr.mxu0 0.0
    %2970 = vmatpush2.msra.mxu0 0.0
    %2971 = vmatprep.subr.mxu0 0.0
    %2972 = vmatpush2.msra.mxu0 0.0
    %2973 = vmatprep.subr.mxu0 0.0
    %2974 = vmatpush2.msra.mxu0 0.0
    %2975 = vmatprep.subr.mxu0 0.0
    %2976 = vmatpush2.msra.mxu0 0.0
    %2977 = vmatprep.subr.mxu0 0.0
    %2978 = vmatpush2.msra.mxu0 0.0
    %2979 = vmatprep.subr.mxu0 0.0
    %2980 = vmatpush2.msra.mxu0 0.0
    %2981 = vmatprep.subr.mxu0 0.0
    %2982 = vmatpush2.msra.mxu0 0.0
    %2983 = vmatprep.subr.mxu0 0.0
    %2984 = vmatpush2.msra.mxu0 0.0
    %2985 = vmatprep.subr.mxu0 0.0
    %2986 = vmatpush2.msra.mxu0 0.0
    %2987 = vmatprep.mubr.f32.mxu0 0.0
    %2988 = vmatmul.mubr.f32.gmra.mxu0 %v2921
    %v2989 = vpop.f32.mrf.mxu0
    %v2990 = vadd.f32 0.0, %v2989
    %v2991 = vpop.f32.mrf.mxu0
    %2992 = vdwg.mxu0
    %2994 = vrot.lane.b32.xlu0 %v2830, 32
    %v2995 = vpop.permute.xlu0 %2994
    %v2996 = vsel %vm61, %v2995, 0
    %2998 = vmatprep.subr.mxu0 0.0
    %2999 = vmatpush1.msra.mxu0 0.0
    %3000 = vmatprep.subr.mxu0 0.0
    %3001 = vmatpush1.msra.mxu0 0.0
    %3002 = vmatprep.subr.mxu0 0.0
    %3003 = vmatpush1.msra.mxu0 0.0
    %3004 = vmatprep.subr.mxu0 0.0
    %3005 = vmatpush1.msra.mxu0 0.0
    %3006 = vmatprep.subr.mxu0 0.0
    %3007 = vmatpush1.msra.mxu0 0.0
    %3008 = vmatprep.subr.mxu0 0.0
    %3009 = vmatpush1.msra.mxu0 0.0
    %3010 = vmatprep.subr.mxu0 0.0
    %3011 = vmatpush1.msra.mxu0 0.0
    %3012 = vmatprep.subr.mxu0 0.0
    %3013 = vmatpush1.msra.mxu0 0.0
    %3014 = vmatprep.subr.mxu0 0.0
    %3015 = vmatpush1.msra.mxu0 0.0
    %3016 = vmatprep.subr.mxu0 0.0
    %3017 = vmatpush1.msra.mxu0 0.0
    %3018 = vmatprep.subr.mxu0 0.0
    %3019 = vmatpush1.msra.mxu0 0.0
    %3020 = vmatprep.subr.mxu0 0.0
    %3021 = vmatpush1.msra.mxu0 0.0
    %3022 = vmatprep.subr.mxu0 0.0
    %3023 = vmatpush1.msra.mxu0 %v2918
    %3024 = vmatprep.subr.mxu0 0.0
    %3025 = vmatpush1.msra.mxu0 %v2917
    %3026 = vmatprep.subr.mxu0 0.0
    %3027 = vmatpush1.msra.mxu0 %v2916
    %3028 = vmatprep.subr.mxu0 0.0
    %3029 = vmatpush1.msra.mxu0 %v2915
    %3030 = vmatprep.subr.mxu0 0.0
    %3031 = vmatpush2.msra.mxu0 0.0
    %3032 = vmatprep.subr.mxu0 0.0
    %3033 = vmatpush2.msra.mxu0 0.0
    %3034 = vmatprep.subr.mxu0 0.0
    %3035 = vmatpush2.msra.mxu0 0.0
    %3036 = vmatprep.subr.mxu0 0.0
    %3037 = vmatpush2.msra.mxu0 0.0
    %3038 = vmatprep.subr.mxu0 0.0
    %3039 = vmatpush2.msra.mxu0 0.0
    %3040 = vmatprep.subr.mxu0 0.0
    %3041 = vmatpush2.msra.mxu0 0.0
    %3042 = vmatprep.subr.mxu0 0.0
    %3043 = vmatpush2.msra.mxu0 0.0
    %3044 = vmatprep.subr.mxu0 0.0
    %3045 = vmatpush2.msra.mxu0 0.0
    %3046 = vmatprep.subr.mxu0 0.0
    %3047 = vmatpush2.msra.mxu0 0.0
    %3048 = vmatprep.subr.mxu0 0.0
    %3049 = vmatpush2.msra.mxu0 0.0
    %3050 = vmatprep.subr.mxu0 0.0
    %3051 = vmatpush2.msra.mxu0 0.0
    %3052 = vmatprep.subr.mxu0 0.0
    %3053 = vmatpush2.msra.mxu0 0.0
    %3054 = vmatprep.subr.mxu0 0.0
    %3055 = vmatpush2.msra.mxu0 0.0
    %3056 = vmatprep.subr.mxu0 0.0
    %3057 = vmatpush2.msra.mxu0 0.0
    %3058 = vmatprep.subr.mxu0 0.0
    %3059 = vmatpush2.msra.mxu0 0.0
    %3060 = vmatprep.subr.mxu0 0.0
    %3061 = vmatpush2.msra.mxu0 0.0
    %3062 = vmatprep.mubr.f32.mxu0 0.0
    %3063 = vmatmul.mubr.f32.gmra.mxu0 %v2996
    %v3064 = vpop.f32.mrf.mxu0
    %v3065 = vadd.f32 %v2990, %v3064
    %v3066 = vpop.f32.mrf.mxu0
    %3067 = vdwg.mxu0
    %v3068 = vld [vmem:[%s12] sm:$0x1]
    %v3070 = vlaneseq
    %v3071 = vshrl.u32 %v3070, 7
    %v3072 = vsub.s32 0, %v3071
    %v3073 = vrot.slane %v3068, %v3072
    %v3075 = vadd.f32 %v3065, %v3073
    %vm3076 = vcmask 17408
    %3077 = vst.msk [vmem:[#allocation2] sm:$0x3] %vm3076, %v3075
    // Predicated region
    $region54: #{lstmtag_forward.1} parent=1 // pred_check
      _
    $region55: #{lstmtag_forward.1} parent=1 // pred_check_branch
      %3079 = sbr.rel (0) target = $region57
    $region56: #{lstmtag_forward.1} parent=1 // pred_region
      %s3081 = ssub.s32 32, 32
      %3082 = vsyncadd [#allocation3], %s3081
      %s3084 = sshll.u32 [#allocation2], 4
      %s3085 = int_to_ptr.vmem [resolvable:$true] %s3084
      %3087 = dma.vmem_to_hbm [thread:$0]  %s3085, 32, %s13, [#allocation3]
    $region57: #{lstmtag_forward.1} parent=1 // pred_fallthru
      _
    // Predicated region
    $region58: #{lstmtag_forward.1} parent=1 // pred_check
      _
    $region59: #{lstmtag_forward.1} parent=1 // pred_check_branch
      %3089 = sbr.rel (0) target = $region61
    $region60: #{lstmtag_forward.1} parent=1 // pred_region
      %3090 = dma.done [#allocation3], 32
    $region61: #{lstmtag_forward.1} parent=1 // pred_fallthru
      _
    %3091 = vsyncpa [#allocation3], 1

</llo_original>
